<compile_context>
chip_gen: v5e
topology: v5e:2x2
jax: 0.10.0
libtpu: 0.0.40
codegen_flags: <defaults>
</compile_context>

<pallas_src>
import functools
import numpy as np
import jax
import jax.numpy as jnp
from jax import lax
from jax.experimental import pallas as pl
from jax.experimental.pallas import tpu as pltpu

LN_EPS = 1e-5          # nn.LayerNorm default
ROUND_EPS = 1e-3       # module's self.eps, only used for pooled-size rounding


# ----------------------------------------------------------------------------
# Pooling-matrix construction (matches F.adaptive_avg_pool2d windowing).
# ----------------------------------------------------------------------------
def _adaptive_pool_1d(n, o):
    m = np.zeros((n, o), dtype=np.float32)
    for i in range(o):
        s = (i * n) // o
        e = -((-(i + 1) * n) // o)  # ceil
        m[s:e, i] = 1.0 / (e - s)
    return m


def build_pool_matrix(H, W, pooled_sizes):
    mats = []
    for ps in pooled_sizes:
        if W >= H:
            ph, pw = ps, int(round(W * ps / H + ROUND_EPS))
        else:
            ph, pw = int(round(H * ps / W + ROUND_EPS)), ps
        # [h*W+w, oh*pw+ow] = wh[h,oh] * ww[w,ow]
        mats.append(np.kron(_adaptive_pool_1d(H, ph), _adaptive_pool_1d(W, pw)))
    return np.concatenate(mats, axis=1)  # (H*W, P)


@functools.lru_cache(maxsize=None)
def _pool_matrix_device(H, W, pooled_sizes):
    # Cached per (H, W, pooled_sizes): avoids the numpy rebuild + device
    # re-upload on every call (which can exceed the kernel's runtime here).
    return jnp.asarray(build_pool_matrix(H, W, list(pooled_sizes)),
                       dtype=jnp.bfloat16)


# ----------------------------------------------------------------------------
# Chip-generation aware grid sizing.
# ----------------------------------------------------------------------------
def _num_tensorcores_per_chip():
    try:
        kind = (jax.devices()[0].device_kind or "").lower()
    except Exception:
        return 1
    # v7x has 2 TensorCores per chip; v5e/v6e have 1.
    if "v7" in kind or "tpu7" in kind or "7x" in kind:
        return 2
    return 1


def _choose_block_b(B, num_tc, max_block_b=2):
    if B <= 1:
        return 1
    if num_tc >= 2:
        # Keep >= 2 "parallel" grid steps so both TensorCores get work.
        best = 1
        for bb in range(1, min(B, max_block_b) + 1):
            if B % bb == 0 and B // bb >= 2:
                best = bb
        return best
    # Single TensorCore (v5e/v6e): grid is a sequential loop, so minimize the
    # number of ~0.35us grid steps; cap block_b to bound in-kernel code size /
    # vreg pressure of the unrolled per-batch loop.
    best = 1
    for bb in range(1, min(B, max_block_b) + 1):
        if B % bb == 0:
            best = bb
    return best


# ----------------------------------------------------------------------------
# Pallas kernel: `block_b` batch elements per grid step, everything kept in a
# channels-first (C-on-sublane, HW-on-lane) layout. MXU operands are bf16,
# accumulation and LN/softmax math are f32.
# ----------------------------------------------------------------------------
def make_kernel(num_heads, head_dim, scale, block_b):
    C = num_heads * head_dim
    C2 = 2 * C

    def kernel(x_ref, pmat_ref, wq_ref, wkv_ref, wp_ref, bias_ref, o_ref):
        # weights / constants loaded once per grid step (reused across block_b)
        wq = wq_ref[...]        # (C, C)   bf16
        wkv = wkv_ref[...]      # (2C, C)  bf16, LN gamma folded in
        wp = wp_ref[...]        # (C, C)   bf16
        pmat = pmat_ref[...]    # (HW, P)  bf16
        bias = bias_ref[...]    # (3C, 1)  f32
        bkv = bias[:C2]         # (2C, 1)  folded LN beta bias for kv
        bp = bias[C2:]          # (C, 1)   proj bias
        HW = pmat.shape[0]
        P = pmat.shape[1]

        def body(b, carry):
            x = x_ref[b]                                            # (C, HW) bf16

            # q branch: 1x1 conv (no bias) == wq @ x; softmax scale folded once
            q_t = jnp.dot(wq, x,
                          preferred_element_type=jnp.float32) * scale   # (C, HW) f32

            # adaptive avg pools (all scales) as one matmul, channels-first
            pooled_t = jnp.dot(x, pmat,
                               preferred_element_type=jnp.float32)      # (C, P) f32

            # LayerNorm over channel dim (sublane axis); affine folded into wkv
            mu = jnp.mean(pooled_t, axis=0, keepdims=True)               # (1, P)
            var = jnp.mean((pooled_t - mu) ** 2, axis=0, keepdims=True)
            norm_t = (pooled_t - mu) * lax.rsqrt(var + LN_EPS)           # (C, P) f32

            # fused k/v projection (gamma-scaled weights) + folded beta bias
            kv_t = jnp.dot(wkv, norm_t.astype(jnp.bfloat16),
                           preferred_element_type=jnp.float32) + bkv     # (2C, P) f32
            k_t = kv_t[:C]                                               # (C, P)
            v_t = kv_t[C:]                                               # (C, P)

            # per-head attention via batched dot_general (head = batch dim)
            q_r = q_t.astype(jnp.bfloat16).reshape(num_heads, head_dim, HW)
            k_r = k_t.astype(jnp.bfloat16).reshape(num_heads, head_dim, P)
            v_r = v_t.astype(jnp.bfloat16).reshape(num_heads, head_dim, P)

            # scores^T[h, p, n] = sum_d k[h,d,p] * q[h,d,n]
            scores_t = lax.dot_general(
                k_r, q_r, (((1,), (1,)), ((0,), (0,))),
                preferred_element_type=jnp.float32)                      # (h, P, HW) f32

            # softmax over keys (axis=1), all in f32; EUP reciprocal
            m = jnp.max(scores_t, axis=1, keepdims=True)                 # (h, 1, HW)
            e = jnp.exp(scores_t - m)
            s = jnp.sum(e, axis=1, keepdims=True)                        # (h, 1, HW)
            attn_t = e * pl.reciprocal(s, approx=True)                   # (h, P, HW) f32

            # out^T[h, d, n] = sum_p v[h,d,p] * attn^T[h,p,n]
            out_t = lax.dot_general(
                v_r, attn_t.astype(jnp.bfloat16),
                (((2,), (1,)), ((0,), (0,))),
                preferred_element_type=jnp.float32)                      # (h, hd, HW) f32
            out_t = out_t.reshape(C, HW)

            # output projection (with bias), channels-first, lane-dense store
            y_t = jnp.dot(wp, out_t.astype(jnp.bfloat16),
                          preferred_element_type=jnp.float32) + bp       # (C, HW) f32
            o_ref[b] = y_t
            return carry

        if block_b == 1:
            body(0, 0)
        else:
            # fori_loop (unrolled) instead of a static Python loop so live
            # ranges stay bounded and the LLO scheduler sees the loop.
            lax.fori_loop(0, block_b, body, 0, unroll=True)

    return kernel


# ----------------------------------------------------------------------------
# Wrapper
# ----------------------------------------------------------------------------
def pooling_attention(x_nchw, params, num_heads, pooled_sizes):
    B, C, H, W = map(int, x_nchw.shape)
    HW = H * W
    head_dim = C // num_heads
    scale = head_dim ** -0.5

    pmat = _pool_matrix_device(H, W, tuple(pooled_sizes))        # (HW, P) bf16
    P = int(pmat.shape[1])

    # Channels-first, HW-on-lane layout end to end (pure reshape, no transpose).
    # bf16 halves the per-grid-step x DMA and feeds the MXU natively.
    x_flat = x_nchw.reshape(B, C, HW).astype(jnp.bfloat16)

    # --- parameter prep (fold LN affine, f32 math then bf16 MXU operands) ---
    gamma = params["ln_g"].astype(jnp.float32)                   # (C,)
    beta = params["ln_b"].astype(jnp.float32)                    # (C,)
    wkv_f32 = params["wkv"].astype(jnp.float32)                  # (2C, C)
    #   kv = wkv @ (norm*gamma + beta) = (wkv*gamma) @ norm + wkv@beta
    wkv_folded = (wkv_f32 * gamma[None, :]).astype(jnp.bfloat16)  # (2C, C)
    bkv = wkv_f32 @ beta                                          # (2C,)
    bp = params["bp"].astype(jnp.float32)                         # (C,)
    bias = jnp.concatenate([bkv, bp]).reshape(3 * C, 1)           # single DMA

    wq = params["wq"].astype(jnp.bfloat16)                        # (C, C)
    wp = params["wp"].astype(jnp.bfloat16)                        # (C, C)

    num_tc = _num_tensorcores_per_chip()
    block_b = _choose_block_b(B, num_tc)
    grid_b = B // block_b

    kernel = make_kernel(num_heads, head_dim, scale, block_b)

    # Advisory cost estimate so XLA can schedule/overlap this small call.
    flops = B * (2 * C * C * HW          # q proj
                 + 2 * C * HW * P        # pooling matmul
                 + 2 * (2 * C) * C * P   # fused kv proj
                 + 2 * C * P * HW        # scores
                 + 2 * C * P * HW        # attn @ v
                 + 2 * C * C * HW)       # out proj
    transcendentals = B * num_heads * P * HW
    bytes_accessed = (x_flat.size * 2 + B * C * HW * 4
                      + (wq.size + wkv_folded.size + wp.size + pmat.size) * 2
                      + bias.size * 4)
    cost = pl.CostEstimate(flops=int(flops),
                           transcendentals=int(transcendentals),
                           bytes_accessed=int(bytes_accessed))

    def const_spec(shape, buffered):
        idx = lambda b: (0,) * len(shape)
        if buffered:
            try:
                # grid-invariant blocks don't need double buffering
                return pl.BlockSpec(shape, idx, pipeline_mode=pl.Buffered(1))
            except Exception:
                pass
        return pl.BlockSpec(shape, idx)

    def run(buffered_consts):
        in_specs = [
            pl.BlockSpec((block_b, C, HW), lambda b: (b, 0, 0)),   # x (C-first, bf16)
            const_spec((HW, P), buffered_consts),                  # pooling matrix
            const_spec((C, C), buffered_consts),                   # wq
            const_spec((2 * C, C), buffered_consts),               # fused wkv (gamma folded)
            const_spec((C, C), buffered_consts),                   # proj W
            const_spec((3 * C, 1), buffered_consts),               # [bkv ; bp]
        ]
        # TODO(synk): for large segmentation resolutions add an HW-tiled path
        # (second "parallel" grid axis over 128-multiple HW chunks — also the
        # way to feed both v7x TensorCores when B == 1) and re-derive the VMEM
        # budget / set vmem_limit_bytes explicitly against v7x's 64 MiB.
        return pl.pallas_call(
            kernel,
            out_shape=jax.ShapeDtypeStruct((B, C, HW), jnp.float32),
            grid_spec=pltpu.PrefetchScalarGridSpec(
                num_scalar_prefetch=0,
                grid=(grid_b,),
                in_specs=in_specs,
                out_specs=pl.BlockSpec((block_b, C, HW), lambda b: (b, 0, 0)),
            ),
            compiler_params=pltpu.CompilerParams(
                dimension_semantics=("parallel",)),
            cost_estimate=cost,
        )(x_flat, pmat, wq, wkv_folded, wp, bias)

    try:
        out = run(True)
    except Exception:
        # fall back if single-buffered constant BlockSpecs are unsupported
        out = run(False)

    # glue: (B, C, HW) -> NCHW is a pure reshape, no transpose needed.
    return out.reshape(B, C, H, W)


# ----------------------------------------------------------------------------
# Pure-JAX f32 reference (same math, no Pallas) for a sanity check.
# ----------------------------------------------------------------------------
def reference(x_nchw, params, num_heads, pooled_sizes):
    B, C, H, W = x_nchw.shape
    hd = C // num_heads
    scale = hd ** -0.5
    pmat = jnp.asarray(build_pool_matrix(H, W, pooled_sizes))    # (HW, P)
    xf = x_nchw.reshape(B, C, H * W)

    q = jnp.einsum("oc,bcn->bon", params["wq"], xf)              # (B, C, HW)
    q = q.reshape(B, num_heads, hd, H * W).transpose(0, 1, 3, 2)  # (B, h, HW, hd)

    pooled = jnp.einsum("bcn,np->bpc", xf, pmat)                 # (B, P, C)
    mu = pooled.mean(-1, keepdims=True)
    var = ((pooled - mu) ** 2).mean(-1, keepdims=True)
    ln = (pooled - mu) / jnp.sqrt(var + LN_EPS) * params["ln_g"] + params["ln_b"]

    kv = jnp.einsum("bpc,oc->bpo", ln, params["wkv"])            # (B, P, 2C)
    kv = kv.reshape(B, -1, 2, num_heads, hd).transpose(2, 0, 3, 1, 4)
    k, v = kv[0], kv[1]                                          # (B, h, P, hd)

    attn = jnp.einsum("bhnd,bhpd->bhnp", q, k) * scale
    attn = jax.nn.softmax(attn, axis=-1)
    o = jnp.einsum("bhnp,bhpd->bhnd", attn, v)
    o = o.transpose(0, 2, 1, 3).reshape(B, H * W, C)
    y = o @ params["wp"].T + params["bp"]
    return y.transpose(0, 2, 1).reshape(B, C, H, W)


if __name__ == "__main__":
    B, dim, H, W = 2, 32, 16, 16
    num_heads = 2
    pooled_sizes = [1, 2, 3, 6]

    key = jax.random.PRNGKey(0)
    k1, k2, k3, k4, k5, k6, k7 = jax.random.split(key, 7)

    x = jax.random.normal(k1, (B, dim, H, W), jnp.float32)

    # deterministic synthetic parameters (module init shapes)
    wq = 0.1 * jax.random.normal(k2, (dim, dim), jnp.float32)        # Conv2d 1x1, no bias
    wkv = 0.1 * jax.random.normal(k3, (2 * dim, dim), jnp.float32)   # Linear(dim, 2*dim), no bias
    wp = 0.1 * jax.random.normal(k4, (dim, dim), jnp.float32)        # Linear(dim, dim)
    bp = 0.1 * jax.random.normal(k5, (dim,), jnp.float32)            # proj bias
    ln_g = 1.0 + 0.1 * jax.random.normal(k6, (dim,), jnp.float32)    # LayerNorm weight
    ln_b = 0.1 * jax.random.normal(k7, (dim,), jnp.float32)          # LayerNorm bias

    params = dict(wq=wq, wkv=wkv, wp=wp, bp=bp, ln_g=ln_g, ln_b=ln_b)

    y = pooling_attention(x, params, num_heads, pooled_sizes)
    y = jax.block_until_ready(y)

    y_ref = reference(x, params, num_heads, pooled_sizes)
    assert y.shape == (B, dim, H, W)
    # tolerance widened vs the f32 reference: bf16 MXU operands + approx
    # reciprocal in the softmax normalization (LN stats / softmax stay f32)
    err = float(jnp.max(jnp.abs(y - y_ref)))
    assert jnp.allclose(y, y_ref, atol=5e-2, rtol=5e-2), f"mismatch vs reference, max|diff|={err}"

    # TODO(synk): dropout layers (attn_drop/proj_drop, p=0.0), d_convs and the
    # q_pooled_size > -1 branch (adaptive pool + bilinear interpolate) are
    # identities / unused for the default config and are not exercised here.
    print("KERNEL_OK")
</pallas_src>

<mosaic_0001>
module attributes {stable_mosaic.version = 11 : i64} {
  func.func @kernel(%arg0: i32, %arg1: memref<2x32x256xbf16, #tpu.memory_space<vmem>>, %arg2: memref<256x50xbf16, #tpu.memory_space<vmem>>, %arg3: memref<32x32xbf16, #tpu.memory_space<vmem>>, %arg4: memref<64x32xbf16, #tpu.memory_space<vmem>>, %arg5: memref<32x32xbf16, #tpu.memory_space<vmem>>, %arg6: memref<96x1xf32, #tpu.memory_space<vmem>>, %arg7: memref<2x32x256xf32, #tpu.memory_space<vmem>>) attributes {dimension_semantics = [#tpu.dimension_semantics<parallel>], iteration_bounds = array<i64: 1>, scalar_prefetch = 0 : i64, scratch_operands = 0 : i64, tpu.core_type = #tpu.core_type<tc>, window_params = [{transform_indices = @transform_0, window_bounds = array<i64: 2, 32, 256>}, {pipeline_mode = #tpu.pipeline_mode<synchronous>, transform_indices = @transform_1, window_bounds = array<i64: 256, 50>}, {pipeline_mode = #tpu.pipeline_mode<synchronous>, transform_indices = @transform_2, window_bounds = array<i64: 32, 32>}, {pipeline_mode = #tpu.pipeline_mode<synchronous>, transform_indices = @transform_3, window_bounds = array<i64: 64, 32>}, {pipeline_mode = #tpu.pipeline_mode<synchronous>, transform_indices = @transform_4, window_bounds = array<i64: 32, 32>}, {pipeline_mode = #tpu.pipeline_mode<synchronous>, transform_indices = @transform_5, window_bounds = array<i64: 96, 1>}, {transform_indices = @transform_6, window_bounds = array<i64: 2, 32, 256>}]} {
    %c0 = arith.constant 0 : index
    %c0_0 = arith.constant 0 : index
    %0 = vector.load %arg3[%c0, %c0_0] : memref<32x32xbf16, #tpu.memory_space<vmem>>, vector<32x32xbf16>
    %c0_1 = arith.constant 0 : index
    %c0_2 = arith.constant 0 : index
    %1 = vector.load %arg4[%c0_1, %c0_2] : memref<64x32xbf16, #tpu.memory_space<vmem>>, vector<64x32xbf16>
    %c0_3 = arith.constant 0 : index
    %c0_4 = arith.constant 0 : index
    %2 = vector.load %arg5[%c0_3, %c0_4] : memref<32x32xbf16, #tpu.memory_space<vmem>>, vector<32x32xbf16>
    %c0_5 = arith.constant 0 : index
    %c0_6 = arith.constant 0 : index
    %3 = vector.load %arg2[%c0_5, %c0_6] : memref<256x50xbf16, #tpu.memory_space<vmem>>, vector<256x50xbf16>
    %c0_7 = arith.constant 0 : index
    %c0_8 = arith.constant 0 : index
    %4 = vector.load %arg6[%c0_7, %c0_8] : memref<96x1xf32, #tpu.memory_space<vmem>>, vector<96x1xf32>
    %5 = vector.extract_strided_slice %4 {offsets = [0, 0], sizes = [64, 1], strides = [1, 1]} : vector<96x1xf32> to vector<64x1xf32>
    %6 = vector.extract_strided_slice %4 {offsets = [64, 0], sizes = [32, 1], strides = [1, 1]} : vector<96x1xf32> to vector<32x1xf32>
    %c0_i32 = arith.constant 0 : i32
    %7 = arith.index_cast %c0_i32 : i32 to index
    %c0_9 = arith.constant 0 : index
    %c0_10 = arith.constant 0 : index
    %8 = vector.load %arg1[%7, %c0_9, %c0_10] : memref<2x32x256xbf16, #tpu.memory_space<vmem>>, vector<1x32x256xbf16>
    %9 = vector.shape_cast %8 : vector<1x32x256xbf16> to vector<32x256xbf16>
    %cst = arith.constant dense<0.000000e+00> : vector<32x256xf32>
    %10 = tpu.matmul %0, %9, %cst {dimension_numbers = #tpu.dot_dimension_numbers<[1], [0], [0], [1], [0, 0, 1, 1], [], []>} : vector<32x32xbf16>, vector<32x256xbf16>, vector<32x256xf32> -> vector<32x256xf32>
    %cst_11 = arith.constant 2.500000e-01 : f32
    %11 = vector.broadcast %cst_11 : f32 to vector<32x256xf32>
    %12 = arith.mulf %10, %11 : vector<32x256xf32>
    %cst_12 = arith.constant dense<0.000000e+00> : vector<32x50xf32>
    %13 = tpu.matmul %9, %3, %cst_12 {dimension_numbers = #tpu.dot_dimension_numbers<[1], [0], [0], [1], [0, 0, 1, 1], [], []>} : vector<32x256xbf16>, vector<256x50xbf16>, vector<32x50xf32> -> vector<32x50xf32>
    %cst_13 = arith.constant dense<0.000000e+00> : vector<50xf32>
    %14 = vector.multi_reduction <add>, %13, %cst_13 [0] : vector<32x50xf32> to vector<50xf32>
    %15 = vector.shape_cast %14 : vector<50xf32> to vector<1x50xf32>
    %cst_14 = arith.constant 3.200000e+01 : f32
    %16 = vector.broadcast %cst_14 : f32 to vector<1x50xf32>
    %17 = arith.divf %15, %16 : vector<1x50xf32>
    %18 = vector.broadcast %17 : vector<1x50xf32> to vector<32x50xf32>
    %19 = arith.subf %13, %18 : vector<32x50xf32>
    %20 = arith.mulf %19, %19 : vector<32x50xf32>
    %cst_15 = arith.constant dense<0.000000e+00> : vector<50xf32>
    %21 = vector.multi_reduction <add>, %20, %cst_15 [0] : vector<32x50xf32> to vector<50xf32>
    %22 = vector.shape_cast %21 : vector<50xf32> to vector<1x50xf32>
    %cst_16 = arith.constant 3.200000e+01 : f32
    %23 = vector.broadcast %cst_16 : f32 to vector<1x50xf32>
    %24 = arith.divf %22, %23 : vector<1x50xf32>
    %25 = vector.broadcast %17 : vector<1x50xf32> to vector<32x50xf32>
    %26 = arith.subf %13, %25 : vector<32x50xf32>
    %cst_17 = arith.constant 9.99999974E-6 : f32
    %27 = vector.broadcast %cst_17 : f32 to vector<1x50xf32>
    %28 = arith.addf %24, %27 : vector<1x50xf32>
    %29 = math.rsqrt %28 : vector<1x50xf32>
    %30 = vector.broadcast %29 : vector<1x50xf32> to vector<32x50xf32>
    %31 = arith.mulf %26, %30 : vector<32x50xf32>
    %32 = arith.truncf %31 : vector<32x50xf32> to vector<32x50xbf16>
    %cst_18 = arith.constant dense<0.000000e+00> : vector<64x50xf32>
    %33 = tpu.matmul %1, %32, %cst_18 {dimension_numbers = #tpu.dot_dimension_numbers<[1], [0], [0], [1], [0, 0, 1, 1], [], []>} : vector<64x32xbf16>, vector<32x50xbf16>, vector<64x50xf32> -> vector<64x50xf32>
    %34 = vector.broadcast %5 : vector<64x1xf32> to vector<64x50xf32>
    %35 = arith.addf %33, %34 : vector<64x50xf32>
    %36 = vector.extract_strided_slice %35 {offsets = [0, 0], sizes = [32, 50], strides = [1, 1]} : vector<64x50xf32> to vector<32x50xf32>
    %37 = vector.extract_strided_slice %35 {offsets = [32, 0], sizes = [32, 50], strides = [1, 1]} : vector<64x50xf32> to vector<32x50xf32>
    %38 = arith.truncf %12 : vector<32x256xf32> to vector<32x256xbf16>
    %39 = vector.shape_cast %38 : vector<32x256xbf16> to vector<2x16x256xbf16>
    %40 = arith.truncf %36 : vector<32x50xf32> to vector<32x50xbf16>
    %41 = vector.shape_cast %40 : vector<32x50xbf16> to vector<2x16x50xbf16>
    %42 = arith.truncf %37 : vector<32x50xf32> to vector<32x50xbf16>
    %43 = vector.shape_cast %42 : vector<32x50xbf16> to vector<2x16x50xbf16>
    %cst_19 = arith.constant dense<0.000000e+00> : vector<2x50x256xf32>
    %44 = tpu.matmul %41, %39, %cst_19 {dimension_numbers = #tpu.dot_dimension_numbers<[1], [1], [2], [2], [0, 0, 0, 2, 1, 2], [0], [0]>} : vector<2x16x50xbf16>, vector<2x16x256xbf16>, vector<2x50x256xf32> -> vector<2x50x256xf32>
    %cst_20 = arith.constant dense<0xFF800000> : vector<2x256xf32>
    %45 = vector.multi_reduction <maximumf>, %44, %cst_20 [1] : vector<2x50x256xf32> to vector<2x256xf32>
    %46 = vector.shape_cast %45 : vector<2x256xf32> to vector<2x1x256xf32>
    %47 = vector.broadcast %46 : vector<2x1x256xf32> to vector<2x50x256xf32>
    %48 = arith.subf %44, %47 : vector<2x50x256xf32>
    %49 = math.exp %48 : vector<2x50x256xf32>
    %cst_21 = arith.constant dense<0.000000e+00> : vector<2x256xf32>
    %50 = vector.multi_reduction <add>, %49, %cst_21 [1] : vector<2x50x256xf32> to vector<2x256xf32>
    %51 = vector.shape_cast %50 : vector<2x256xf32> to vector<2x1x256xf32>
    %52 = tpu.reciprocal %51 {approx = true} : vector<2x1x256xf32> -> vector<2x1x256xf32>
    %53 = vector.broadcast %52 : vector<2x1x256xf32> to vector<2x50x256xf32>
    %54 = arith.mulf %49, %53 : vector<2x50x256xf32>
    %55 = arith.truncf %54 : vector<2x50x256xf32> to vector<2x50x256xbf16>
    %cst_22 = arith.constant dense<0.000000e+00> : vector<2x16x256xf32>
    %56 = tpu.matmul %43, %55, %cst_22 {dimension_numbers = #tpu.dot_dimension_numbers<[2], [1], [1], [2], [0, 0, 0, 1, 1, 2], [0], [0]>} : vector<2x16x50xbf16>, vector<2x50x256xbf16>, vector<2x16x256xf32> -> vector<2x16x256xf32>
    %57 = vector.shape_cast %56 : vector<2x16x256xf32> to vector<32x256xf32>
    %58 = arith.truncf %57 : vector<32x256xf32> to vector<32x256xbf16>
    %cst_23 = arith.constant dense<0.000000e+00> : vector<32x256xf32>
    %59 = tpu.matmul %2, %58, %cst_23 {dimension_numbers = #tpu.dot_dimension_numbers<[1], [0], [0], [1], [0, 0, 1, 1], [], []>} : vector<32x32xbf16>, vector<32x256xbf16>, vector<32x256xf32> -> vector<32x256xf32>
    %60 = vector.broadcast %6 : vector<32x1xf32> to vector<32x256xf32>
    %61 = arith.addf %59, %60 : vector<32x256xf32>
    %62 = arith.index_cast %c0_i32 : i32 to index
    %c0_24 = arith.constant 0 : index
    %c0_25 = arith.constant 0 : index
    %63 = vector.load %arg7[%62, %c0_24, %c0_25] : memref<2x32x256xf32, #tpu.memory_space<vmem>>, vector<1x32x256xf32>
    %64 = vector.shape_cast %63 : vector<1x32x256xf32> to vector<32x256xf32>
    %65 = vector.shape_cast %61 : vector<32x256xf32> to vector<1x32x256xf32>
    tpu.vector_store %arg7[%62, %c0_24, %c0_25], %65 {strides = array<i32>} : memref<2x32x256xf32, #tpu.memory_space<vmem>>, vector<1x32x256xf32>,
    %c1_i32 = arith.constant 1 : i32
    %66 = arith.index_cast %c1_i32 : i32 to index
    %c0_26 = arith.constant 0 : index
    %c0_27 = arith.constant 0 : index
    %67 = vector.load %arg1[%66, %c0_26, %c0_27] : memref<2x32x256xbf16, #tpu.memory_space<vmem>>, vector<1x32x256xbf16>
    %68 = vector.shape_cast %67 : vector<1x32x256xbf16> to vector<32x256xbf16>
    %cst_28 = arith.constant dense<0.000000e+00> : vector<32x256xf32>
    %69 = tpu.matmul %0, %68, %cst_28 {dimension_numbers = #tpu.dot_dimension_numbers<[1], [0], [0], [1], [0, 0, 1, 1], [], []>} : vector<32x32xbf16>, vector<32x256xbf16>, vector<32x256xf32> -> vector<32x256xf32>
    %cst_29 = arith.constant 2.500000e-01 : f32
    %70 = vector.broadcast %cst_29 : f32 to vector<32x256xf32>
    %71 = arith.mulf %69, %70 : vector<32x256xf32>
    %cst_30 = arith.constant dense<0.000000e+00> : vector<32x50xf32>
    %72 = tpu.matmul %68, %3, %cst_30 {dimension_numbers = #tpu.dot_dimension_numbers<[1], [0], [0], [1], [0, 0, 1, 1], [], []>} : vector<32x256xbf16>, vector<256x50xbf16>, vector<32x50xf32> -> vector<32x50xf32>
    %cst_31 = arith.constant dense<0.000000e+00> : vector<50xf32>
    %73 = vector.multi_reduction <add>, %72, %cst_31 [0] : vector<32x50xf32> to vector<50xf32>
    %74 = vector.shape_cast %73 : vector<50xf32> to vector<1x50xf32>
    %cst_32 = arith.constant 3.200000e+01 : f32
    %75 = vector.broadcast %cst_32 : f32 to vector<1x50xf32>
    %76 = arith.divf %74, %75 : vector<1x50xf32>
    %77 = vector.broadcast %76 : vector<1x50xf32> to vector<32x50xf32>
    %78 = arith.subf %72, %77 : vector<32x50xf32>
    %79 = arith.mulf %78, %78 : vector<32x50xf32>
    %cst_33 = arith.constant dense<0.000000e+00> : vector<50xf32>
    %80 = vector.multi_reduction <add>, %79, %cst_33 [0] : vector<32x50xf32> to vector<50xf32>
    %81 = vector.shape_cast %80 : vector<50xf32> to vector<1x50xf32>
    %cst_34 = arith.constant 3.200000e+01 : f32
    %82 = vector.broadcast %cst_34 : f32 to vector<1x50xf32>
    %83 = arith.divf %81, %82 : vector<1x50xf32>
    %84 = vector.broadcast %76 : vector<1x50xf32> to vector<32x50xf32>
    %85 = arith.subf %72, %84 : vector<32x50xf32>
    %cst_35 = arith.constant 9.99999974E-6 : f32
    %86 = vector.broadcast %cst_35 : f32 to vector<1x50xf32>
    %87 = arith.addf %83, %86 : vector<1x50xf32>
    %88 = math.rsqrt %87 : vector<1x50xf32>
    %89 = vector.broadcast %88 : vector<1x50xf32> to vector<32x50xf32>
    %90 = arith.mulf %85, %89 : vector<32x50xf32>
    %91 = arith.truncf %90 : vector<32x50xf32> to vector<32x50xbf16>
    %cst_36 = arith.constant dense<0.000000e+00> : vector<64x50xf32>
    %92 = tpu.matmul %1, %91, %cst_36 {dimension_numbers = #tpu.dot_dimension_numbers<[1], [0], [0], [1], [0, 0, 1, 1], [], []>} : vector<64x32xbf16>, vector<32x50xbf16>, vector<64x50xf32> -> vector<64x50xf32>
    %93 = vector.broadcast %5 : vector<64x1xf32> to vector<64x50xf32>
    %94 = arith.addf %92, %93 : vector<64x50xf32>
    %95 = vector.extract_strided_slice %94 {offsets = [0, 0], sizes = [32, 50], strides = [1, 1]} : vector<64x50xf32> to vector<32x50xf32>
    %96 = vector.extract_strided_slice %94 {offsets = [32, 0], sizes = [32, 50], strides = [1, 1]} : vector<64x50xf32> to vector<32x50xf32>
    %97 = arith.truncf %71 : vector<32x256xf32> to vector<32x256xbf16>
    %98 = vector.shape_cast %97 : vector<32x256xbf16> to vector<2x16x256xbf16>
    %99 = arith.truncf %95 : vector<32x50xf32> to vector<32x50xbf16>
    %100 = vector.shape_cast %99 : vector<32x50xbf16> to vector<2x16x50xbf16>
    %101 = arith.truncf %96 : vector<32x50xf32> to vector<32x50xbf16>
    %102 = vector.shape_cast %101 : vector<32x50xbf16> to vector<2x16x50xbf16>
    %cst_37 = arith.constant dense<0.000000e+00> : vector<2x50x256xf32>
    %103 = tpu.matmul %100, %98, %cst_37 {dimension_numbers = #tpu.dot_dimension_numbers<[1], [1], [2], [2], [0, 0, 0, 2, 1, 2], [0], [0]>} : vector<2x16x50xbf16>, vector<2x16x256xbf16>, vector<2x50x256xf32> -> vector<2x50x256xf32>
    %cst_38 = arith.constant dense<0xFF800000> : vector<2x256xf32>
    %104 = vector.multi_reduction <maximumf>, %103, %cst_38 [1] : vector<2x50x256xf32> to vector<2x256xf32>
    %105 = vector.shape_cast %104 : vector<2x256xf32> to vector<2x1x256xf32>
    %106 = vector.broadcast %105 : vector<2x1x256xf32> to vector<2x50x256xf32>
    %107 = arith.subf %103, %106 : vector<2x50x256xf32>
    %108 = math.exp %107 : vector<2x50x256xf32>
    %cst_39 = arith.constant dense<0.000000e+00> : vector<2x256xf32>
    %109 = vector.multi_reduction <add>, %108, %cst_39 [1] : vector<2x50x256xf32> to vector<2x256xf32>
    %110 = vector.shape_cast %109 : vector<2x256xf32> to vector<2x1x256xf32>
    %111 = tpu.reciprocal %110 {approx = true} : vector<2x1x256xf32> -> vector<2x1x256xf32>
    %112 = vector.broadcast %111 : vector<2x1x256xf32> to vector<2x50x256xf32>
    %113 = arith.mulf %108, %112 : vector<2x50x256xf32>
    %114 = arith.truncf %113 : vector<2x50x256xf32> to vector<2x50x256xbf16>
    %cst_40 = arith.constant dense<0.000000e+00> : vector<2x16x256xf32>
    %115 = tpu.matmul %102, %114, %cst_40 {dimension_numbers = #tpu.dot_dimension_numbers<[2], [1], [1], [2], [0, 0, 0, 1, 1, 2], [0], [0]>} : vector<2x16x50xbf16>, vector<2x50x256xbf16>, vector<2x16x256xf32> -> vector<2x16x256xf32>
    %116 = vector.shape_cast %115 : vector<2x16x256xf32> to vector<32x256xf32>
    %117 = arith.truncf %116 : vector<32x256xf32> to vector<32x256xbf16>
    %cst_41 = arith.constant dense<0.000000e+00> : vector<32x256xf32>
    %118 = tpu.matmul %2, %117, %cst_41 {dimension_numbers = #tpu.dot_dimension_numbers<[1], [0], [0], [1], [0, 0, 1, 1], [], []>} : vector<32x32xbf16>, vector<32x256xbf16>, vector<32x256xf32> -> vector<32x256xf32>
    %119 = vector.broadcast %6 : vector<32x1xf32> to vector<32x256xf32>
    %120 = arith.addf %118, %119 : vector<32x256xf32>
    %121 = arith.index_cast %c1_i32 : i32 to index
    %c0_42 = arith.constant 0 : index
    %c0_43 = arith.constant 0 : index
    %122 = vector.load %arg7[%121, %c0_42, %c0_43] : memref<2x32x256xf32, #tpu.memory_space<vmem>>, vector<1x32x256xf32>
    %123 = vector.shape_cast %122 : vector<1x32x256xf32> to vector<32x256xf32>
    %124 = vector.shape_cast %120 : vector<32x256xf32> to vector<1x32x256xf32>
    tpu.vector_store %arg7[%121, %c0_42, %c0_43], %124 {strides = array<i32>} : memref<2x32x256xf32, #tpu.memory_space<vmem>>, vector<1x32x256xf32>,
    %c2_i32 = arith.constant 2 : i32
    return
  }
  func.func @transform_0(%arg0: i32) -> (i32, i32, i32) {
    %c0_i32 = arith.constant 0 : i32
    %c0_i32_0 = arith.constant 0 : i32
    %c0_i32_1 = arith.constant 0 : i32
    return %arg0, %c0_i32, %c0_i32_0 : i32, i32, i32
  }
  func.func @transform_1(%arg0: i32) -> (i32, i32) {
    %c0_i32 = arith.constant 0 : i32
    %c0_i32_0 = arith.constant 0 : i32
    %c0_i32_1 = arith.constant 0 : i32
    return %c0_i32, %c0_i32_0 : i32, i32
  }
  func.func @transform_2(%arg0: i32) -> (i32, i32) {
    %c0_i32 = arith.constant 0 : i32
    %c0_i32_0 = arith.constant 0 : i32
    %c0_i32_1 = arith.constant 0 : i32
    return %c0_i32, %c0_i32_0 : i32, i32
  }
  func.func @transform_3(%arg0: i32) -> (i32, i32) {
    %c0_i32 = arith.constant 0 : i32
    %c0_i32_0 = arith.constant 0 : i32
    %c0_i32_1 = arith.constant 0 : i32
    return %c0_i32, %c0_i32_0 : i32, i32
  }
  func.func @transform_4(%arg0: i32) -> (i32, i32) {
    %c0_i32 = arith.constant 0 : i32
    %c0_i32_0 = arith.constant 0 : i32
    %c0_i32_1 = arith.constant 0 : i32
    return %c0_i32, %c0_i32_0 : i32, i32
  }
  func.func @transform_5(%arg0: i32) -> (i32, i32) {
    %c0_i32 = arith.constant 0 : i32
    %c0_i32_0 = arith.constant 0 : i32
    %c0_i32_1 = arith.constant 0 : i32
    return %c0_i32, %c0_i32_0 : i32, i32
  }
  func.func @transform_6(%arg0: i32) -> (i32, i32, i32) {
    %c0_i32 = arith.constant 0 : i32
    %c0_i32_0 = arith.constant 0 : i32
    %c0_i32_1 = arith.constant 0 : i32
    return %arg0, %c0_i32, %c0_i32_0 : i32, i32, i32
  }
}

module attributes {stable_mosaic.version = 11 : i64} {
  func.func @kernel(%arg0: i32, %arg1: memref<2x32x256xbf16, #tpu.memory_space<vmem>>, %arg2: memref<256x50xbf16, #tpu.memory_space<vmem>>, %arg3: memref<32x32xbf16, #tpu.memory_space<vmem>>, %arg4: memref<64x32xbf16, #tpu.memory_space<vmem>>, %arg5: memref<32x32xbf16, #tpu.memory_space<vmem>>, %arg6: memref<96x1xf32, #tpu.memory_space<vmem>>, %arg7: memref<2x32x256xf32, #tpu.memory_space<vmem>>) attributes {dimension_semantics = [#tpu.dimension_semantics<parallel>], iteration_bounds = array<i64: 1>, scalar_prefetch = 0 : i64, scratch_operands = 0 : i64, tpu.core_type = #tpu.core_type<tc>, window_params = [{transform_indices = @transform_0, window_bounds = array<i64: 2, 32, 256>}, {pipeline_mode = #tpu.pipeline_mode<synchronous>, transform_indices = @transform_1, window_bounds = array<i64: 256, 50>}, {pipeline_mode = #tpu.pipeline_mode<synchronous>, transform_indices = @transform_2, window_bounds = array<i64: 32, 32>}, {pipeline_mode = #tpu.pipeline_mode<synchronous>, transform_indices = @transform_3, window_bounds = array<i64: 64, 32>}, {pipeline_mode = #tpu.pipeline_mode<synchronous>, transform_indices = @transform_4, window_bounds = array<i64: 32, 32>}, {pipeline_mode = #tpu.pipeline_mode<synchronous>, transform_indices = @transform_5, window_bounds = array<i64: 96, 1>}, {transform_indices = @transform_6, window_bounds = array<i64: 2, 32, 256>}]} {
    %c0 = arith.constant 0 : index
    %c0_0 = arith.constant 0 : index
    %0 = vector.load %arg3[%c0, %c0_0] : memref<32x32xbf16, #tpu.memory_space<vmem>>, vector<32x32xbf16>
    %c0_1 = arith.constant 0 : index
    %c0_2 = arith.constant 0 : index
    %1 = vector.load %arg4[%c0_1, %c0_2] : memref<64x32xbf16, #tpu.memory_space<vmem>>, vector<64x32xbf16>
    %c0_3 = arith.constant 0 : index
    %c0_4 = arith.constant 0 : index
    %2 = vector.load %arg5[%c0_3, %c0_4] : memref<32x32xbf16, #tpu.memory_space<vmem>>, vector<32x32xbf16>
    %c0_5 = arith.constant 0 : index
    %c0_6 = arith.constant 0 : index
    %3 = vector.load %arg2[%c0_5, %c0_6] : memref<256x50xbf16, #tpu.memory_space<vmem>>, vector<256x50xbf16>
    %c0_7 = arith.constant 0 : index
    %c0_8 = arith.constant 0 : index
    %4 = vector.load %arg6[%c0_7, %c0_8] : memref<96x1xf32, #tpu.memory_space<vmem>>, vector<96x1xf32>
    %5 = vector.extract_strided_slice %4 {offsets = [0, 0], sizes = [64, 1], strides = [1, 1]} : vector<96x1xf32> to vector<64x1xf32>
    %6 = vector.extract_strided_slice %4 {offsets = [64, 0], sizes = [32, 1], strides = [1, 1]} : vector<96x1xf32> to vector<32x1xf32>
    %c0_i32 = arith.constant 0 : i32
    %7 = arith.index_cast %c0_i32 : i32 to index
    %c0_9 = arith.constant 0 : index
    %c0_10 = arith.constant 0 : index
    %8 = vector.load %arg1[%7, %c0_9, %c0_10] : memref<2x32x256xbf16, #tpu.memory_space<vmem>>, vector<1x32x256xbf16>
    %9 = vector.shape_cast %8 : vector<1x32x256xbf16> to vector<32x256xbf16>
    %cst = arith.constant dense<0.000000e+00> : vector<32x256xf32>
    %10 = tpu.matmul %0, %9, %cst {dimension_numbers = #tpu.dot_dimension_numbers<[1], [0], [0], [1], [0, 0, 1, 1], [], []>} : vector<32x32xbf16>, vector<32x256xbf16>, vector<32x256xf32> -> vector<32x256xf32>
    %cst_11 = arith.constant 2.500000e-01 : f32
    %11 = vector.broadcast %cst_11 : f32 to vector<32x256xf32>
    %12 = arith.mulf %10, %11 : vector<32x256xf32>
    %cst_12 = arith.constant dense<0.000000e+00> : vector<32x50xf32>
    %13 = tpu.matmul %9, %3, %cst_12 {dimension_numbers = #tpu.dot_dimension_numbers<[1], [0], [0], [1], [0, 0, 1, 1], [], []>} : vector<32x256xbf16>, vector<256x50xbf16>, vector<32x50xf32> -> vector<32x50xf32>
    %cst_13 = arith.constant dense<0.000000e+00> : vector<50xf32>
    %14 = vector.multi_reduction <add>, %13, %cst_13 [0] : vector<32x50xf32> to vector<50xf32>
    %15 = vector.shape_cast %14 : vector<50xf32> to vector<1x50xf32>
    %cst_14 = arith.constant 3.200000e+01 : f32
    %16 = vector.broadcast %cst_14 : f32 to vector<1x50xf32>
    %17 = arith.divf %15, %16 : vector<1x50xf32>
    %18 = vector.broadcast %17 : vector<1x50xf32> to vector<32x50xf32>
    %19 = arith.subf %13, %18 : vector<32x50xf32>
    %20 = arith.mulf %19, %19 : vector<32x50xf32>
    %cst_15 = arith.constant dense<0.000000e+00> : vector<50xf32>
    %21 = vector.multi_reduction <add>, %20, %cst_15 [0] : vector<32x50xf32> to vector<50xf32>
    %22 = vector.shape_cast %21 : vector<50xf32> to vector<1x50xf32>
    %cst_16 = arith.constant 3.200000e+01 : f32
    %23 = vector.broadcast %cst_16 : f32 to vector<1x50xf32>
    %24 = arith.divf %22, %23 : vector<1x50xf32>
    %25 = vector.broadcast %17 : vector<1x50xf32> to vector<32x50xf32>
    %26 = arith.subf %13, %25 : vector<32x50xf32>
    %cst_17 = arith.constant 9.99999974E-6 : f32
    %27 = vector.broadcast %cst_17 : f32 to vector<1x50xf32>
    %28 = arith.addf %24, %27 : vector<1x50xf32>
    %29 = math.rsqrt %28 : vector<1x50xf32>
    %30 = vector.broadcast %29 : vector<1x50xf32> to vector<32x50xf32>
    %31 = arith.mulf %26, %30 : vector<32x50xf32>
    %32 = arith.truncf %31 : vector<32x50xf32> to vector<32x50xbf16>
    %cst_18 = arith.constant dense<0.000000e+00> : vector<64x50xf32>
    %33 = tpu.matmul %1, %32, %cst_18 {dimension_numbers = #tpu.dot_dimension_numbers<[1], [0], [0], [1], [0, 0, 1, 1], [], []>} : vector<64x32xbf16>, vector<32x50xbf16>, vector<64x50xf32> -> vector<64x50xf32>
    %34 = vector.broadcast %5 : vector<64x1xf32> to vector<64x50xf32>
    %35 = arith.addf %33, %34 : vector<64x50xf32>
    %36 = vector.extract_strided_slice %35 {offsets = [0, 0], sizes = [32, 50], strides = [1, 1]} : vector<64x50xf32> to vector<32x50xf32>
    %37 = vector.extract_strided_slice %35 {offsets = [32, 0], sizes = [32, 50], strides = [1, 1]} : vector<64x50xf32> to vector<32x50xf32>
    %38 = arith.truncf %12 : vector<32x256xf32> to vector<32x256xbf16>
    %39 = vector.shape_cast %38 : vector<32x256xbf16> to vector<2x16x256xbf16>
    %40 = arith.truncf %36 : vector<32x50xf32> to vector<32x50xbf16>
    %41 = vector.shape_cast %40 : vector<32x50xbf16> to vector<2x16x50xbf16>
    %42 = arith.truncf %37 : vector<32x50xf32> to vector<32x50xbf16>
    %43 = vector.shape_cast %42 : vector<32x50xbf16> to vector<2x16x50xbf16>
    %cst_19 = arith.constant dense<0.000000e+00> : vector<2x50x256xf32>
    %44 = tpu.matmul %41, %39, %cst_19 {dimension_numbers = #tpu.dot_dimension_numbers<[1], [1], [2], [2], [0, 0, 0, 2, 1, 2], [0], [0]>} : vector<2x16x50xbf16>, vector<2x16x256xbf16>, vector<2x50x256xf32> -> vector<2x50x256xf32>
    %cst_20 = arith.constant dense<0xFF800000> : vector<2x256xf32>
    %45 = vector.multi_reduction <maximumf>, %44, %cst_20 [1] : vector<2x50x256xf32> to vector<2x256xf32>
    %46 = vector.shape_cast %45 : vector<2x256xf32> to vector<2x1x256xf32>
    %47 = vector.broadcast %46 : vector<2x1x256xf32> to vector<2x50x256xf32>
    %48 = arith.subf %44, %47 : vector<2x50x256xf32>
    %49 = math.exp %48 : vector<2x50x256xf32>
    %cst_21 = arith.constant dense<0.000000e+00> : vector<2x256xf32>
    %50 = vector.multi_reduction <add>, %49, %cst_21 [1] : vector<2x50x256xf32> to vector<2x256xf32>
    %51 = vector.shape_cast %50 : vector<2x256xf32> to vector<2x1x256xf32>
    %52 = tpu.reciprocal %51 {approx = true} : vector<2x1x256xf32> -> vector<2x1x256xf32>
    %53 = vector.broadcast %52 : vector<2x1x256xf32> to vector<2x50x256xf32>
    %54 = arith.mulf %49, %53 : vector<2x50x256xf32>
    %55 = arith.truncf %54 : vector<2x50x256xf32> to vector<2x50x256xbf16>
    %cst_22 = arith.constant dense<0.000000e+00> : vector<2x16x256xf32>
    %56 = tpu.matmul %43, %55, %cst_22 {dimension_numbers = #tpu.dot_dimension_numbers<[2], [1], [1], [2], [0, 0, 0, 1, 1, 2], [0], [0]>} : vector<2x16x50xbf16>, vector<2x50x256xbf16>, vector<2x16x256xf32> -> vector<2x16x256xf32>
    %57 = vector.shape_cast %56 : vector<2x16x256xf32> to vector<32x256xf32>
    %58 = arith.truncf %57 : vector<32x256xf32> to vector<32x256xbf16>
    %cst_23 = arith.constant dense<0.000000e+00> : vector<32x256xf32>
    %59 = tpu.matmul %2, %58, %cst_23 {dimension_numbers = #tpu.dot_dimension_numbers<[1], [0], [0], [1], [0, 0, 1, 1], [], []>} : vector<32x32xbf16>, vector<32x256xbf16>, vector<32x256xf32> -> vector<32x256xf32>
    %60 = vector.broadcast %6 : vector<32x1xf32> to vector<32x256xf32>
    %61 = arith.addf %59, %60 : vector<32x256xf32>
    %62 = arith.index_cast %c0_i32 : i32 to index
    %c0_24 = arith.constant 0 : index
    %c0_25 = arith.constant 0 : index
    %63 = vector.load %arg7[%62, %c0_24, %c0_25] : memref<2x32x256xf32, #tpu.memory_space<vmem>>, vector<1x32x256xf32>
    %64 = vector.shape_cast %63 : vector<1x32x256xf32> to vector<32x256xf32>
    %65 = vector.shape_cast %61 : vector<32x256xf32> to vector<1x32x256xf32>
    tpu.vector_store %arg7[%62, %c0_24, %c0_25], %65 {strides = array<i32>} : memref<2x32x256xf32, #tpu.memory_space<vmem>>, vector<1x32x256xf32>,
    %c1_i32 = arith.constant 1 : i32
    %66 = arith.index_cast %c1_i32 : i32 to index
    %c0_26 = arith.constant 0 : index
    %c0_27 = arith.constant 0 : index
    %67 = vector.load %arg1[%66, %c0_26, %c0_27] : memref<2x32x256xbf16, #tpu.memory_space<vmem>>, vector<1x32x256xbf16>
    %68 = vector.shape_cast %67 : vector<1x32x256xbf16> to vector<32x256xbf16>
    %cst_28 = arith.constant dense<0.000000e+00> : vector<32x256xf32>
    %69 = tpu.matmul %0, %68, %cst_28 {dimension_numbers = #tpu.dot_dimension_numbers<[1], [0], [0], [1], [0, 0, 1, 1], [], []>} : vector<32x32xbf16>, vector<32x256xbf16>, vector<32x256xf32> -> vector<32x256xf32>
    %cst_29 = arith.constant 2.500000e-01 : f32
    %70 = vector.broadcast %cst_29 : f32 to vector<32x256xf32>
    %71 = arith.mulf %69, %70 : vector<32x256xf32>
    %cst_30 = arith.constant dense<0.000000e+00> : vector<32x50xf32>
    %72 = tpu.matmul %68, %3, %cst_30 {dimension_numbers = #tpu.dot_dimension_numbers<[1], [0], [0], [1], [0, 0, 1, 1], [], []>} : vector<32x256xbf16>, vector<256x50xbf16>, vector<32x50xf32> -> vector<32x50xf32>
    %cst_31 = arith.constant dense<0.000000e+00> : vector<50xf32>
    %73 = vector.multi_reduction <add>, %72, %cst_31 [0] : vector<32x50xf32> to vector<50xf32>
    %74 = vector.shape_cast %73 : vector<50xf32> to vector<1x50xf32>
    %cst_32 = arith.constant 3.200000e+01 : f32
    %75 = vector.broadcast %cst_32 : f32 to vector<1x50xf32>
    %76 = arith.divf %74, %75 : vector<1x50xf32>
    %77 = vector.broadcast %76 : vector<1x50xf32> to vector<32x50xf32>
    %78 = arith.subf %72, %77 : vector<32x50xf32>
    %79 = arith.mulf %78, %78 : vector<32x50xf32>
    %cst_33 = arith.constant dense<0.000000e+00> : vector<50xf32>
    %80 = vector.multi_reduction <add>, %79, %cst_33 [0] : vector<32x50xf32> to vector<50xf32>
    %81 = vector.shape_cast %80 : vector<50xf32> to vector<1x50xf32>
    %cst_34 = arith.constant 3.200000e+01 : f32
    %82 = vector.broadcast %cst_34 : f32 to vector<1x50xf32>
    %83 = arith.divf %81, %82 : vector<1x50xf32>
    %84 = vector.broadcast %76 : vector<1x50xf32> to vector<32x50xf32>
    %85 = arith.subf %72, %84 : vector<32x50xf32>
    %cst_35 = arith.constant 9.99999974E-6 : f32
    %86 = vector.broadcast %cst_35 : f32 to vector<1x50xf32>
    %87 = arith.addf %83, %86 : vector<1x50xf32>
    %88 = math.rsqrt %87 : vector<1x50xf32>
    %89 = vector.broadcast %88 : vector<1x50xf32> to vector<32x50xf32>
    %90 = arith.mulf %85, %89 : vector<32x50xf32>
    %91 = arith.truncf %90 : vector<32x50xf32> to vector<32x50xbf16>
    %cst_36 = arith.constant dense<0.000000e+00> : vector<64x50xf32>
    %92 = tpu.matmul %1, %91, %cst_36 {dimension_numbers = #tpu.dot_dimension_numbers<[1], [0], [0], [1], [0, 0, 1, 1], [], []>} : vector<64x32xbf16>, vector<32x50xbf16>, vector<64x50xf32> -> vector<64x50xf32>
    %93 = vector.broadcast %5 : vector<64x1xf32> to vector<64x50xf32>
    %94 = arith.addf %92, %93 : vector<64x50xf32>
    %95 = vector.extract_strided_slice %94 {offsets = [0, 0], sizes = [32, 50], strides = [1, 1]} : vector<64x50xf32> to vector<32x50xf32>
    %96 = vector.extract_strided_slice %94 {offsets = [32, 0], sizes = [32, 50], strides = [1, 1]} : vector<64x50xf32> to vector<32x50xf32>
    %97 = arith.truncf %71 : vector<32x256xf32> to vector<32x256xbf16>
    %98 = vector.shape_cast %97 : vector<32x256xbf16> to vector<2x16x256xbf16>
    %99 = arith.truncf %95 : vector<32x50xf32> to vector<32x50xbf16>
    %100 = vector.shape_cast %99 : vector<32x50xbf16> to vector<2x16x50xbf16>
    %101 = arith.truncf %96 : vector<32x50xf32> to vector<32x50xbf16>
    %102 = vector.shape_cast %101 : vector<32x50xbf16> to vector<2x16x50xbf16>
    %cst_37 = arith.constant dense<0.000000e+00> : vector<2x50x256xf32>
    %103 = tpu.matmul %100, %98, %cst_37 {dimension_numbers = #tpu.dot_dimension_numbers<[1], [1], [2], [2], [0, 0, 0, 2, 1, 2], [0], [0]>} : vector<2x16x50xbf16>, vector<2x16x256xbf16>, vector<2x50x256xf32> -> vector<2x50x256xf32>
    %cst_38 = arith.constant dense<0xFF800000> : vector<2x256xf32>
    %104 = vector.multi_reduction <maximumf>, %103, %cst_38 [1] : vector<2x50x256xf32> to vector<2x256xf32>
    %105 = vector.shape_cast %104 : vector<2x256xf32> to vector<2x1x256xf32>
    %106 = vector.broadcast %105 : vector<2x1x256xf32> to vector<2x50x256xf32>
    %107 = arith.subf %103, %106 : vector<2x50x256xf32>
    %108 = math.exp %107 : vector<2x50x256xf32>
    %cst_39 = arith.constant dense<0.000000e+00> : vector<2x256xf32>
    %109 = vector.multi_reduction <add>, %108, %cst_39 [1] : vector<2x50x256xf32> to vector<2x256xf32>
    %110 = vector.shape_cast %109 : vector<2x256xf32> to vector<2x1x256xf32>
    %111 = tpu.reciprocal %110 {approx = true} : vector<2x1x256xf32> -> vector<2x1x256xf32>
    %112 = vector.broadcast %111 : vector<2x1x256xf32> to vector<2x50x256xf32>
    %113 = arith.mulf %108, %112 : vector<2x50x256xf32>
    %114 = arith.truncf %113 : vector<2x50x256xf32> to vector<2x50x256xbf16>
    %cst_40 = arith.constant dense<0.000000e+00> : vector<2x16x256xf32>
    %115 = tpu.matmul %102, %114, %cst_40 {dimension_numbers = #tpu.dot_dimension_numbers<[2], [1], [1], [2], [0, 0, 0, 1, 1, 2], [0], [0]>} : vector<2x16x50xbf16>, vector<2x50x256xbf16>, vector<2x16x256xf32> -> vector<2x16x256xf32>
    %116 = vector.shape_cast %115 : vector<2x16x256xf32> to vector<32x256xf32>
    %117 = arith.truncf %116 : vector<32x256xf32> to vector<32x256xbf16>
    %cst_41 = arith.constant dense<0.000000e+00> : vector<32x256xf32>
    %118 = tpu.matmul %2, %117, %cst_41 {dimension_numbers = #tpu.dot_dimension_numbers<[1], [0], [0], [1], [0, 0, 1, 1], [], []>} : vector<32x32xbf16>, vector<32x256xbf16>, vector<32x256xf32> -> vector<32x256xf32>
    %119 = vector.broadcast %6 : vector<32x1xf32> to vector<32x256xf32>
    %120 = arith.addf %118, %119 : vector<32x256xf32>
    %121 = arith.index_cast %c1_i32 : i32 to index
    %c0_42 = arith.constant 0 : index
    %c0_43 = arith.constant 0 : index
    %122 = vector.load %arg7[%121, %c0_42, %c0_43] : memref<2x32x256xf32, #tpu.memory_space<vmem>>, vector<1x32x256xf32>
    %123 = vector.shape_cast %122 : vector<1x32x256xf32> to vector<32x256xf32>
    %124 = vector.shape_cast %120 : vector<32x256xf32> to vector<1x32x256xf32>
    tpu.vector_store %arg7[%121, %c0_42, %c0_43], %124 {strides = array<i32>} : memref<2x32x256xf32, #tpu.memory_space<vmem>>, vector<1x32x256xf32>,
    %c2_i32 = arith.constant 2 : i32
    return
  }
  func.func @transform_0(%arg0: i32) -> (i32, i32, i32) {
    %c0_i32 = arith.constant 0 : i32
    %c0_i32_0 = arith.constant 0 : i32
    %c0_i32_1 = arith.constant 0 : i32
    return %arg0, %c0_i32, %c0_i32_0 : i32, i32, i32
  }
  func.func @transform_1(%arg0: i32) -> (i32, i32) {
    %c0_i32 = arith.constant 0 : i32
    %c0_i32_0 = arith.constant 0 : i32
    %c0_i32_1 = arith.constant 0 : i32
    return %c0_i32, %c0_i32_0 : i32, i32
  }
  func.func @transform_2(%arg0: i32) -> (i32, i32) {
    %c0_i32 = arith.constant 0 : i32
    %c0_i32_0 = arith.constant 0 : i32
    %c0_i32_1 = arith.constant 0 : i32
    return %c0_i32, %c0_i32_0 : i32, i32
  }
  func.func @transform_3(%arg0: i32) -> (i32, i32) {
    %c0_i32 = arith.constant 0 : i32
    %c0_i32_0 = arith.constant 0 : i32
    %c0_i32_1 = arith.constant 0 : i32
    return %c0_i32, %c0_i32_0 : i32, i32
  }
  func.func @transform_4(%arg0: i32) -> (i32, i32) {
    %c0_i32 = arith.constant 0 : i32
    %c0_i32_0 = arith.constant 0 : i32
    %c0_i32_1 = arith.constant 0 : i32
    return %c0_i32, %c0_i32_0 : i32, i32
  }
  func.func @transform_5(%arg0: i32) -> (i32, i32) {
    %c0_i32 = arith.constant 0 : i32
    %c0_i32_0 = arith.constant 0 : i32
    %c0_i32_1 = arith.constant 0 : i32
    return %c0_i32, %c0_i32_0 : i32, i32
  }
  func.func @transform_6(%arg0: i32) -> (i32, i32, i32) {
    %c0_i32 = arith.constant 0 : i32
    %c0_i32_0 = arith.constant 0 : i32
    %c0_i32_1 = arith.constant 0 : i32
    return %arg0, %c0_i32, %c0_i32_0 : i32, i32, i32
  }
}

</mosaic_0001>

<llo_original>
// kernel: tpu_custom_call.1
$region0: #{tpu_custom_call.1}
  #allocation0 [shape = 'u32[]', space=smem, size = 0x4, offset = 0x4, fixed_abs, tag = 'smem constant byte address 0x4 - core index']
  #allocation1 [shape = 'u32[72,128]{1,0:T(1,128)}', space=vmem, size = 0x9000, scoped, tag = 'internal scratch']
  %s0 = inlined_call_operand.vmem [shape: bf16[2,32,256], index: 0, kind: input, shape index: {}]
  %s1 = inlined_call_operand.vmem [shape: bf16[256,50], index: 1, kind: input, shape index: {}]
  %s2 = inlined_call_operand.vmem [shape: bf16[32,32], index: 2, kind: input, shape index: {}]
  %s3 = inlined_call_operand.vmem [shape: bf16[64,32], index: 3, kind: input, shape index: {}]
  %s4 = inlined_call_operand.vmem [shape: bf16[32,32], index: 4, kind: input, shape index: {}]
  %s5 = inlined_call_operand.vmem [shape: f32[96,1], index: 5, kind: input, shape index: {}]
  %s6 = inlined_call_operand.hbm [shape: f32[2,32,256], index: 6, kind: output, shape index: {}]
  %s7 = sld [smem:[#allocation0]]
  $region34: #{tpu_custom_call.1} parent=0
    _
  %s9 = ssub.s32 1, %s7
  %s10 = scalar_select 0, %s9, %s7
  $region1: #{tpu_custom_call.1} parent=0
    #allocation2 [shape = 'u8[65536]{0}', space=vmem, size = 0x10000, scoped, tag = 'output window, operand 0, single buffered']
    #allocation3 [shape = 's32[1]{0}', space=sflag, size = 0x4, scoped, tag = 'scoped memory for tpu_custom_call.1']
    %11 = vsyncpa [#allocation3], 0
    // Predicated region
    $region2: #{tpu_custom_call.1} parent=1 // pred_check
      _
    $region3: #{tpu_custom_call.1} parent=1 // pred_check_branch
      %13 = sbr.rel (0) target = $region5
    $region4: #{tpu_custom_call.1} parent=1 // pred_region
      _
    $region5: #{tpu_custom_call.1} parent=1 // pred_fallthru
      _
    // Predicated region
    $region6: #{tpu_custom_call.1} parent=1 // pred_check
      _
    $region7: #{tpu_custom_call.1} parent=1 // pred_check_branch
      %15 = sbr.rel (0) target = $region9
    $region8: #{tpu_custom_call.1} parent=1 // pred_region
      _
    $region9: #{tpu_custom_call.1} parent=1 // pred_fallthru
      _
    // Predicated region
    $region10: #{tpu_custom_call.1} parent=1 // pred_check
      _
    $region11: #{tpu_custom_call.1} parent=1 // pred_check_branch
      %17 = sbr.rel (0) target = $region13
    $region12: #{tpu_custom_call.1} parent=1 // pred_region
      _
    $region13: #{tpu_custom_call.1} parent=1 // pred_fallthru
      _
    // Predicated region
    $region14: #{tpu_custom_call.1} parent=1 // pred_check
      _
    $region15: #{tpu_custom_call.1} parent=1 // pred_check_branch
      %19 = sbr.rel (0) target = $region17
    $region16: #{tpu_custom_call.1} parent=1 // pred_region
      _
    $region17: #{tpu_custom_call.1} parent=1 // pred_fallthru
      _
    // Predicated region
    $region18: #{tpu_custom_call.1} parent=1 // pred_check
      _
    $region19: #{tpu_custom_call.1} parent=1 // pred_check_branch
      %21 = sbr.rel (0) target = $region21
    $region20: #{tpu_custom_call.1} parent=1 // pred_region
      _
    $region21: #{tpu_custom_call.1} parent=1 // pred_fallthru
      _
    // Predicated region
    $region22: #{tpu_custom_call.1} parent=1 // pred_check
      _
    $region23: #{tpu_custom_call.1} parent=1 // pred_check_branch
      %23 = sbr.rel (0) target = $region25
    $region24: #{tpu_custom_call.1} parent=1 // pred_region
      _
    $region25: #{tpu_custom_call.1} parent=1 // pred_fallthru
      _
    %v25 = vld [vmem:[%s2] sm:$0xf]
    %v26 = vld [vmem:[%s2 + $0x4] sm:$0xf]
    %v27 = vld [vmem:[%s2 + $0x8] sm:$0xf]
    %v28 = vld [vmem:[%s2 + $0xc] sm:$0xf]
    %v29 = vld [vmem:[%s3] sm:$0xf]
    %v30 = vld [vmem:[%s3 + $0x4] sm:$0xf]
    %v31 = vld [vmem:[%s3 + $0x8] sm:$0xf]
    %v32 = vld [vmem:[%s3 + $0xc] sm:$0xf]
    %v33 = vld [vmem:[%s3 + $0x10] sm:$0xf]
    %v34 = vld [vmem:[%s3 + $0x14] sm:$0xf]
    %v35 = vld [vmem:[%s3 + $0x18] sm:$0xf]
    %v36 = vld [vmem:[%s3 + $0x1c] sm:$0xf]
    %v37 = vld [vmem:[%s4] sm:$0xf]
    %v38 = vld [vmem:[%s4 + $0x4] sm:$0xf]
    %v39 = vld [vmem:[%s4 + $0x8] sm:$0xf]
    %v40 = vld [vmem:[%s4 + $0xc] sm:$0xf]
    %v41 = vld [vmem:[%s1] sm:$0xf]
    %v42 = vld [vmem:[%s1 + $0x4] sm:$0xf]
    %v43 = vld [vmem:[%s1 + $0x8] sm:$0xf]
    %v44 = vld [vmem:[%s1 + $0xc] sm:$0xf]
    %v45 = vld [vmem:[%s1 + $0x10] sm:$0xf]
    %v46 = vld [vmem:[%s1 + $0x14] sm:$0xf]
    %v47 = vld [vmem:[%s1 + $0x18] sm:$0xf]
    %v48 = vld [vmem:[%s1 + $0x1c] sm:$0xf]
    %v49 = vld [vmem:[%s1 + $0x20] sm:$0xf]
    %v50 = vld [vmem:[%s1 + $0x24] sm:$0xf]
    %v51 = vld [vmem:[%s1 + $0x28] sm:$0xf]
    %v52 = vld [vmem:[%s1 + $0x2c] sm:$0xf]
    %v53 = vld [vmem:[%s1 + $0x30] sm:$0xf]
    %v54 = vld [vmem:[%s1 + $0x34] sm:$0xf]
    %v55 = vld [vmem:[%s1 + $0x38] sm:$0xf]
    %v56 = vld [vmem:[%s1 + $0x3c] sm:$0xf]
    %v57 = vld [vmem:[%s1 + $0x40] sm:$0xf]
    %v58 = vld [vmem:[%s1 + $0x44] sm:$0xf]
    %v59 = vld [vmem:[%s1 + $0x48] sm:$0xf]
    %v60 = vld [vmem:[%s1 + $0x4c] sm:$0xf]
    %v61 = vld [vmem:[%s1 + $0x50] sm:$0xf]
    %v62 = vld [vmem:[%s1 + $0x54] sm:$0xf]
    %v63 = vld [vmem:[%s1 + $0x58] sm:$0xf]
    %v64 = vld [vmem:[%s1 + $0x5c] sm:$0xf]
    %v65 = vld [vmem:[%s1 + $0x60] sm:$0xf]
    %v66 = vld [vmem:[%s1 + $0x64] sm:$0xf]
    %v67 = vld [vmem:[%s1 + $0x68] sm:$0xf]
    %v68 = vld [vmem:[%s1 + $0x6c] sm:$0xf]
    %v69 = vld [vmem:[%s1 + $0x70] sm:$0xf]
    %v70 = vld [vmem:[%s1 + $0x74] sm:$0xf]
    %v71 = vld [vmem:[%s1 + $0x78] sm:$0xf]
    %v72 = vld [vmem:[%s1 + $0x7c] sm:$0xf]
    %v73 = vld [vmem:[%s5] sm:$0xff]
    %v74 = vld [vmem:[%s5 + $0x8] sm:$0xff]
    %v75 = vld [vmem:[%s5 + $0x10] sm:$0xff]
    %v76 = vld [vmem:[%s5 + $0x18] sm:$0xff]
    %v77 = vld [vmem:[%s5 + $0x20] sm:$0xff]
    %v78 = vld [vmem:[%s5 + $0x28] sm:$0xff]
    %v79 = vld [vmem:[%s5 + $0x30] sm:$0xff]
    %v80 = vld [vmem:[%s5 + $0x38] sm:$0xff]
    %v81 = vld [vmem:[%s5 + $0x40] sm:$0xff]
    %v82 = vld [vmem:[%s5 + $0x48] sm:$0xff]
    %v83 = vld [vmem:[%s5 + $0x50] sm:$0xff]
    %v84 = vld [vmem:[%s5 + $0x58] sm:$0xff]
    %v85 = vld [vmem:[%s0] sm:$0xff]
    %v86 = vld [vmem:[%s0 + $0x8] sm:$0xff]
    %v87 = vld [vmem:[%s0 + $0x10] sm:$0xff]
    %v88 = vld [vmem:[%s0 + $0x18] sm:$0xff]
    %v93 = vunpack.c.l.b16 %v25
    %v94 = vunpack.c.l.b16 %v26
    %v95 = vunpack.c.l.b16 %v27
    %v96 = vunpack.c.l.b16 %v28
    %v97 = vpack.c.b16 %v94, %v93
    %v98 = vpack.c.b16 %v96, %v95
    %v103 = vunpack.c.l.b16 %v85
    %v104 = vunpack.c.h.b16 %v85
    %v105 = vunpack.c.l.b16 %v86
    %v106 = vunpack.c.h.b16 %v86
    %v107 = vunpack.c.l.b16 %v87
    %v108 = vunpack.c.h.b16 %v87
    %v109 = vunpack.c.l.b16 %v88
    %v110 = vunpack.c.h.b16 %v88
    %v111 = vpack.c.b16 %v105, %v103
    %v112 = vpack.c.b16 %v106, %v104
    %v113 = vpack.c.b16 %v109, %v107
    %v114 = vpack.c.b16 %v110, %v108
    %vm119 = vcmask 261120
    %v121 = vsel %vm119, %v97, 0
    %v124 = vsel %vm119, %v98, 0
    %126 = vmatpush.bf16.msra.mxu0 0
    %127 = vmatpush.bf16.msra.mxu0 0
    %128 = vmatpush.bf16.msra.mxu0 0
    %129 = vmatpush.bf16.msra.mxu0 0
    %130 = vmatpush.bf16.msra.mxu0 0
    %131 = vmatpush.bf16.msra.mxu0 0
    %132 = vmatpush.bf16.msra.mxu0 %v113
    %133 = vmatpush.bf16.msra.mxu0 %v111
    %134 = vmatmul.bf16.gmra.mxu0 %v121
    %v135 = vpop.f32.mrf.mxu0
    %v136 = vadd.f32 0.0, %v135
    %v137 = vpop.f32.mrf.mxu0
    %v138 = vadd.f32 0.0, %v137
    %139 = vmatmul.bf16.gmra.mxu0 %v124
    %v140 = vpop.f32.mrf.mxu0
    %v141 = vadd.f32 0.0, %v140
    %v142 = vpop.f32.mrf.mxu0
    %v143 = vadd.f32 0.0, %v142
    %144 = vdwg.mxu0
    %145 = vmatpush.bf16.msra.mxu0 0
    %146 = vmatpush.bf16.msra.mxu0 0
    %147 = vmatpush.bf16.msra.mxu0 0
    %148 = vmatpush.bf16.msra.mxu0 0
    %149 = vmatpush.bf16.msra.mxu0 0
    %150 = vmatpush.bf16.msra.mxu0 0
    %151 = vmatpush.bf16.msra.mxu0 %v114
    %152 = vmatpush.bf16.msra.mxu0 %v112
    %153 = vmatmul.bf16.gmra.mxu0 %v121
    %v154 = vpop.f32.mrf.mxu0
    %v155 = vadd.f32 0.0, %v154
    %v156 = vpop.f32.mrf.mxu0
    %v157 = vadd.f32 0.0, %v156
    %158 = vmatmul.bf16.gmra.mxu0 %v124
    %v159 = vpop.f32.mrf.mxu0
    %v160 = vadd.f32 0.0, %v159
    %v161 = vpop.f32.mrf.mxu0
    %v162 = vadd.f32 0.0, %v161
    %163 = vdwg.mxu0
    %v164 = vmul.f32 %v136, 0.25
    %v165 = vmul.f32 %v155, 0.25
    %v166 = vmul.f32 %v138, 0.25
    %v167 = vmul.f32 %v157, 0.25
    %v168 = vmul.f32 %v141, 0.25
    %v169 = vmul.f32 %v160, 0.25
    %v170 = vmul.f32 %v143, 0.25
    %v171 = vmul.f32 %v162, 0.25
    %v204 = vunpack.c.l.b16 %v41
    %v205 = vunpack.c.l.b16 %v42
    %v206 = vunpack.c.l.b16 %v43
    %v207 = vunpack.c.l.b16 %v44
    %v208 = vunpack.c.l.b16 %v45
    %v209 = vunpack.c.l.b16 %v46
    %v210 = vunpack.c.l.b16 %v47
    %v211 = vunpack.c.l.b16 %v48
    %v212 = vunpack.c.l.b16 %v49
    %v213 = vunpack.c.l.b16 %v50
    %v214 = vunpack.c.l.b16 %v51
    %v215 = vunpack.c.l.b16 %v52
    %v216 = vunpack.c.l.b16 %v53
    %v217 = vunpack.c.l.b16 %v54
    %v218 = vunpack.c.l.b16 %v55
    %v219 = vunpack.c.l.b16 %v56
    %v220 = vunpack.c.l.b16 %v57
    %v221 = vunpack.c.l.b16 %v58
    %v222 = vunpack.c.l.b16 %v59
    %v223 = vunpack.c.l.b16 %v60
    %v224 = vunpack.c.l.b16 %v61
    %v225 = vunpack.c.l.b16 %v62
    %v226 = vunpack.c.l.b16 %v63
    %v227 = vunpack.c.l.b16 %v64
    %v228 = vunpack.c.l.b16 %v65
    %v229 = vunpack.c.l.b16 %v66
    %v230 = vunpack.c.l.b16 %v67
    %v231 = vunpack.c.l.b16 %v68
    %v232 = vunpack.c.l.b16 %v69
    %v233 = vunpack.c.l.b16 %v70
    %v234 = vunpack.c.l.b16 %v71
    %v235 = vunpack.c.l.b16 %v72
    %v236 = vpack.c.b16 %v205, %v204
    %v237 = vpack.c.b16 %v207, %v206
    %v238 = vpack.c.b16 %v209, %v208
    %v239 = vpack.c.b16 %v211, %v210
    %v240 = vpack.c.b16 %v213, %v212
    %v241 = vpack.c.b16 %v215, %v214
    %v242 = vpack.c.b16 %v217, %v216
    %v243 = vpack.c.b16 %v219, %v218
    %v244 = vpack.c.b16 %v221, %v220
    %v245 = vpack.c.b16 %v223, %v222
    %v246 = vpack.c.b16 %v225, %v224
    %v247 = vpack.c.b16 %v227, %v226
    %v248 = vpack.c.b16 %v229, %v228
    %v249 = vpack.c.b16 %v231, %v230
    %v250 = vpack.c.b16 %v233, %v232
    %v251 = vpack.c.b16 %v235, %v234
    %268 = vmatpush.bf16.msra.mxu0 %v243
    %269 = vmatpush.bf16.msra.mxu0 %v242
    %270 = vmatpush.bf16.msra.mxu0 %v241
    %271 = vmatpush.bf16.msra.mxu0 %v240
    %272 = vmatpush.bf16.msra.mxu0 %v239
    %273 = vmatpush.bf16.msra.mxu0 %v238
    %274 = vmatpush.bf16.msra.mxu0 %v237
    %275 = vmatpush.bf16.msra.mxu0 %v236
    %276 = vmatmul.bf16.gmra.mxu0 %v111
    %v277 = vpop.f32.mrf.mxu0
    %v278 = vadd.f32 0.0, %v277
    %v279 = vpop.f32.mrf.mxu0
    %v280 = vadd.f32 0.0, %v279
    %281 = vmatmul.bf16.gmra.mxu0 %v113
    %v282 = vpop.f32.mrf.mxu0
    %v283 = vadd.f32 0.0, %v282
    %v284 = vpop.f32.mrf.mxu0
    %v285 = vadd.f32 0.0, %v284
    %286 = vdwg.mxu0
    %287 = vmatpush.bf16.msra.mxu0 %v251
    %288 = vmatpush.bf16.msra.mxu0 %v250
    %289 = vmatpush.bf16.msra.mxu0 %v249
    %290 = vmatpush.bf16.msra.mxu0 %v248
    %291 = vmatpush.bf16.msra.mxu0 %v247
    %292 = vmatpush.bf16.msra.mxu0 %v246
    %293 = vmatpush.bf16.msra.mxu0 %v245
    %294 = vmatpush.bf16.msra.mxu0 %v244
    %295 = vmatmul.bf16.gmra.mxu0 %v112
    %v296 = vpop.f32.mrf.mxu0
    %v297 = vadd.f32 %v278, %v296
    %v298 = vpop.f32.mrf.mxu0
    %v299 = vadd.f32 %v280, %v298
    %300 = vmatmul.bf16.gmra.mxu0 %v114
    %v301 = vpop.f32.mrf.mxu0
    %v302 = vadd.f32 %v283, %v301
    %v303 = vpop.f32.mrf.mxu0
    %v304 = vadd.f32 %v285, %v303
    %305 = vdwg.mxu0
    %vm306 = vcmask 408576
    %v307 = vsel %vm306, %v297, 0.0
    %v308 = vsel %vm306, %v299, 0.0
    %v309 = vadd.f32 %v307, %v308
    %v310 = vsel %vm306, %v302, 0.0
    %v311 = vadd.f32 %v309, %v310
    %v312 = vsel %vm306, %v304, 0.0
    %v313 = vadd.f32 %v311, %v312
    %v314 = vrot.slane %v313, 4
    %v315 = vadd.f32 %v313, %v314
    %v316 = vrot.slane %v315, 2
    %v317 = vadd.f32 %v315, %v316
    %v318 = vrot.slane %v317, 1
    %v319 = vadd.f32 %v317, %v318
    %v320 = vrcp.pop 32.0
    %v321 = vmul.f32 32.0, %v320
    %v322 = vsub.f32 1.0, %v321
    %v323 = vmul.f32 %v320, %v322
    %v324 = vadd.f32 %v320, %v323
    %vm325 = vweird.f32 %v320
    %v326 = vsel %vm325, %v320, %v324
    %v327 = vmul.f32 %v319, %v326
    %v328 = vsub.f32 %v297, %v327
    %v329 = vsub.f32 %v299, %v327
    %v330 = vsub.f32 %v302, %v327
    %v331 = vsub.f32 %v304, %v327
    %v332 = vmul.f32 %v328, %v328
    %v333 = vmul.f32 %v329, %v329
    %v334 = vmul.f32 %v330, %v330
    %v335 = vmul.f32 %v331, %v331
    %v336 = vsel %vm306, %v332, 0.0
    %v337 = vsel %vm306, %v333, 0.0
    %v338 = vadd.f32 %v336, %v337
    %v339 = vsel %vm306, %v334, 0.0
    %v340 = vadd.f32 %v338, %v339
    %v341 = vsel %vm306, %v335, 0.0
    %v342 = vadd.f32 %v340, %v341
    %v343 = vrot.slane %v342, 4
    %v344 = vadd.f32 %v342, %v343
    %v345 = vrot.slane %v344, 2
    %v346 = vadd.f32 %v344, %v345
    %v347 = vrot.slane %v346, 1
    %v348 = vadd.f32 %v346, %v347
    %v349 = vmul.f32 %v348, %v326
    %v350 = vadd.f32 %v349, 1e-05
    %v351 = vrsqrt.pop %v350
    %v352 = vmul.f32 %v351, %v350
    %v353 = vmul.f32 %v352, %v351
    %v354 = vmul.f32 0.5, %v353
    %v355 = vsub.f32 1.5, %v354
    %v356 = vmul.f32 %v351, %v355
    %vm357 = vweird.f32 %v350
    %vm358 = vweird.f32 %v351
    %vm359 = vmor %vm357, %vm358
    %v360 = vsel %vm359, %v351, %v356
    %v361 = vmul.f32 %v328, %v360
    %v362 = vmul.f32 %v329, %v360
    %v363 = vmul.f32 %v330, %v360
    %v364 = vmul.f32 %v331, %v360
    %v365 = vpack.c.bf16 %v362, %v361
    %v366 = vpack.c.bf16 %v364, %v363
    %368 = vset.pattern.permute.xlu0 0
    %369 = vperm.xlu0 %368, %v73
    %v370 = vpop.permute.xlu0 %369
    %373 = vset.pattern.permute.xlu0 0
    %374 = vperm.xlu0 %373, %v74
    %v375 = vpop.permute.xlu0 %374
    %378 = vset.pattern.permute.xlu0 0
    %379 = vperm.xlu0 %378, %v75
    %v380 = vpop.permute.xlu0 %379
    %383 = vset.pattern.permute.xlu0 0
    %384 = vperm.xlu0 %383, %v76
    %v385 = vpop.permute.xlu0 %384
    %388 = vset.pattern.permute.xlu0 0
    %389 = vperm.xlu0 %388, %v77
    %v390 = vpop.permute.xlu0 %389
    %393 = vset.pattern.permute.xlu0 0
    %394 = vperm.xlu0 %393, %v78
    %v395 = vpop.permute.xlu0 %394
    %398 = vset.pattern.permute.xlu0 0
    %399 = vperm.xlu0 %398, %v79
    %v400 = vpop.permute.xlu0 %399
    %403 = vset.pattern.permute.xlu0 0
    %404 = vperm.xlu0 %403, %v80
    %v405 = vpop.permute.xlu0 %404
    %v415 = vunpack.c.l.b16 %v29
    %v416 = vunpack.c.l.b16 %v30
    %v417 = vunpack.c.l.b16 %v31
    %v418 = vunpack.c.l.b16 %v32
    %v419 = vunpack.c.l.b16 %v33
    %v420 = vunpack.c.l.b16 %v34
    %v421 = vunpack.c.l.b16 %v35
    %v422 = vunpack.c.l.b16 %v36
    %v423 = vpack.c.b16 %v416, %v415
    %v424 = vpack.c.b16 %v418, %v417
    %v425 = vpack.c.b16 %v420, %v419
    %v426 = vpack.c.b16 %v422, %v421
    %v428 = vsel %vm119, %v423, 0
    %v431 = vsel %vm119, %v424, 0
    %v434 = vsel %vm119, %v425, 0
    %v437 = vsel %vm119, %v426, 0
    %439 = vmatpush.bf16.msra.mxu0 0
    %440 = vmatpush.bf16.msra.mxu0 0
    %441 = vmatpush.bf16.msra.mxu0 0
    %442 = vmatpush.bf16.msra.mxu0 0
    %443 = vmatpush.bf16.msra.mxu0 0
    %444 = vmatpush.bf16.msra.mxu0 0
    %445 = vmatpush.bf16.msra.mxu0 %v366
    %446 = vmatpush.bf16.msra.mxu0 %v365
    %447 = vmatmul.bf16.gmra.mxu0 %v428
    %v448 = vpop.f32.mrf.mxu0
    %v449 = vadd.f32 %v370, %v448
    %v450 = vpop.f32.mrf.mxu0
    %v451 = vadd.f32 %v375, %v450
    %452 = vmatmul.bf16.gmra.mxu0 %v431
    %v453 = vpop.f32.mrf.mxu0
    %v454 = vadd.f32 %v380, %v453
    %v455 = vpop.f32.mrf.mxu0
    %v456 = vadd.f32 %v385, %v455
    %457 = vmatmul.bf16.gmra.mxu0 %v434
    %v458 = vpop.f32.mrf.mxu0
    %v459 = vadd.f32 %v390, %v458
    %v460 = vpop.f32.mrf.mxu0
    %v461 = vadd.f32 %v395, %v460
    %462 = vmatmul.bf16.gmra.mxu0 %v437
    %v463 = vpop.f32.mrf.mxu0
    %v464 = vadd.f32 %v400, %v463
    %v465 = vpop.f32.mrf.mxu0
    %v466 = vadd.f32 %v405, %v465
    %467 = vdwg.mxu0
    %v468 = vpack.c.bf16 %v165, %v164
    %v469 = vpack.c.bf16 %v167, %v166
    %v470 = vpack.c.bf16 %v169, %v168
    %v471 = vpack.c.bf16 %v171, %v170
    %v472 = vpack.c.bf16 %v449, %v449
    %v473 = vpack.c.bf16 %v451, %v451
    %v474 = vpack.c.bf16 %v454, %v454
    %v475 = vpack.c.bf16 %v456, %v456
    %v476 = vpack.c.bf16 %v459, %v459
    %v477 = vpack.c.bf16 %v461, %v461
    %v478 = vpack.c.bf16 %v464, %v464
    %v479 = vpack.c.bf16 %v466, %v466
    %v482 = vunpack.c.l.b16 %v472
    %v483 = vunpack.c.l.b16 %v473
    %v484 = vpack.c.b16 %v483, %v482
    %486 = vxpose.xlu0.c.b16.start [1/8] %v484, 128
    %487 = vxpose.xlu0.c.b16.cont [2/8] 0, 128
    %488 = vxpose.xlu0.c.b16.cont [3/8] 0, 128
    %489 = vxpose.xlu0.c.b16.cont [4/8] 0, 128
    %490 = vxpose.xlu0.c.b16.cont [5/8] 0, 128
    %491 = vxpose.xlu0.c.b16.cont [6/8] 0, 128
    %492 = vxpose.xlu0.c.b16.cont [7/8] 0, 128
    %493 = vxpose.xlu0.c.b16.end [8/8] 0, 128
    %v494 = vpop.trf.xlu0
    %v495 = vpop.trf.xlu0
    %v496 = vpop.trf.xlu0
    %v497 = vpop.trf.xlu0
    %v498 = vpop.trf.xlu0
    %v499 = vpop.trf.xlu0
    %v500 = vpop.trf.xlu0
    %v501 = vpop.trf.xlu0
    %v504 = vunpack.c.l.b16 %v468
    %v505 = vunpack.c.h.b16 %v468
    %v506 = vunpack.c.l.b16 %v469
    %v507 = vunpack.c.h.b16 %v469
    %v508 = vpack.c.b16 %v506, %v504
    %v509 = vpack.c.b16 %v507, %v505
    %vm512 = vcmask 130048
    %v514 = vsel %vm512, %v494, 0
    %v517 = vsel %vm512, %v495, 0
    %v520 = vsel %vm512, %v496, 0
    %v523 = vsel %vm512, %v497, 0
    %525 = vmatpush.bf16.msra.mxu0 0
    %526 = vmatpush.bf16.msra.mxu0 0
    %527 = vmatpush.bf16.msra.mxu0 0
    %528 = vmatpush.bf16.msra.mxu0 0
    %529 = vmatpush.bf16.msra.mxu0 0
    %530 = vmatpush.bf16.msra.mxu0 0
    %531 = vmatpush.bf16.msra.mxu0 0
    %532 = vmatpush.bf16.msra.mxu0 %v508
    %533 = vmatmul.bf16.gmra.mxu0 %v514
    %v534 = vpop.f32.mrf.mxu0
    %v535 = vadd.f32 0.0, %v534
    %v536 = vpop.f32.mrf.mxu0
    %v537 = vadd.f32 0.0, %v536
    %538 = vmatmul.bf16.gmra.mxu0 %v517
    %v539 = vpop.f32.mrf.mxu0
    %v540 = vadd.f32 0.0, %v539
    %v541 = vpop.f32.mrf.mxu0
    %v542 = vadd.f32 0.0, %v541
    %543 = vmatmul.bf16.gmra.mxu0 %v520
    %v544 = vpop.f32.mrf.mxu0
    %v545 = vadd.f32 0.0, %v544
    %v546 = vpop.f32.mrf.mxu0
    %v547 = vadd.f32 0.0, %v546
    %548 = vmatmul.bf16.gmra.mxu0 %v523
    %v549 = vpop.f32.mrf.mxu0
    %v550 = vadd.f32 0.0, %v549
    %v551 = vpop.f32.mrf.mxu0
    %552 = vdwg.mxu0
    %553 = vmatpush.bf16.msra.mxu0 0
    %554 = vmatpush.bf16.msra.mxu0 0
    %555 = vmatpush.bf16.msra.mxu0 0
    %556 = vmatpush.bf16.msra.mxu0 0
    %557 = vmatpush.bf16.msra.mxu0 0
    %558 = vmatpush.bf16.msra.mxu0 0
    %559 = vmatpush.bf16.msra.mxu0 0
    %560 = vmatpush.bf16.msra.mxu0 %v509
    %561 = vmatmul.bf16.gmra.mxu0 %v514
    %v562 = vpop.f32.mrf.mxu0
    %v563 = vadd.f32 0.0, %v562
    %v564 = vpop.f32.mrf.mxu0
    %v565 = vadd.f32 0.0, %v564
    %566 = vmatmul.bf16.gmra.mxu0 %v517
    %v567 = vpop.f32.mrf.mxu0
    %v568 = vadd.f32 0.0, %v567
    %v569 = vpop.f32.mrf.mxu0
    %v570 = vadd.f32 0.0, %v569
    %571 = vmatmul.bf16.gmra.mxu0 %v520
    %v572 = vpop.f32.mrf.mxu0
    %v573 = vadd.f32 0.0, %v572
    %v574 = vpop.f32.mrf.mxu0
    %v575 = vadd.f32 0.0, %v574
    %576 = vmatmul.bf16.gmra.mxu0 %v523
    %v577 = vpop.f32.mrf.mxu0
    %v578 = vadd.f32 0.0, %v577
    %v579 = vpop.f32.mrf.mxu0
    %580 = vdwg.mxu0
    %v583 = vunpack.c.l.b16 %v474
    %v584 = vunpack.c.l.b16 %v475
    %v585 = vpack.c.b16 %v584, %v583
    %587 = vxpose.xlu0.c.b16.start [1/8] %v585, 128
    %588 = vxpose.xlu0.c.b16.cont [2/8] 0, 128
    %589 = vxpose.xlu0.c.b16.cont [3/8] 0, 128
    %590 = vxpose.xlu0.c.b16.cont [4/8] 0, 128
    %591 = vxpose.xlu0.c.b16.cont [5/8] 0, 128
    %592 = vxpose.xlu0.c.b16.cont [6/8] 0, 128
    %593 = vxpose.xlu0.c.b16.cont [7/8] 0, 128
    %594 = vxpose.xlu0.c.b16.end [8/8] 0, 128
    %v595 = vpop.trf.xlu0
    %v596 = vpop.trf.xlu0
    %v597 = vpop.trf.xlu0
    %v598 = vpop.trf.xlu0
    %v599 = vpop.trf.xlu0
    %v600 = vpop.trf.xlu0
    %v601 = vpop.trf.xlu0
    %v602 = vpop.trf.xlu0
    %v605 = vunpack.c.l.b16 %v470
    %v606 = vunpack.c.h.b16 %v470
    %v607 = vunpack.c.l.b16 %v471
    %v608 = vunpack.c.h.b16 %v471
    %v609 = vpack.c.b16 %v607, %v605
    %v610 = vpack.c.b16 %v608, %v606
    %v614 = vsel %vm512, %v595, 0
    %v617 = vsel %vm512, %v596, 0
    %v620 = vsel %vm512, %v597, 0
    %v623 = vsel %vm512, %v598, 0
    %625 = vmatpush.bf16.msra.mxu0 0
    %626 = vmatpush.bf16.msra.mxu0 0
    %627 = vmatpush.bf16.msra.mxu0 0
    %628 = vmatpush.bf16.msra.mxu0 0
    %629 = vmatpush.bf16.msra.mxu0 0
    %630 = vmatpush.bf16.msra.mxu0 0
    %631 = vmatpush.bf16.msra.mxu0 0
    %632 = vmatpush.bf16.msra.mxu0 %v609
    %633 = vmatmul.bf16.gmra.mxu0 %v614
    %v634 = vpop.f32.mrf.mxu0
    %v635 = vadd.f32 0.0, %v634
    %v636 = vpop.f32.mrf.mxu0
    %v637 = vadd.f32 0.0, %v636
    %638 = vmatmul.bf16.gmra.mxu0 %v617
    %v639 = vpop.f32.mrf.mxu0
    %v640 = vadd.f32 0.0, %v639
    %v641 = vpop.f32.mrf.mxu0
    %v642 = vadd.f32 0.0, %v641
    %643 = vmatmul.bf16.gmra.mxu0 %v620
    %v644 = vpop.f32.mrf.mxu0
    %v645 = vadd.f32 0.0, %v644
    %v646 = vpop.f32.mrf.mxu0
    %v647 = vadd.f32 0.0, %v646
    %648 = vmatmul.bf16.gmra.mxu0 %v623
    %v649 = vpop.f32.mrf.mxu0
    %v650 = vadd.f32 0.0, %v649
    %v651 = vpop.f32.mrf.mxu0
    %652 = vdwg.mxu0
    %653 = vmatpush.bf16.msra.mxu0 0
    %654 = vmatpush.bf16.msra.mxu0 0
    %655 = vmatpush.bf16.msra.mxu0 0
    %656 = vmatpush.bf16.msra.mxu0 0
    %657 = vmatpush.bf16.msra.mxu0 0
    %658 = vmatpush.bf16.msra.mxu0 0
    %659 = vmatpush.bf16.msra.mxu0 0
    %660 = vmatpush.bf16.msra.mxu0 %v610
    %661 = vmatmul.bf16.gmra.mxu0 %v614
    %v662 = vpop.f32.mrf.mxu0
    %v663 = vadd.f32 0.0, %v662
    %v664 = vpop.f32.mrf.mxu0
    %v665 = vadd.f32 0.0, %v664
    %666 = vmatmul.bf16.gmra.mxu0 %v617
    %v667 = vpop.f32.mrf.mxu0
    %v668 = vadd.f32 0.0, %v667
    %v669 = vpop.f32.mrf.mxu0
    %v670 = vadd.f32 0.0, %v669
    %671 = vmatmul.bf16.gmra.mxu0 %v620
    %v672 = vpop.f32.mrf.mxu0
    %v673 = vadd.f32 0.0, %v672
    %v674 = vpop.f32.mrf.mxu0
    %v675 = vadd.f32 0.0, %v674
    %676 = vmatmul.bf16.gmra.mxu0 %v623
    %v677 = vpop.f32.mrf.mxu0
    %v678 = vadd.f32 0.0, %v677
    %v679 = vpop.f32.mrf.mxu0
    %680 = vdwg.mxu0
    %v681 = vmax.f32 %v535, %v537
    %v682 = vmax.f32 %v681, %v540
    %v683 = vmax.f32 %v682, %v542
    %v684 = vmax.f32 %v683, %v545
    %v685 = vmax.f32 %v684, %v547
    %vm686 = vcmask 1041408
    %v687 = vsel %vm686, %v550, -inf
    %v688 = vmax.f32 %v685, %v687
    %v689 = vrot.slane %v688, 4
    %v690 = vmax.f32 %v688, %v689
    %v691 = vrot.slane %v690, 2
    %v692 = vmax.f32 %v690, %v691
    %v693 = vrot.slane %v692, 1
    %v694 = vmax.f32 %v692, %v693
    %v695 = vmax.f32 %v563, %v565
    %v696 = vmax.f32 %v695, %v568
    %v697 = vmax.f32 %v696, %v570
    %v698 = vmax.f32 %v697, %v573
    %v699 = vmax.f32 %v698, %v575
    %v700 = vsel %vm686, %v578, -inf
    %v701 = vmax.f32 %v699, %v700
    %v702 = vrot.slane %v701, 4
    %v703 = vmax.f32 %v701, %v702
    %v704 = vrot.slane %v703, 2
    %v705 = vmax.f32 %v703, %v704
    %v706 = vrot.slane %v705, 1
    %v707 = vmax.f32 %v705, %v706
    %v708 = vmax.f32 %v635, %v637
    %v709 = vmax.f32 %v708, %v640
    %v710 = vmax.f32 %v709, %v642
    %v711 = vmax.f32 %v710, %v645
    %v712 = vmax.f32 %v711, %v647
    %v713 = vsel %vm686, %v650, -inf
    %v714 = vmax.f32 %v712, %v713
    %v715 = vrot.slane %v714, 4
    %v716 = vmax.f32 %v714, %v715
    %v717 = vrot.slane %v716, 2
    %v718 = vmax.f32 %v716, %v717
    %v719 = vrot.slane %v718, 1
    %v720 = vmax.f32 %v718, %v719
    %v721 = vmax.f32 %v663, %v665
    %v722 = vmax.f32 %v721, %v668
    %v723 = vmax.f32 %v722, %v670
    %v724 = vmax.f32 %v723, %v673
    %v725 = vmax.f32 %v724, %v675
    %v726 = vsel %vm686, %v678, -inf
    %v727 = vmax.f32 %v725, %v726
    %v728 = vrot.slane %v727, 4
    %v729 = vmax.f32 %v727, %v728
    %v730 = vrot.slane %v729, 2
    %v731 = vmax.f32 %v729, %v730
    %v732 = vrot.slane %v731, 1
    %v733 = vmax.f32 %v731, %v732
    %v734 = vsub.f32 %v535, %v694
    %v735 = vsub.f32 %v563, %v707
    %v736 = vsub.f32 %v537, %v694
    %v737 = vsub.f32 %v565, %v707
    %v738 = vsub.f32 %v540, %v694
    %v739 = vsub.f32 %v568, %v707
    %v740 = vsub.f32 %v542, %v694
    %v741 = vsub.f32 %v570, %v707
    %v742 = vsub.f32 %v545, %v694
    %v743 = vsub.f32 %v573, %v707
    %v744 = vsub.f32 %v547, %v694
    %v745 = vsub.f32 %v575, %v707
    %v746 = vsub.f32 %v550, %v694
    %v747 = vsub.f32 %v578, %v707
    %v748 = vsub.f32 %v635, %v720
    %v749 = vsub.f32 %v663, %v733
    %v750 = vsub.f32 %v637, %v720
    %v751 = vsub.f32 %v665, %v733
    %v752 = vsub.f32 %v640, %v720
    %v753 = vsub.f32 %v668, %v733
    %v754 = vsub.f32 %v642, %v720
    %v755 = vsub.f32 %v670, %v733
    %v756 = vsub.f32 %v645, %v720
    %v757 = vsub.f32 %v673, %v733
    %v758 = vsub.f32 %v647, %v720
    %v759 = vsub.f32 %v675, %v733
    %v760 = vsub.f32 %v650, %v720
    %v761 = vsub.f32 %v678, %v733
    %v762 = vmul.f32 %v734, 1.442695
    %v763 = vpow.pop %v762
    %v764 = vmul.f32 %v735, 1.442695
    %v765 = vpow.pop %v764
    %v766 = vmul.f32 %v736, 1.442695
    %v767 = vpow.pop %v766
    %v768 = vmul.f32 %v737, 1.442695
    %v769 = vpow.pop %v768
    %v770 = vmul.f32 %v738, 1.442695
    %v771 = vpow.pop %v770
    %v772 = vmul.f32 %v739, 1.442695
    %v773 = vpow.pop %v772
    %v774 = vmul.f32 %v740, 1.442695
    %v775 = vpow.pop %v774
    %v776 = vmul.f32 %v741, 1.442695
    %v777 = vpow.pop %v776
    %v778 = vmul.f32 %v742, 1.442695
    %v779 = vpow.pop %v778
    %v780 = vmul.f32 %v743, 1.442695
    %v781 = vpow.pop %v780
    %v782 = vmul.f32 %v744, 1.442695
    %v783 = vpow.pop %v782
    %v784 = vmul.f32 %v745, 1.442695
    %v785 = vpow.pop %v784
    %v786 = vmul.f32 %v746, 1.442695
    %v787 = vpow.pop %v786
    %v788 = vmul.f32 %v747, 1.442695
    %v789 = vpow.pop %v788
    %v790 = vmul.f32 %v748, 1.442695
    %v791 = vpow.pop %v790
    %v792 = vmul.f32 %v749, 1.442695
    %v793 = vpow.pop %v792
    %v794 = vmul.f32 %v750, 1.442695
    %v795 = vpow.pop %v794
    %v796 = vmul.f32 %v751, 1.442695
    %v797 = vpow.pop %v796
    %v798 = vmul.f32 %v752, 1.442695
    %v799 = vpow.pop %v798
    %v800 = vmul.f32 %v753, 1.442695
    %v801 = vpow.pop %v800
    %v802 = vmul.f32 %v754, 1.442695
    %v803 = vpow.pop %v802
    %v804 = vmul.f32 %v755, 1.442695
    %v805 = vpow.pop %v804
    %v806 = vmul.f32 %v756, 1.442695
    %v807 = vpow.pop %v806
    %v808 = vmul.f32 %v757, 1.442695
    %v809 = vpow.pop %v808
    %v810 = vmul.f32 %v758, 1.442695
    %v811 = vpow.pop %v810
    %v812 = vmul.f32 %v759, 1.442695
    %v813 = vpow.pop %v812
    %v814 = vmul.f32 %v760, 1.442695
    %v815 = vpow.pop %v814
    %v816 = vmul.f32 %v761, 1.442695
    %v817 = vpow.pop %v816
    %v818 = vadd.f32 %v763, %v767
    %v819 = vadd.f32 %v818, %v771
    %v820 = vadd.f32 %v819, %v775
    %v821 = vadd.f32 %v820, %v779
    %v822 = vadd.f32 %v821, %v783
    %v823 = vsel %vm686, %v787, 0.0
    %v824 = vadd.f32 %v822, %v823
    %v825 = vrot.slane %v824, 4
    %v826 = vadd.f32 %v824, %v825
    %v827 = vrot.slane %v826, 2
    %v828 = vadd.f32 %v826, %v827
    %v829 = vrot.slane %v828, 1
    %v830 = vadd.f32 %v828, %v829
    %v831 = vadd.f32 %v765, %v769
    %v832 = vadd.f32 %v831, %v773
    %v833 = vadd.f32 %v832, %v777
    %v834 = vadd.f32 %v833, %v781
    %v835 = vadd.f32 %v834, %v785
    %v836 = vsel %vm686, %v789, 0.0
    %v837 = vadd.f32 %v835, %v836
    %v838 = vrot.slane %v837, 4
    %v839 = vadd.f32 %v837, %v838
    %v840 = vrot.slane %v839, 2
    %v841 = vadd.f32 %v839, %v840
    %v842 = vrot.slane %v841, 1
    %v843 = vadd.f32 %v841, %v842
    %v844 = vadd.f32 %v791, %v795
    %v845 = vadd.f32 %v844, %v799
    %v846 = vadd.f32 %v845, %v803
    %v847 = vadd.f32 %v846, %v807
    %v848 = vadd.f32 %v847, %v811
    %v849 = vsel %vm686, %v815, 0.0
    %v850 = vadd.f32 %v848, %v849
    %v851 = vrot.slane %v850, 4
    %v852 = vadd.f32 %v850, %v851
    %v853 = vrot.slane %v852, 2
    %v854 = vadd.f32 %v852, %v853
    %v855 = vrot.slane %v854, 1
    %v856 = vadd.f32 %v854, %v855
    %v857 = vadd.f32 %v793, %v797
    %v858 = vadd.f32 %v857, %v801
    %v859 = vadd.f32 %v858, %v805
    %v860 = vadd.f32 %v859, %v809
    %v861 = vadd.f32 %v860, %v813
    %v862 = vsel %vm686, %v817, 0.0
    %v863 = vadd.f32 %v861, %v862
    %v864 = vrot.slane %v863, 4
    %v865 = vadd.f32 %v863, %v864
    %v866 = vrot.slane %v865, 2
    %v867 = vadd.f32 %v865, %v866
    %v868 = vrot.slane %v867, 1
    %v869 = vadd.f32 %v867, %v868
    %v870 = vrcp.pop %v830
    %v871 = vrcp.pop %v843
    %v872 = vrcp.pop %v856
    %v873 = vrcp.pop %v869
    %v874 = vmul.f32 %v763, %v870
    %v875 = vmul.f32 %v765, %v871
    %v876 = vmul.f32 %v767, %v870
    %v877 = vmul.f32 %v769, %v871
    %v878 = vmul.f32 %v771, %v870
    %v879 = vmul.f32 %v773, %v871
    %v880 = vmul.f32 %v775, %v870
    %v881 = vmul.f32 %v777, %v871
    %v882 = vmul.f32 %v779, %v870
    %v883 = vmul.f32 %v781, %v871
    %v884 = vmul.f32 %v783, %v870
    %v885 = vmul.f32 %v785, %v871
    %v886 = vmul.f32 %v787, %v870
    %v887 = vmul.f32 %v789, %v871
    %v888 = vmul.f32 %v791, %v872
    %v889 = vmul.f32 %v793, %v873
    %v890 = vmul.f32 %v795, %v872
    %v891 = vmul.f32 %v797, %v873
    %v892 = vmul.f32 %v799, %v872
    %v893 = vmul.f32 %v801, %v873
    %v894 = vmul.f32 %v803, %v872
    %v895 = vmul.f32 %v805, %v873
    %v896 = vmul.f32 %v807, %v872
    %v897 = vmul.f32 %v809, %v873
    %v898 = vmul.f32 %v811, %v872
    %v899 = vmul.f32 %v813, %v873
    %v900 = vmul.f32 %v815, %v872
    %v901 = vmul.f32 %v817, %v873
    %v902 = vpack.c.bf16 %v875, %v874
    %v903 = vpack.c.bf16 %v877, %v876
    %v904 = vpack.c.bf16 %v879, %v878
    %v905 = vpack.c.bf16 %v881, %v880
    %v906 = vpack.c.bf16 %v883, %v882
    %v907 = vpack.c.bf16 %v885, %v884
    %v908 = vpack.c.bf16 %v887, %v886
    %v909 = vpack.c.bf16 %v889, %v888
    %v910 = vpack.c.bf16 %v891, %v890
    %v911 = vpack.c.bf16 %v893, %v892
    %v912 = vpack.c.bf16 %v895, %v894
    %v913 = vpack.c.bf16 %v897, %v896
    %v914 = vpack.c.bf16 %v899, %v898
    %v915 = vpack.c.bf16 %v901, %v900
    %v918 = vunpack.c.l.b16 %v476
    %v919 = vunpack.c.l.b16 %v477
    %v920 = vpack.c.b16 %v919, %v918
    %v928 = vunpack.c.l.b16 %v902
    %v929 = vunpack.c.h.b16 %v902
    %v930 = vunpack.c.l.b16 %v903
    %v931 = vunpack.c.h.b16 %v903
    %v932 = vunpack.c.l.b16 %v904
    %v933 = vunpack.c.h.b16 %v904
    %v934 = vunpack.c.l.b16 %v905
    %v935 = vunpack.c.h.b16 %v905
    %v936 = vunpack.c.l.b16 %v906
    %v937 = vunpack.c.h.b16 %v906
    %v938 = vunpack.c.l.b16 %v907
    %v939 = vunpack.c.h.b16 %v907
    %v940 = vunpack.c.l.b16 %v908
    %v941 = vunpack.c.h.b16 %v908
    %v942 = vpack.c.b16 %v930, %v928
    %v943 = vpack.c.b16 %v931, %v929
    %v944 = vpack.c.b16 %v934, %v932
    %v945 = vpack.c.b16 %v935, %v933
    %v946 = vpack.c.b16 %v938, %v936
    %v947 = vpack.c.b16 %v939, %v937
    %v948 = vpack.c.b16 %v940, %v940
    %v949 = vpack.c.b16 %v941, %v941
    %v957 = vsel %vm306, %v920, 0
    %vm959 = vcmask 1040384
    %v961 = vsel %vm959, %v948, 0
    %v964 = vsel %vm959, %v949, 0
    %966 = vmatpush.bf16.msra.mxu0 0
    %967 = vmatpush.bf16.msra.mxu0 0
    %968 = vmatpush.bf16.msra.mxu0 0
    %969 = vmatpush.bf16.msra.mxu0 0
    %970 = vmatpush.bf16.msra.mxu0 %v961
    %971 = vmatpush.bf16.msra.mxu0 %v946
    %972 = vmatpush.bf16.msra.mxu0 %v944
    %973 = vmatpush.bf16.msra.mxu0 %v942
    %974 = vmatmul.bf16.gmra.mxu0 %v957
    %v975 = vpop.f32.mrf.mxu0
    %v976 = vadd.f32 0.0, %v975
    %v977 = vpop.f32.mrf.mxu0
    %v978 = vadd.f32 0.0, %v977
    %979 = vdwg.mxu0
    %980 = vmatpush.bf16.msra.mxu0 0
    %981 = vmatpush.bf16.msra.mxu0 0
    %982 = vmatpush.bf16.msra.mxu0 0
    %983 = vmatpush.bf16.msra.mxu0 0
    %984 = vmatpush.bf16.msra.mxu0 %v964
    %985 = vmatpush.bf16.msra.mxu0 %v947
    %986 = vmatpush.bf16.msra.mxu0 %v945
    %987 = vmatpush.bf16.msra.mxu0 %v943
    %988 = vmatmul.bf16.gmra.mxu0 %v957
    %v989 = vpop.f32.mrf.mxu0
    %v990 = vadd.f32 0.0, %v989
    %v991 = vpop.f32.mrf.mxu0
    %v992 = vadd.f32 0.0, %v991
    %993 = vdwg.mxu0
    %v996 = vunpack.c.l.b16 %v478
    %v997 = vunpack.c.l.b16 %v479
    %v998 = vpack.c.b16 %v997, %v996
    %v1006 = vunpack.c.l.b16 %v909
    %v1007 = vunpack.c.h.b16 %v909
    %v1008 = vunpack.c.l.b16 %v910
    %v1009 = vunpack.c.h.b16 %v910
    %v1010 = vunpack.c.l.b16 %v911
    %v1011 = vunpack.c.h.b16 %v911
    %v1012 = vunpack.c.l.b16 %v912
    %v1013 = vunpack.c.h.b16 %v912
    %v1014 = vunpack.c.l.b16 %v913
    %v1015 = vunpack.c.h.b16 %v913
    %v1016 = vunpack.c.l.b16 %v914
    %v1017 = vunpack.c.h.b16 %v914
    %v1018 = vunpack.c.l.b16 %v915
    %v1019 = vunpack.c.h.b16 %v915
    %v1020 = vpack.c.b16 %v1008, %v1006
    %v1021 = vpack.c.b16 %v1009, %v1007
    %v1022 = vpack.c.b16 %v1012, %v1010
    %v1023 = vpack.c.b16 %v1013, %v1011
    %v1024 = vpack.c.b16 %v1016, %v1014
    %v1025 = vpack.c.b16 %v1017, %v1015
    %v1026 = vpack.c.b16 %v1018, %v1018
    %v1027 = vpack.c.b16 %v1019, %v1019
    %v1035 = vsel %vm306, %v998, 0
    %v1038 = vsel %vm959, %v1026, 0
    %v1041 = vsel %vm959, %v1027, 0
    %1043 = vmatpush.bf16.msra.mxu0 0
    %1044 = vmatpush.bf16.msra.mxu0 0
    %1045 = vmatpush.bf16.msra.mxu0 0
    %1046 = vmatpush.bf16.msra.mxu0 0
    %1047 = vmatpush.bf16.msra.mxu0 %v1038
    %1048 = vmatpush.bf16.msra.mxu0 %v1024
    %1049 = vmatpush.bf16.msra.mxu0 %v1022
    %1050 = vmatpush.bf16.msra.mxu0 %v1020
    %1051 = vmatmul.bf16.gmra.mxu0 %v1035
    %v1052 = vpop.f32.mrf.mxu0
    %v1053 = vadd.f32 0.0, %v1052
    %v1054 = vpop.f32.mrf.mxu0
    %v1055 = vadd.f32 0.0, %v1054
    %1056 = vdwg.mxu0
    %1057 = vmatpush.bf16.msra.mxu0 0
    %1058 = vmatpush.bf16.msra.mxu0 0
    %1059 = vmatpush.bf16.msra.mxu0 0
    %1060 = vmatpush.bf16.msra.mxu0 0
    %1061 = vmatpush.bf16.msra.mxu0 %v1041
    %1062 = vmatpush.bf16.msra.mxu0 %v1025
    %1063 = vmatpush.bf16.msra.mxu0 %v1023
    %1064 = vmatpush.bf16.msra.mxu0 %v1021
    %1065 = vmatmul.bf16.gmra.mxu0 %v1035
    %v1066 = vpop.f32.mrf.mxu0
    %v1067 = vadd.f32 0.0, %v1066
    %v1068 = vpop.f32.mrf.mxu0
    %v1069 = vadd.f32 0.0, %v1068
    %1070 = vdwg.mxu0
    %v1071 = vpack.c.bf16 %v978, %v976
    %v1072 = vpack.c.bf16 %v992, %v990
    %v1073 = vpack.c.bf16 %v1055, %v1053
    %v1074 = vpack.c.bf16 %v1069, %v1067
    %1076 = vset.pattern.permute.xlu0 0
    %1077 = vperm.xlu0 %1076, %v81
    %v1078 = vpop.permute.xlu0 %1077
    %1081 = vset.pattern.permute.xlu0 0
    %1082 = vperm.xlu0 %1081, %v82
    %v1083 = vpop.permute.xlu0 %1082
    %1086 = vset.pattern.permute.xlu0 0
    %1087 = vperm.xlu0 %1086, %v83
    %v1088 = vpop.permute.xlu0 %1087
    %1091 = vset.pattern.permute.xlu0 0
    %1092 = vperm.xlu0 %1091, %v84
    %v1093 = vpop.permute.xlu0 %1092
    %v1099 = vunpack.c.l.b16 %v37
    %v1100 = vunpack.c.l.b16 %v38
    %v1101 = vunpack.c.l.b16 %v39
    %v1102 = vunpack.c.l.b16 %v40
    %v1103 = vpack.c.b16 %v1100, %v1099
    %v1104 = vpack.c.b16 %v1102, %v1101
    %v1106 = vsel %vm119, %v1103, 0
    %v1109 = vsel %vm119, %v1104, 0
    %1111 = vmatpush.bf16.msra.mxu0 0
    %1112 = vmatpush.bf16.msra.mxu0 0
    %1113 = vmatpush.bf16.msra.mxu0 0
    %1114 = vmatpush.bf16.msra.mxu0 0
    %1115 = vmatpush.bf16.msra.mxu0 0
    %1116 = vmatpush.bf16.msra.mxu0 0
    %1117 = vmatpush.bf16.msra.mxu0 %v1073
    %1118 = vmatpush.bf16.msra.mxu0 %v1071
    %1119 = vmatmul.bf16.gmra.mxu0 %v1106
    %v1120 = vpop.f32.mrf.mxu0
    %v1121 = vadd.f32 %v1078, %v1120
    %v1122 = vpop.f32.mrf.mxu0
    %v1123 = vadd.f32 %v1083, %v1122
    %1124 = vmatmul.bf16.gmra.mxu0 %v1109
    %v1125 = vpop.f32.mrf.mxu0
    %v1126 = vadd.f32 %v1088, %v1125
    %v1127 = vpop.f32.mrf.mxu0
    %v1128 = vadd.f32 %v1093, %v1127
    %1129 = vdwg.mxu0
    %1130 = vmatpush.bf16.msra.mxu0 0
    %1131 = vmatpush.bf16.msra.mxu0 0
    %1132 = vmatpush.bf16.msra.mxu0 0
    %1133 = vmatpush.bf16.msra.mxu0 0
    %1134 = vmatpush.bf16.msra.mxu0 0
    %1135 = vmatpush.bf16.msra.mxu0 0
    %1136 = vmatpush.bf16.msra.mxu0 %v1074
    %1137 = vmatpush.bf16.msra.mxu0 %v1072
    %1138 = vmatmul.bf16.gmra.mxu0 %v1106
    %v1139 = vpop.f32.mrf.mxu0
    %v1140 = vadd.f32 %v1078, %v1139
    %v1141 = vpop.f32.mrf.mxu0
    %v1142 = vadd.f32 %v1083, %v1141
    %1143 = vmatmul.bf16.gmra.mxu0 %v1109
    %v1144 = vpop.f32.mrf.mxu0
    %v1145 = vadd.f32 %v1088, %v1144
    %v1146 = vpop.f32.mrf.mxu0
    %v1147 = vadd.f32 %v1093, %v1146
    %1148 = vdwg.mxu0
    %1149 = vst [vmem:[#allocation2] sm:$0xff] %v1121
    %1150 = vst [vmem:[#allocation2 + $0x8] sm:$0xff] %v1140
    %1151 = vst [vmem:[#allocation2 + $0x10] sm:$0xff] %v1123
    %1152 = vst [vmem:[#allocation2 + $0x18] sm:$0xff] %v1142
    %1153 = vst [vmem:[#allocation2 + $0x20] sm:$0xff] %v1126
    %1154 = vst [vmem:[#allocation2 + $0x28] sm:$0xff] %v1145
    %1155 = vst [vmem:[#allocation2 + $0x30] sm:$0xff] %v1128
    %1156 = vst [vmem:[#allocation2 + $0x38] sm:$0xff] %v1147
    %s1157 = scalar_lea.vmem %s0, 32
    %v1158 = vld [vmem:[%s1157] sm:$0xff]
    %v1159 = vld [vmem:[%s1157 + $0x8] sm:$0xff]
    %v1160 = vld [vmem:[%s1157 + $0x10] sm:$0xff]
    %v1161 = vld [vmem:[%s1157 + $0x18] sm:$0xff]
    %v1166 = vunpack.c.l.b16 %v1158
    %v1167 = vunpack.c.h.b16 %v1158
    %v1168 = vunpack.c.l.b16 %v1159
    %v1169 = vunpack.c.h.b16 %v1159
    %v1170 = vunpack.c.l.b16 %v1160
    %v1171 = vunpack.c.h.b16 %v1160
    %v1172 = vunpack.c.l.b16 %v1161
    %v1173 = vunpack.c.h.b16 %v1161
    %v1174 = vpack.c.b16 %v1168, %v1166
    %v1175 = vpack.c.b16 %v1169, %v1167
    %v1176 = vpack.c.b16 %v1172, %v1170
    %v1177 = vpack.c.b16 %v1173, %v1171
    %1182 = vmatpush.bf16.msra.mxu0 0
    %1183 = vmatpush.bf16.msra.mxu0 0
    %1184 = vmatpush.bf16.msra.mxu0 0
    %1185 = vmatpush.bf16.msra.mxu0 0
    %1186 = vmatpush.bf16.msra.mxu0 0
    %1187 = vmatpush.bf16.msra.mxu0 0
    %1188 = vmatpush.bf16.msra.mxu0 %v1176
    %1189 = vmatpush.bf16.msra.mxu0 %v1174
    %1190 = vmatmul.bf16.gmra.mxu0 %v121
    %v1191 = vpop.f32.mrf.mxu0
    %v1192 = vadd.f32 0.0, %v1191
    %v1193 = vpop.f32.mrf.mxu0
    %v1194 = vadd.f32 0.0, %v1193
    %1195 = vmatmul.bf16.gmra.mxu0 %v124
    %v1196 = vpop.f32.mrf.mxu0
    %v1197 = vadd.f32 0.0, %v1196
    %v1198 = vpop.f32.mrf.mxu0
    %v1199 = vadd.f32 0.0, %v1198
    %1200 = vdwg.mxu0
    %1201 = vmatpush.bf16.msra.mxu0 0
    %1202 = vmatpush.bf16.msra.mxu0 0
    %1203 = vmatpush.bf16.msra.mxu0 0
    %1204 = vmatpush.bf16.msra.mxu0 0
    %1205 = vmatpush.bf16.msra.mxu0 0
    %1206 = vmatpush.bf16.msra.mxu0 0
    %1207 = vmatpush.bf16.msra.mxu0 %v1177
    %1208 = vmatpush.bf16.msra.mxu0 %v1175
    %1209 = vmatmul.bf16.gmra.mxu0 %v121
    %v1210 = vpop.f32.mrf.mxu0
    %v1211 = vadd.f32 0.0, %v1210
    %v1212 = vpop.f32.mrf.mxu0
    %v1213 = vadd.f32 0.0, %v1212
    %1214 = vmatmul.bf16.gmra.mxu0 %v124
    %v1215 = vpop.f32.mrf.mxu0
    %v1216 = vadd.f32 0.0, %v1215
    %v1217 = vpop.f32.mrf.mxu0
    %v1218 = vadd.f32 0.0, %v1217
    %1219 = vdwg.mxu0
    %v1220 = vmul.f32 %v1192, 0.25
    %v1221 = vmul.f32 %v1211, 0.25
    %v1222 = vmul.f32 %v1194, 0.25
    %v1223 = vmul.f32 %v1213, 0.25
    %v1224 = vmul.f32 %v1197, 0.25
    %v1225 = vmul.f32 %v1216, 0.25
    %v1226 = vmul.f32 %v1199, 0.25
    %v1227 = vmul.f32 %v1218, 0.25
    %1228 = vmatpush.bf16.msra.mxu0 %v243
    %1229 = vmatpush.bf16.msra.mxu0 %v242
    %1230 = vmatpush.bf16.msra.mxu0 %v241
    %1231 = vmatpush.bf16.msra.mxu0 %v240
    %1232 = vmatpush.bf16.msra.mxu0 %v239
    %1233 = vmatpush.bf16.msra.mxu0 %v238
    %1234 = vmatpush.bf16.msra.mxu0 %v237
    %1235 = vmatpush.bf16.msra.mxu0 %v236
    %1236 = vmatmul.bf16.gmra.mxu0 %v1174
    %v1237 = vpop.f32.mrf.mxu0
    %v1238 = vadd.f32 0.0, %v1237
    %v1239 = vpop.f32.mrf.mxu0
    %v1240 = vadd.f32 0.0, %v1239
    %1241 = vmatmul.bf16.gmra.mxu0 %v1176
    %v1242 = vpop.f32.mrf.mxu0
    %v1243 = vadd.f32 0.0, %v1242
    %v1244 = vpop.f32.mrf.mxu0
    %v1245 = vadd.f32 0.0, %v1244
    %1246 = vdwg.mxu0
    %1247 = vmatpush.bf16.msra.mxu0 %v251
    %1248 = vmatpush.bf16.msra.mxu0 %v250
    %1249 = vmatpush.bf16.msra.mxu0 %v249
    %1250 = vmatpush.bf16.msra.mxu0 %v248
    %1251 = vmatpush.bf16.msra.mxu0 %v247
    %1252 = vmatpush.bf16.msra.mxu0 %v246
    %1253 = vmatpush.bf16.msra.mxu0 %v245
    %1254 = vmatpush.bf16.msra.mxu0 %v244
    %1255 = vmatmul.bf16.gmra.mxu0 %v1175
    %v1256 = vpop.f32.mrf.mxu0
    %v1257 = vadd.f32 %v1238, %v1256
    %v1258 = vpop.f32.mrf.mxu0
    %v1259 = vadd.f32 %v1240, %v1258
    %1260 = vmatmul.bf16.gmra.mxu0 %v1177
    %v1261 = vpop.f32.mrf.mxu0
    %v1262 = vadd.f32 %v1243, %v1261
    %v1263 = vpop.f32.mrf.mxu0
    %v1264 = vadd.f32 %v1245, %v1263
    %1265 = vdwg.mxu0
    %v1266 = vsel %vm306, %v1257, 0.0
    %v1267 = vsel %vm306, %v1259, 0.0
    %v1268 = vadd.f32 %v1266, %v1267
    %v1269 = vsel %vm306, %v1262, 0.0
    %v1270 = vadd.f32 %v1268, %v1269
    %v1271 = vsel %vm306, %v1264, 0.0
    %v1272 = vadd.f32 %v1270, %v1271
    %v1273 = vrot.slane %v1272, 4
    %v1274 = vadd.f32 %v1272, %v1273
    %v1275 = vrot.slane %v1274, 2
    %v1276 = vadd.f32 %v1274, %v1275
    %v1277 = vrot.slane %v1276, 1
    %v1278 = vadd.f32 %v1276, %v1277
    %v1279 = vmul.f32 %v1278, %v326
    %v1280 = vsub.f32 %v1257, %v1279
    %v1281 = vsub.f32 %v1259, %v1279
    %v1282 = vsub.f32 %v1262, %v1279
    %v1283 = vsub.f32 %v1264, %v1279
    %v1284 = vmul.f32 %v1280, %v1280
    %v1285 = vmul.f32 %v1281, %v1281
    %v1286 = vmul.f32 %v1282, %v1282
    %v1287 = vmul.f32 %v1283, %v1283
    %v1288 = vsel %vm306, %v1284, 0.0
    %v1289 = vsel %vm306, %v1285, 0.0
    %v1290 = vadd.f32 %v1288, %v1289
    %v1291 = vsel %vm306, %v1286, 0.0
    %v1292 = vadd.f32 %v1290, %v1291
    %v1293 = vsel %vm306, %v1287, 0.0
    %v1294 = vadd.f32 %v1292, %v1293
    %v1295 = vrot.slane %v1294, 4
    %v1296 = vadd.f32 %v1294, %v1295
    %v1297 = vrot.slane %v1296, 2
    %v1298 = vadd.f32 %v1296, %v1297
    %v1299 = vrot.slane %v1298, 1
    %v1300 = vadd.f32 %v1298, %v1299
    %v1301 = vmul.f32 %v1300, %v326
    %v1302 = vadd.f32 %v1301, 1e-05
    %v1303 = vrsqrt.pop %v1302
    %v1304 = vmul.f32 %v1303, %v1302
    %v1305 = vmul.f32 %v1304, %v1303
    %v1306 = vmul.f32 0.5, %v1305
    %v1307 = vsub.f32 1.5, %v1306
    %v1308 = vmul.f32 %v1303, %v1307
    %vm1309 = vweird.f32 %v1302
    %vm1310 = vweird.f32 %v1303
    %vm1311 = vmor %vm1309, %vm1310
    %v1312 = vsel %vm1311, %v1303, %v1308
    %v1313 = vmul.f32 %v1280, %v1312
    %v1314 = vmul.f32 %v1281, %v1312
    %v1315 = vmul.f32 %v1282, %v1312
    %v1316 = vmul.f32 %v1283, %v1312
    %v1317 = vpack.c.bf16 %v1314, %v1313
    %v1318 = vpack.c.bf16 %v1316, %v1315
    %1319 = vmatpush.bf16.msra.mxu0 0
    %1320 = vmatpush.bf16.msra.mxu0 0
    %1321 = vmatpush.bf16.msra.mxu0 0
    %1322 = vmatpush.bf16.msra.mxu0 0
    %1323 = vmatpush.bf16.msra.mxu0 0
    %1324 = vmatpush.bf16.msra.mxu0 0
    %1325 = vmatpush.bf16.msra.mxu0 %v1318
    %1326 = vmatpush.bf16.msra.mxu0 %v1317
    %1327 = vmatmul.bf16.gmra.mxu0 %v428
    %v1328 = vpop.f32.mrf.mxu0
    %v1329 = vadd.f32 %v370, %v1328
    %v1330 = vpop.f32.mrf.mxu0
    %v1331 = vadd.f32 %v375, %v1330
    %1332 = vmatmul.bf16.gmra.mxu0 %v431
    %v1333 = vpop.f32.mrf.mxu0
    %v1334 = vadd.f32 %v380, %v1333
    %v1335 = vpop.f32.mrf.mxu0
    %v1336 = vadd.f32 %v385, %v1335
    %1337 = vmatmul.bf16.gmra.mxu0 %v434
    %v1338 = vpop.f32.mrf.mxu0
    %v1339 = vadd.f32 %v390, %v1338
    %v1340 = vpop.f32.mrf.mxu0
    %v1341 = vadd.f32 %v395, %v1340
    %1342 = vmatmul.bf16.gmra.mxu0 %v437
    %v1343 = vpop.f32.mrf.mxu0
    %v1344 = vadd.f32 %v400, %v1343
    %v1345 = vpop.f32.mrf.mxu0
    %v1346 = vadd.f32 %v405, %v1345
    %1347 = vdwg.mxu0
    %v1348 = vpack.c.bf16 %v1221, %v1220
    %v1349 = vpack.c.bf16 %v1223, %v1222
    %v1350 = vpack.c.bf16 %v1225, %v1224
    %v1351 = vpack.c.bf16 %v1227, %v1226
    %v1352 = vpack.c.bf16 %v1329, %v1329
    %v1353 = vpack.c.bf16 %v1331, %v1331
    %v1354 = vpack.c.bf16 %v1334, %v1334
    %v1355 = vpack.c.bf16 %v1336, %v1336
    %v1356 = vpack.c.bf16 %v1339, %v1339
    %v1357 = vpack.c.bf16 %v1341, %v1341
    %v1358 = vpack.c.bf16 %v1344, %v1344
    %v1359 = vpack.c.bf16 %v1346, %v1346
    %v1362 = vunpack.c.l.b16 %v1352
    %v1363 = vunpack.c.l.b16 %v1353
    %v1364 = vpack.c.b16 %v1363, %v1362
    %1366 = vxpose.xlu0.c.b16.start [1/8] %v1364, 128
    %1367 = vxpose.xlu0.c.b16.cont [2/8] 0, 128
    %1368 = vxpose.xlu0.c.b16.cont [3/8] 0, 128
    %1369 = vxpose.xlu0.c.b16.cont [4/8] 0, 128
    %1370 = vxpose.xlu0.c.b16.cont [5/8] 0, 128
    %1371 = vxpose.xlu0.c.b16.cont [6/8] 0, 128
    %1372 = vxpose.xlu0.c.b16.cont [7/8] 0, 128
    %1373 = vxpose.xlu0.c.b16.end [8/8] 0, 128
    %v1374 = vpop.trf.xlu0
    %v1375 = vpop.trf.xlu0
    %v1376 = vpop.trf.xlu0
    %v1377 = vpop.trf.xlu0
    %v1378 = vpop.trf.xlu0
    %v1379 = vpop.trf.xlu0
    %v1380 = vpop.trf.xlu0
    %v1381 = vpop.trf.xlu0
    %v1384 = vunpack.c.l.b16 %v1348
    %v1385 = vunpack.c.h.b16 %v1348
    %v1386 = vunpack.c.l.b16 %v1349
    %v1387 = vunpack.c.h.b16 %v1349
    %v1388 = vpack.c.b16 %v1386, %v1384
    %v1389 = vpack.c.b16 %v1387, %v1385
    %v1393 = vsel %vm512, %v1374, 0
    %v1396 = vsel %vm512, %v1375, 0
    %v1399 = vsel %vm512, %v1376, 0
    %v1402 = vsel %vm512, %v1377, 0
    %1404 = vmatpush.bf16.msra.mxu0 0
    %1405 = vmatpush.bf16.msra.mxu0 0
    %1406 = vmatpush.bf16.msra.mxu0 0
    %1407 = vmatpush.bf16.msra.mxu0 0
    %1408 = vmatpush.bf16.msra.mxu0 0
    %1409 = vmatpush.bf16.msra.mxu0 0
    %1410 = vmatpush.bf16.msra.mxu0 0
    %1411 = vmatpush.bf16.msra.mxu0 %v1388
    %1412 = vmatmul.bf16.gmra.mxu0 %v1393
    %v1413 = vpop.f32.mrf.mxu0
    %v1414 = vadd.f32 0.0, %v1413
    %v1415 = vpop.f32.mrf.mxu0
    %v1416 = vadd.f32 0.0, %v1415
    %1417 = vmatmul.bf16.gmra.mxu0 %v1396
    %v1418 = vpop.f32.mrf.mxu0
    %v1419 = vadd.f32 0.0, %v1418
    %v1420 = vpop.f32.mrf.mxu0
    %v1421 = vadd.f32 0.0, %v1420
    %1422 = vmatmul.bf16.gmra.mxu0 %v1399
    %v1423 = vpop.f32.mrf.mxu0
    %v1424 = vadd.f32 0.0, %v1423
    %v1425 = vpop.f32.mrf.mxu0
    %v1426 = vadd.f32 0.0, %v1425
    %1427 = vmatmul.bf16.gmra.mxu0 %v1402
    %v1428 = vpop.f32.mrf.mxu0
    %v1429 = vadd.f32 0.0, %v1428
    %v1430 = vpop.f32.mrf.mxu0
    %1431 = vdwg.mxu0
    %1432 = vmatpush.bf16.msra.mxu0 0
    %1433 = vmatpush.bf16.msra.mxu0 0
    %1434 = vmatpush.bf16.msra.mxu0 0
    %1435 = vmatpush.bf16.msra.mxu0 0
    %1436 = vmatpush.bf16.msra.mxu0 0
    %1437 = vmatpush.bf16.msra.mxu0 0
    %1438 = vmatpush.bf16.msra.mxu0 0
    %1439 = vmatpush.bf16.msra.mxu0 %v1389
    %1440 = vmatmul.bf16.gmra.mxu0 %v1393
    %v1441 = vpop.f32.mrf.mxu0
    %v1442 = vadd.f32 0.0, %v1441
    %v1443 = vpop.f32.mrf.mxu0
    %v1444 = vadd.f32 0.0, %v1443
    %1445 = vmatmul.bf16.gmra.mxu0 %v1396
    %v1446 = vpop.f32.mrf.mxu0
    %v1447 = vadd.f32 0.0, %v1446
    %v1448 = vpop.f32.mrf.mxu0
    %v1449 = vadd.f32 0.0, %v1448
    %1450 = vmatmul.bf16.gmra.mxu0 %v1399
    %v1451 = vpop.f32.mrf.mxu0
    %v1452 = vadd.f32 0.0, %v1451
    %v1453 = vpop.f32.mrf.mxu0
    %v1454 = vadd.f32 0.0, %v1453
    %1455 = vmatmul.bf16.gmra.mxu0 %v1402
    %v1456 = vpop.f32.mrf.mxu0
    %v1457 = vadd.f32 0.0, %v1456
    %v1458 = vpop.f32.mrf.mxu0
    %1459 = vdwg.mxu0
    %v1462 = vunpack.c.l.b16 %v1354
    %v1463 = vunpack.c.l.b16 %v1355
    %v1464 = vpack.c.b16 %v1463, %v1462
    %1466 = vxpose.xlu0.c.b16.start [1/8] %v1464, 128
    %1467 = vxpose.xlu0.c.b16.cont [2/8] 0, 128
    %1468 = vxpose.xlu0.c.b16.cont [3/8] 0, 128
    %1469 = vxpose.xlu0.c.b16.cont [4/8] 0, 128
    %1470 = vxpose.xlu0.c.b16.cont [5/8] 0, 128
    %1471 = vxpose.xlu0.c.b16.cont [6/8] 0, 128
    %1472 = vxpose.xlu0.c.b16.cont [7/8] 0, 128
    %1473 = vxpose.xlu0.c.b16.end [8/8] 0, 128
    %v1474 = vpop.trf.xlu0
    %v1475 = vpop.trf.xlu0
    %v1476 = vpop.trf.xlu0
    %v1477 = vpop.trf.xlu0
    %v1478 = vpop.trf.xlu0
    %v1479 = vpop.trf.xlu0
    %v1480 = vpop.trf.xlu0
    %v1481 = vpop.trf.xlu0
    %v1484 = vunpack.c.l.b16 %v1350
    %v1485 = vunpack.c.h.b16 %v1350
    %v1486 = vunpack.c.l.b16 %v1351
    %v1487 = vunpack.c.h.b16 %v1351
    %v1488 = vpack.c.b16 %v1486, %v1484
    %v1489 = vpack.c.b16 %v1487, %v1485
    %v1493 = vsel %vm512, %v1474, 0
    %v1496 = vsel %vm512, %v1475, 0
    %v1499 = vsel %vm512, %v1476, 0
    %v1502 = vsel %vm512, %v1477, 0
    %1504 = vmatpush.bf16.msra.mxu0 0
    %1505 = vmatpush.bf16.msra.mxu0 0
    %1506 = vmatpush.bf16.msra.mxu0 0
    %1507 = vmatpush.bf16.msra.mxu0 0
    %1508 = vmatpush.bf16.msra.mxu0 0
    %1509 = vmatpush.bf16.msra.mxu0 0
    %1510 = vmatpush.bf16.msra.mxu0 0
    %1511 = vmatpush.bf16.msra.mxu0 %v1488
    %1512 = vmatmul.bf16.gmra.mxu0 %v1493
    %v1513 = vpop.f32.mrf.mxu0
    %v1514 = vadd.f32 0.0, %v1513
    %v1515 = vpop.f32.mrf.mxu0
    %v1516 = vadd.f32 0.0, %v1515
    %1517 = vmatmul.bf16.gmra.mxu0 %v1496
    %v1518 = vpop.f32.mrf.mxu0
    %v1519 = vadd.f32 0.0, %v1518
    %v1520 = vpop.f32.mrf.mxu0
    %v1521 = vadd.f32 0.0, %v1520
    %1522 = vmatmul.bf16.gmra.mxu0 %v1499
    %v1523 = vpop.f32.mrf.mxu0
    %v1524 = vadd.f32 0.0, %v1523
    %v1525 = vpop.f32.mrf.mxu0
    %v1526 = vadd.f32 0.0, %v1525
    %1527 = vmatmul.bf16.gmra.mxu0 %v1502
    %v1528 = vpop.f32.mrf.mxu0
    %v1529 = vadd.f32 0.0, %v1528
    %v1530 = vpop.f32.mrf.mxu0
    %1531 = vdwg.mxu0
    %1532 = vmatpush.bf16.msra.mxu0 0
    %1533 = vmatpush.bf16.msra.mxu0 0
    %1534 = vmatpush.bf16.msra.mxu0 0
    %1535 = vmatpush.bf16.msra.mxu0 0
    %1536 = vmatpush.bf16.msra.mxu0 0
    %1537 = vmatpush.bf16.msra.mxu0 0
    %1538 = vmatpush.bf16.msra.mxu0 0
    %1539 = vmatpush.bf16.msra.mxu0 %v1489
    %1540 = vmatmul.bf16.gmra.mxu0 %v1493
    %v1541 = vpop.f32.mrf.mxu0
    %v1542 = vadd.f32 0.0, %v1541
    %v1543 = vpop.f32.mrf.mxu0
    %v1544 = vadd.f32 0.0, %v1543
    %1545 = vmatmul.bf16.gmra.mxu0 %v1496
    %v1546 = vpop.f32.mrf.mxu0
    %v1547 = vadd.f32 0.0, %v1546
    %v1548 = vpop.f32.mrf.mxu0
    %v1549 = vadd.f32 0.0, %v1548
    %1550 = vmatmul.bf16.gmra.mxu0 %v1499
    %v1551 = vpop.f32.mrf.mxu0
    %v1552 = vadd.f32 0.0, %v1551
    %v1553 = vpop.f32.mrf.mxu0
    %v1554 = vadd.f32 0.0, %v1553
    %1555 = vmatmul.bf16.gmra.mxu0 %v1502
    %v1556 = vpop.f32.mrf.mxu0
    %v1557 = vadd.f32 0.0, %v1556
    %v1558 = vpop.f32.mrf.mxu0
    %1559 = vdwg.mxu0
    %v1560 = vmax.f32 %v1414, %v1416
    %v1561 = vmax.f32 %v1560, %v1419
    %v1562 = vmax.f32 %v1561, %v1421
    %v1563 = vmax.f32 %v1562, %v1424
    %v1564 = vmax.f32 %v1563, %v1426
    %v1565 = vsel %vm686, %v1429, -inf
    %v1566 = vmax.f32 %v1564, %v1565
    %v1567 = vrot.slane %v1566, 4
    %v1568 = vmax.f32 %v1566, %v1567
    %v1569 = vrot.slane %v1568, 2
    %v1570 = vmax.f32 %v1568, %v1569
    %v1571 = vrot.slane %v1570, 1
    %v1572 = vmax.f32 %v1570, %v1571
    %v1573 = vmax.f32 %v1442, %v1444
    %v1574 = vmax.f32 %v1573, %v1447
    %v1575 = vmax.f32 %v1574, %v1449
    %v1576 = vmax.f32 %v1575, %v1452
    %v1577 = vmax.f32 %v1576, %v1454
    %v1578 = vsel %vm686, %v1457, -inf
    %v1579 = vmax.f32 %v1577, %v1578
    %v1580 = vrot.slane %v1579, 4
    %v1581 = vmax.f32 %v1579, %v1580
    %v1582 = vrot.slane %v1581, 2
    %v1583 = vmax.f32 %v1581, %v1582
    %v1584 = vrot.slane %v1583, 1
    %v1585 = vmax.f32 %v1583, %v1584
    %v1586 = vmax.f32 %v1514, %v1516
    %v1587 = vmax.f32 %v1586, %v1519
    %v1588 = vmax.f32 %v1587, %v1521
    %v1589 = vmax.f32 %v1588, %v1524
    %v1590 = vmax.f32 %v1589, %v1526
    %v1591 = vsel %vm686, %v1529, -inf
    %v1592 = vmax.f32 %v1590, %v1591
    %v1593 = vrot.slane %v1592, 4
    %v1594 = vmax.f32 %v1592, %v1593
    %v1595 = vrot.slane %v1594, 2
    %v1596 = vmax.f32 %v1594, %v1595
    %v1597 = vrot.slane %v1596, 1
    %v1598 = vmax.f32 %v1596, %v1597
    %v1599 = vmax.f32 %v1542, %v1544
    %v1600 = vmax.f32 %v1599, %v1547
    %v1601 = vmax.f32 %v1600, %v1549
    %v1602 = vmax.f32 %v1601, %v1552
    %v1603 = vmax.f32 %v1602, %v1554
    %v1604 = vsel %vm686, %v1557, -inf
    %v1605 = vmax.f32 %v1603, %v1604
    %v1606 = vrot.slane %v1605, 4
    %v1607 = vmax.f32 %v1605, %v1606
    %v1608 = vrot.slane %v1607, 2
    %v1609 = vmax.f32 %v1607, %v1608
    %v1610 = vrot.slane %v1609, 1
    %v1611 = vmax.f32 %v1609, %v1610
    %v1612 = vsub.f32 %v1414, %v1572
    %v1613 = vsub.f32 %v1442, %v1585
    %v1614 = vsub.f32 %v1416, %v1572
    %v1615 = vsub.f32 %v1444, %v1585
    %v1616 = vsub.f32 %v1419, %v1572
    %v1617 = vsub.f32 %v1447, %v1585
    %v1618 = vsub.f32 %v1421, %v1572
    %v1619 = vsub.f32 %v1449, %v1585
    %v1620 = vsub.f32 %v1424, %v1572
    %v1621 = vsub.f32 %v1452, %v1585
    %v1622 = vsub.f32 %v1426, %v1572
    %v1623 = vsub.f32 %v1454, %v1585
    %v1624 = vsub.f32 %v1429, %v1572
    %v1625 = vsub.f32 %v1457, %v1585
    %v1626 = vsub.f32 %v1514, %v1598
    %v1627 = vsub.f32 %v1542, %v1611
    %v1628 = vsub.f32 %v1516, %v1598
    %v1629 = vsub.f32 %v1544, %v1611
    %v1630 = vsub.f32 %v1519, %v1598
    %v1631 = vsub.f32 %v1547, %v1611
    %v1632 = vsub.f32 %v1521, %v1598
    %v1633 = vsub.f32 %v1549, %v1611
    %v1634 = vsub.f32 %v1524, %v1598
    %v1635 = vsub.f32 %v1552, %v1611
    %v1636 = vsub.f32 %v1526, %v1598
    %v1637 = vsub.f32 %v1554, %v1611
    %v1638 = vsub.f32 %v1529, %v1598
    %v1639 = vsub.f32 %v1557, %v1611
    %v1640 = vmul.f32 %v1612, 1.442695
    %v1641 = vpow.pop %v1640
    %v1642 = vmul.f32 %v1613, 1.442695
    %v1643 = vpow.pop %v1642
    %v1644 = vmul.f32 %v1614, 1.442695
    %v1645 = vpow.pop %v1644
    %v1646 = vmul.f32 %v1615, 1.442695
    %v1647 = vpow.pop %v1646
    %v1648 = vmul.f32 %v1616, 1.442695
    %v1649 = vpow.pop %v1648
    %v1650 = vmul.f32 %v1617, 1.442695
    %v1651 = vpow.pop %v1650
    %v1652 = vmul.f32 %v1618, 1.442695
    %v1653 = vpow.pop %v1652
    %v1654 = vmul.f32 %v1619, 1.442695
    %v1655 = vpow.pop %v1654
    %v1656 = vmul.f32 %v1620, 1.442695
    %v1657 = vpow.pop %v1656
    %v1658 = vmul.f32 %v1621, 1.442695
    %v1659 = vpow.pop %v1658
    %v1660 = vmul.f32 %v1622, 1.442695
    %v1661 = vpow.pop %v1660
    %v1662 = vmul.f32 %v1623, 1.442695
    %v1663 = vpow.pop %v1662
    %v1664 = vmul.f32 %v1624, 1.442695
    %v1665 = vpow.pop %v1664
    %v1666 = vmul.f32 %v1625, 1.442695
    %v1667 = vpow.pop %v1666
    %v1668 = vmul.f32 %v1626, 1.442695
    %v1669 = vpow.pop %v1668
    %v1670 = vmul.f32 %v1627, 1.442695
    %v1671 = vpow.pop %v1670
    %v1672 = vmul.f32 %v1628, 1.442695
    %v1673 = vpow.pop %v1672
    %v1674 = vmul.f32 %v1629, 1.442695
    %v1675 = vpow.pop %v1674
    %v1676 = vmul.f32 %v1630, 1.442695
    %v1677 = vpow.pop %v1676
    %v1678 = vmul.f32 %v1631, 1.442695
    %v1679 = vpow.pop %v1678
    %v1680 = vmul.f32 %v1632, 1.442695
    %v1681 = vpow.pop %v1680
    %v1682 = vmul.f32 %v1633, 1.442695
    %v1683 = vpow.pop %v1682
    %v1684 = vmul.f32 %v1634, 1.442695
    %v1685 = vpow.pop %v1684
    %v1686 = vmul.f32 %v1635, 1.442695
    %v1687 = vpow.pop %v1686
    %v1688 = vmul.f32 %v1636, 1.442695
    %v1689 = vpow.pop %v1688
    %v1690 = vmul.f32 %v1637, 1.442695
    %v1691 = vpow.pop %v1690
    %v1692 = vmul.f32 %v1638, 1.442695
    %v1693 = vpow.pop %v1692
    %v1694 = vmul.f32 %v1639, 1.442695
    %v1695 = vpow.pop %v1694
    %v1696 = vadd.f32 %v1641, %v1645
    %v1697 = vadd.f32 %v1696, %v1649
    %v1698 = vadd.f32 %v1697, %v1653
    %v1699 = vadd.f32 %v1698, %v1657
    %v1700 = vadd.f32 %v1699, %v1661
    %v1701 = vsel %vm686, %v1665, 0.0
    %v1702 = vadd.f32 %v1700, %v1701
    %v1703 = vrot.slane %v1702, 4
    %v1704 = vadd.f32 %v1702, %v1703
    %v1705 = vrot.slane %v1704, 2
    %v1706 = vadd.f32 %v1704, %v1705
    %v1707 = vrot.slane %v1706, 1
    %v1708 = vadd.f32 %v1706, %v1707
    %v1709 = vadd.f32 %v1643, %v1647
    %v1710 = vadd.f32 %v1709, %v1651
    %v1711 = vadd.f32 %v1710, %v1655
    %v1712 = vadd.f32 %v1711, %v1659
    %v1713 = vadd.f32 %v1712, %v1663
    %v1714 = vsel %vm686, %v1667, 0.0
    %v1715 = vadd.f32 %v1713, %v1714
    %v1716 = vrot.slane %v1715, 4
    %v1717 = vadd.f32 %v1715, %v1716
    %v1718 = vrot.slane %v1717, 2
    %v1719 = vadd.f32 %v1717, %v1718
    %v1720 = vrot.slane %v1719, 1
    %v1721 = vadd.f32 %v1719, %v1720
    %v1722 = vadd.f32 %v1669, %v1673
    %v1723 = vadd.f32 %v1722, %v1677
    %v1724 = vadd.f32 %v1723, %v1681
    %v1725 = vadd.f32 %v1724, %v1685
    %v1726 = vadd.f32 %v1725, %v1689
    %v1727 = vsel %vm686, %v1693, 0.0
    %v1728 = vadd.f32 %v1726, %v1727
    %v1729 = vrot.slane %v1728, 4
    %v1730 = vadd.f32 %v1728, %v1729
    %v1731 = vrot.slane %v1730, 2
    %v1732 = vadd.f32 %v1730, %v1731
    %v1733 = vrot.slane %v1732, 1
    %v1734 = vadd.f32 %v1732, %v1733
    %v1735 = vadd.f32 %v1671, %v1675
    %v1736 = vadd.f32 %v1735, %v1679
    %v1737 = vadd.f32 %v1736, %v1683
    %v1738 = vadd.f32 %v1737, %v1687
    %v1739 = vadd.f32 %v1738, %v1691
    %v1740 = vsel %vm686, %v1695, 0.0
    %v1741 = vadd.f32 %v1739, %v1740
    %v1742 = vrot.slane %v1741, 4
    %v1743 = vadd.f32 %v1741, %v1742
    %v1744 = vrot.slane %v1743, 2
    %v1745 = vadd.f32 %v1743, %v1744
    %v1746 = vrot.slane %v1745, 1
    %v1747 = vadd.f32 %v1745, %v1746
    %v1748 = vrcp.pop %v1708
    %v1749 = vrcp.pop %v1721
    %v1750 = vrcp.pop %v1734
    %v1751 = vrcp.pop %v1747
    %v1752 = vmul.f32 %v1641, %v1748
    %v1753 = vmul.f32 %v1643, %v1749
    %v1754 = vmul.f32 %v1645, %v1748
    %v1755 = vmul.f32 %v1647, %v1749
    %v1756 = vmul.f32 %v1649, %v1748
    %v1757 = vmul.f32 %v1651, %v1749
    %v1758 = vmul.f32 %v1653, %v1748
    %v1759 = vmul.f32 %v1655, %v1749
    %v1760 = vmul.f32 %v1657, %v1748
    %v1761 = vmul.f32 %v1659, %v1749
    %v1762 = vmul.f32 %v1661, %v1748
    %v1763 = vmul.f32 %v1663, %v1749
    %v1764 = vmul.f32 %v1665, %v1748
    %v1765 = vmul.f32 %v1667, %v1749
    %v1766 = vmul.f32 %v1669, %v1750
    %v1767 = vmul.f32 %v1671, %v1751
    %v1768 = vmul.f32 %v1673, %v1750
    %v1769 = vmul.f32 %v1675, %v1751
    %v1770 = vmul.f32 %v1677, %v1750
    %v1771 = vmul.f32 %v1679, %v1751
    %v1772 = vmul.f32 %v1681, %v1750
    %v1773 = vmul.f32 %v1683, %v1751
    %v1774 = vmul.f32 %v1685, %v1750
    %v1775 = vmul.f32 %v1687, %v1751
    %v1776 = vmul.f32 %v1689, %v1750
    %v1777 = vmul.f32 %v1691, %v1751
    %v1778 = vmul.f32 %v1693, %v1750
    %v1779 = vmul.f32 %v1695, %v1751
    %v1780 = vpack.c.bf16 %v1753, %v1752
    %v1781 = vpack.c.bf16 %v1755, %v1754
    %v1782 = vpack.c.bf16 %v1757, %v1756
    %v1783 = vpack.c.bf16 %v1759, %v1758
    %v1784 = vpack.c.bf16 %v1761, %v1760
    %v1785 = vpack.c.bf16 %v1763, %v1762
    %v1786 = vpack.c.bf16 %v1765, %v1764
    %v1787 = vpack.c.bf16 %v1767, %v1766
    %v1788 = vpack.c.bf16 %v1769, %v1768
    %v1789 = vpack.c.bf16 %v1771, %v1770
    %v1790 = vpack.c.bf16 %v1773, %v1772
    %v1791 = vpack.c.bf16 %v1775, %v1774
    %v1792 = vpack.c.bf16 %v1777, %v1776
    %v1793 = vpack.c.bf16 %v1779, %v1778
    %v1796 = vunpack.c.l.b16 %v1356
    %v1797 = vunpack.c.l.b16 %v1357
    %v1798 = vpack.c.b16 %v1797, %v1796
    %v1806 = vunpack.c.l.b16 %v1780
    %v1807 = vunpack.c.h.b16 %v1780
    %v1808 = vunpack.c.l.b16 %v1781
    %v1809 = vunpack.c.h.b16 %v1781
    %v1810 = vunpack.c.l.b16 %v1782
    %v1811 = vunpack.c.h.b16 %v1782
    %v1812 = vunpack.c.l.b16 %v1783
    %v1813 = vunpack.c.h.b16 %v1783
    %v1814 = vunpack.c.l.b16 %v1784
    %v1815 = vunpack.c.h.b16 %v1784
    %v1816 = vunpack.c.l.b16 %v1785
    %v1817 = vunpack.c.h.b16 %v1785
    %v1818 = vunpack.c.l.b16 %v1786
    %v1819 = vunpack.c.h.b16 %v1786
    %v1820 = vpack.c.b16 %v1808, %v1806
    %v1821 = vpack.c.b16 %v1809, %v1807
    %v1822 = vpack.c.b16 %v1812, %v1810
    %v1823 = vpack.c.b16 %v1813, %v1811
    %v1824 = vpack.c.b16 %v1816, %v1814
    %v1825 = vpack.c.b16 %v1817, %v1815
    %v1826 = vpack.c.b16 %v1818, %v1818
    %v1827 = vpack.c.b16 %v1819, %v1819
    %v1835 = vsel %vm306, %v1798, 0
    %v1838 = vsel %vm959, %v1826, 0
    %v1841 = vsel %vm959, %v1827, 0
    %1843 = vmatpush.bf16.msra.mxu0 0
    %1844 = vmatpush.bf16.msra.mxu0 0
    %1845 = vmatpush.bf16.msra.mxu0 0
    %1846 = vmatpush.bf16.msra.mxu0 0
    %1847 = vmatpush.bf16.msra.mxu0 %v1838
    %1848 = vmatpush.bf16.msra.mxu0 %v1824
    %1849 = vmatpush.bf16.msra.mxu0 %v1822
    %1850 = vmatpush.bf16.msra.mxu0 %v1820
    %1851 = vmatmul.bf16.gmra.mxu0 %v1835
    %v1852 = vpop.f32.mrf.mxu0
    %v1853 = vadd.f32 0.0, %v1852
    %v1854 = vpop.f32.mrf.mxu0
    %v1855 = vadd.f32 0.0, %v1854
    %1856 = vdwg.mxu0
    %1857 = vmatpush.bf16.msra.mxu0 0
    %1858 = vmatpush.bf16.msra.mxu0 0
    %1859 = vmatpush.bf16.msra.mxu0 0
    %1860 = vmatpush.bf16.msra.mxu0 0
    %1861 = vmatpush.bf16.msra.mxu0 %v1841
    %1862 = vmatpush.bf16.msra.mxu0 %v1825
    %1863 = vmatpush.bf16.msra.mxu0 %v1823
    %1864 = vmatpush.bf16.msra.mxu0 %v1821
    %1865 = vmatmul.bf16.gmra.mxu0 %v1835
    %v1866 = vpop.f32.mrf.mxu0
    %v1867 = vadd.f32 0.0, %v1866
    %v1868 = vpop.f32.mrf.mxu0
    %v1869 = vadd.f32 0.0, %v1868
    %1870 = vdwg.mxu0
    %v1873 = vunpack.c.l.b16 %v1358
    %v1874 = vunpack.c.l.b16 %v1359
    %v1875 = vpack.c.b16 %v1874, %v1873
    %v1883 = vunpack.c.l.b16 %v1787
    %v1884 = vunpack.c.h.b16 %v1787
    %v1885 = vunpack.c.l.b16 %v1788
    %v1886 = vunpack.c.h.b16 %v1788
    %v1887 = vunpack.c.l.b16 %v1789
    %v1888 = vunpack.c.h.b16 %v1789
    %v1889 = vunpack.c.l.b16 %v1790
    %v1890 = vunpack.c.h.b16 %v1790
    %v1891 = vunpack.c.l.b16 %v1791
    %v1892 = vunpack.c.h.b16 %v1791
    %v1893 = vunpack.c.l.b16 %v1792
    %v1894 = vunpack.c.h.b16 %v1792
    %v1895 = vunpack.c.l.b16 %v1793
    %v1896 = vunpack.c.h.b16 %v1793
    %v1897 = vpack.c.b16 %v1885, %v1883
    %v1898 = vpack.c.b16 %v1886, %v1884
    %v1899 = vpack.c.b16 %v1889, %v1887
    %v1900 = vpack.c.b16 %v1890, %v1888
    %v1901 = vpack.c.b16 %v1893, %v1891
    %v1902 = vpack.c.b16 %v1894, %v1892
    %v1903 = vpack.c.b16 %v1895, %v1895
    %v1904 = vpack.c.b16 %v1896, %v1896
    %v1912 = vsel %vm306, %v1875, 0
    %v1915 = vsel %vm959, %v1903, 0
    %v1918 = vsel %vm959, %v1904, 0
    %1920 = vmatpush.bf16.msra.mxu0 0
    %1921 = vmatpush.bf16.msra.mxu0 0
    %1922 = vmatpush.bf16.msra.mxu0 0
    %1923 = vmatpush.bf16.msra.mxu0 0
    %1924 = vmatpush.bf16.msra.mxu0 %v1915
    %1925 = vmatpush.bf16.msra.mxu0 %v1901
    %1926 = vmatpush.bf16.msra.mxu0 %v1899
    %1927 = vmatpush.bf16.msra.mxu0 %v1897
    %1928 = vmatmul.bf16.gmra.mxu0 %v1912
    %v1929 = vpop.f32.mrf.mxu0
    %v1930 = vadd.f32 0.0, %v1929
    %v1931 = vpop.f32.mrf.mxu0
    %v1932 = vadd.f32 0.0, %v1931
    %1933 = vdwg.mxu0
    %1934 = vmatpush.bf16.msra.mxu0 0
    %1935 = vmatpush.bf16.msra.mxu0 0
    %1936 = vmatpush.bf16.msra.mxu0 0
    %1937 = vmatpush.bf16.msra.mxu0 0
    %1938 = vmatpush.bf16.msra.mxu0 %v1918
    %1939 = vmatpush.bf16.msra.mxu0 %v1902
    %1940 = vmatpush.bf16.msra.mxu0 %v1900
    %1941 = vmatpush.bf16.msra.mxu0 %v1898
    %1942 = vmatmul.bf16.gmra.mxu0 %v1912
    %v1943 = vpop.f32.mrf.mxu0
    %v1944 = vadd.f32 0.0, %v1943
    %v1945 = vpop.f32.mrf.mxu0
    %v1946 = vadd.f32 0.0, %v1945
    %1947 = vdwg.mxu0
    %v1948 = vpack.c.bf16 %v1855, %v1853
    %v1949 = vpack.c.bf16 %v1869, %v1867
    %v1950 = vpack.c.bf16 %v1932, %v1930
    %v1951 = vpack.c.bf16 %v1946, %v1944
    %1952 = vmatpush.bf16.msra.mxu0 0
    %1953 = vmatpush.bf16.msra.mxu0 0
    %1954 = vmatpush.bf16.msra.mxu0 0
    %1955 = vmatpush.bf16.msra.mxu0 0
    %1956 = vmatpush.bf16.msra.mxu0 0
    %1957 = vmatpush.bf16.msra.mxu0 0
    %1958 = vmatpush.bf16.msra.mxu0 %v1950
    %1959 = vmatpush.bf16.msra.mxu0 %v1948
    %1960 = vmatmul.bf16.gmra.mxu0 %v1106
    %v1961 = vpop.f32.mrf.mxu0
    %v1962 = vadd.f32 %v1078, %v1961
    %v1963 = vpop.f32.mrf.mxu0
    %v1964 = vadd.f32 %v1083, %v1963
    %1965 = vmatmul.bf16.gmra.mxu0 %v1109
    %v1966 = vpop.f32.mrf.mxu0
    %v1967 = vadd.f32 %v1088, %v1966
    %v1968 = vpop.f32.mrf.mxu0
    %v1969 = vadd.f32 %v1093, %v1968
    %1970 = vdwg.mxu0
    %1971 = vmatpush.bf16.msra.mxu0 0
    %1972 = vmatpush.bf16.msra.mxu0 0
    %1973 = vmatpush.bf16.msra.mxu0 0
    %1974 = vmatpush.bf16.msra.mxu0 0
    %1975 = vmatpush.bf16.msra.mxu0 0
    %1976 = vmatpush.bf16.msra.mxu0 0
    %1977 = vmatpush.bf16.msra.mxu0 %v1951
    %1978 = vmatpush.bf16.msra.mxu0 %v1949
    %1979 = vmatmul.bf16.gmra.mxu0 %v1106
    %v1980 = vpop.f32.mrf.mxu0
    %v1981 = vadd.f32 %v1078, %v1980
    %v1982 = vpop.f32.mrf.mxu0
    %v1983 = vadd.f32 %v1083, %v1982
    %1984 = vmatmul.bf16.gmra.mxu0 %v1109
    %v1985 = vpop.f32.mrf.mxu0
    %v1986 = vadd.f32 %v1088, %v1985
    %v1987 = vpop.f32.mrf.mxu0
    %v1988 = vadd.f32 %v1093, %v1987
    %1989 = vdwg.mxu0
    %s1990 = scalar_lea.vmem [#allocation2], 64
    %1991 = vst [vmem:[%s1990] sm:$0xff] %v1962
    %1992 = vst [vmem:[%s1990 + $0x8] sm:$0xff] %v1981
    %1993 = vst [vmem:[%s1990 + $0x10] sm:$0xff] %v1964
    %1994 = vst [vmem:[%s1990 + $0x18] sm:$0xff] %v1983
    %1995 = vst [vmem:[%s1990 + $0x20] sm:$0xff] %v1967
    %1996 = vst [vmem:[%s1990 + $0x28] sm:$0xff] %v1986
    %1997 = vst [vmem:[%s1990 + $0x30] sm:$0xff] %v1969
    %1998 = vst [vmem:[%s1990 + $0x38] sm:$0xff] %v1988
    // Predicated region
    $region26: #{tpu_custom_call.1} parent=1 // pred_check
      _
    $region27: #{tpu_custom_call.1} parent=1 // pred_check_branch
      %2000 = sbr.rel (0) target = $region29
    $region28: #{tpu_custom_call.1} parent=1 // pred_region
      %2002 = vsyncadd [#allocation3], 0
      %s2003 = sshll.u32 [#allocation2], 4
      %s2004 = int_to_ptr.vmem [resolvable:$true] %s2003
      %s2005 = sshll.u32 %s6, 4
      %s2006 = int_to_ptr.hbm [resolvable:$true] %s2005
      %2011 = dma.vmem_to_hbm [thread:$0]  %s2004, 2048, %s2006, [#allocation3], 256, 256, 16
    $region29: #{tpu_custom_call.1} parent=1 // pred_fallthru
      _
    // Predicated region
    $region30: #{tpu_custom_call.1} parent=1 // pred_check
      _
    $region31: #{tpu_custom_call.1} parent=1 // pred_check_branch
      %2013 = sbr.rel (0) target = $region33
    $region32: #{tpu_custom_call.1} parent=1 // pred_region
      %2015 = dma.done [#allocation3], 2048
    $region33: #{tpu_custom_call.1} parent=1 // pred_fallthru
      _
    %2016 = vsyncpa [#allocation3], 1

// kernel: tpu_custom_call.1
$region0: #{tpu_custom_call.1}
  #allocation0 [shape = 'u32[]', space=smem, size = 0x4, offset = 0x4, fixed_abs, tag = 'smem constant byte address 0x4 - core index']
  #allocation1 [shape = 'u32[72,128]{1,0:T(1,128)}', space=vmem, size = 0x9000, scoped, tag = 'internal scratch']
  %s0 = inlined_call_operand.vmem [shape: bf16[2,32,256], index: 0, kind: input, shape index: {}]
  %s1 = inlined_call_operand.vmem [shape: bf16[256,50], index: 1, kind: input, shape index: {}]
  %s2 = inlined_call_operand.vmem [shape: bf16[32,32], index: 2, kind: input, shape index: {}]
  %s3 = inlined_call_operand.vmem [shape: bf16[64,32], index: 3, kind: input, shape index: {}]
  %s4 = inlined_call_operand.vmem [shape: bf16[32,32], index: 4, kind: input, shape index: {}]
  %s5 = inlined_call_operand.vmem [shape: f32[96,1], index: 5, kind: input, shape index: {}]
  %s6 = inlined_call_operand.hbm [shape: f32[2,32,256], index: 6, kind: output, shape index: {}]
  %s7 = sld [smem:[#allocation0]]
  $region34: #{tpu_custom_call.1} parent=0
    _
  %s9 = ssub.s32 1, %s7
  %s10 = scalar_select 0, %s9, %s7
  $region1: #{tpu_custom_call.1} parent=0
    #allocation2 [shape = 'u8[65536]{0}', space=vmem, size = 0x10000, scoped, tag = 'output window, operand 0, single buffered']
    #allocation3 [shape = 's32[1]{0}', space=sflag, size = 0x4, scoped, tag = 'scoped memory for tpu_custom_call.1']
    %11 = vsyncpa [#allocation3], 0
    // Predicated region
    $region2: #{tpu_custom_call.1} parent=1 // pred_check
      _
    $region3: #{tpu_custom_call.1} parent=1 // pred_check_branch
      %13 = sbr.rel (0) target = $region5
    $region4: #{tpu_custom_call.1} parent=1 // pred_region
      _
    $region5: #{tpu_custom_call.1} parent=1 // pred_fallthru
      _
    // Predicated region
    $region6: #{tpu_custom_call.1} parent=1 // pred_check
      _
    $region7: #{tpu_custom_call.1} parent=1 // pred_check_branch
      %15 = sbr.rel (0) target = $region9
    $region8: #{tpu_custom_call.1} parent=1 // pred_region
      _
    $region9: #{tpu_custom_call.1} parent=1 // pred_fallthru
      _
    // Predicated region
    $region10: #{tpu_custom_call.1} parent=1 // pred_check
      _
    $region11: #{tpu_custom_call.1} parent=1 // pred_check_branch
      %17 = sbr.rel (0) target = $region13
    $region12: #{tpu_custom_call.1} parent=1 // pred_region
      _
    $region13: #{tpu_custom_call.1} parent=1 // pred_fallthru
      _
    // Predicated region
    $region14: #{tpu_custom_call.1} parent=1 // pred_check
      _
    $region15: #{tpu_custom_call.1} parent=1 // pred_check_branch
      %19 = sbr.rel (0) target = $region17
    $region16: #{tpu_custom_call.1} parent=1 // pred_region
      _
    $region17: #{tpu_custom_call.1} parent=1 // pred_fallthru
      _
    // Predicated region
    $region18: #{tpu_custom_call.1} parent=1 // pred_check
      _
    $region19: #{tpu_custom_call.1} parent=1 // pred_check_branch
      %21 = sbr.rel (0) target = $region21
    $region20: #{tpu_custom_call.1} parent=1 // pred_region
      _
    $region21: #{tpu_custom_call.1} parent=1 // pred_fallthru
      _
    // Predicated region
    $region22: #{tpu_custom_call.1} parent=1 // pred_check
      _
    $region23: #{tpu_custom_call.1} parent=1 // pred_check_branch
      %23 = sbr.rel (0) target = $region25
    $region24: #{tpu_custom_call.1} parent=1 // pred_region
      _
    $region25: #{tpu_custom_call.1} parent=1 // pred_fallthru
      _
    %v25 = vld [vmem:[%s2] sm:$0xf]
    %v26 = vld [vmem:[%s2 + $0x4] sm:$0xf]
    %v27 = vld [vmem:[%s2 + $0x8] sm:$0xf]
    %v28 = vld [vmem:[%s2 + $0xc] sm:$0xf]
    %v29 = vld [vmem:[%s3] sm:$0xf]
    %v30 = vld [vmem:[%s3 + $0x4] sm:$0xf]
    %v31 = vld [vmem:[%s3 + $0x8] sm:$0xf]
    %v32 = vld [vmem:[%s3 + $0xc] sm:$0xf]
    %v33 = vld [vmem:[%s3 + $0x10] sm:$0xf]
    %v34 = vld [vmem:[%s3 + $0x14] sm:$0xf]
    %v35 = vld [vmem:[%s3 + $0x18] sm:$0xf]
    %v36 = vld [vmem:[%s3 + $0x1c] sm:$0xf]
    %v37 = vld [vmem:[%s4] sm:$0xf]
    %v38 = vld [vmem:[%s4 + $0x4] sm:$0xf]
    %v39 = vld [vmem:[%s4 + $0x8] sm:$0xf]
    %v40 = vld [vmem:[%s4 + $0xc] sm:$0xf]
    %v41 = vld [vmem:[%s1] sm:$0xf]
    %v42 = vld [vmem:[%s1 + $0x4] sm:$0xf]
    %v43 = vld [vmem:[%s1 + $0x8] sm:$0xf]
    %v44 = vld [vmem:[%s1 + $0xc] sm:$0xf]
    %v45 = vld [vmem:[%s1 + $0x10] sm:$0xf]
    %v46 = vld [vmem:[%s1 + $0x14] sm:$0xf]
    %v47 = vld [vmem:[%s1 + $0x18] sm:$0xf]
    %v48 = vld [vmem:[%s1 + $0x1c] sm:$0xf]
    %v49 = vld [vmem:[%s1 + $0x20] sm:$0xf]
    %v50 = vld [vmem:[%s1 + $0x24] sm:$0xf]
    %v51 = vld [vmem:[%s1 + $0x28] sm:$0xf]
    %v52 = vld [vmem:[%s1 + $0x2c] sm:$0xf]
    %v53 = vld [vmem:[%s1 + $0x30] sm:$0xf]
    %v54 = vld [vmem:[%s1 + $0x34] sm:$0xf]
    %v55 = vld [vmem:[%s1 + $0x38] sm:$0xf]
    %v56 = vld [vmem:[%s1 + $0x3c] sm:$0xf]
    %v57 = vld [vmem:[%s1 + $0x40] sm:$0xf]
    %v58 = vld [vmem:[%s1 + $0x44] sm:$0xf]
    %v59 = vld [vmem:[%s1 + $0x48] sm:$0xf]
    %v60 = vld [vmem:[%s1 + $0x4c] sm:$0xf]
    %v61 = vld [vmem:[%s1 + $0x50] sm:$0xf]
    %v62 = vld [vmem:[%s1 + $0x54] sm:$0xf]
    %v63 = vld [vmem:[%s1 + $0x58] sm:$0xf]
    %v64 = vld [vmem:[%s1 + $0x5c] sm:$0xf]
    %v65 = vld [vmem:[%s1 + $0x60] sm:$0xf]
    %v66 = vld [vmem:[%s1 + $0x64] sm:$0xf]
    %v67 = vld [vmem:[%s1 + $0x68] sm:$0xf]
    %v68 = vld [vmem:[%s1 + $0x6c] sm:$0xf]
    %v69 = vld [vmem:[%s1 + $0x70] sm:$0xf]
    %v70 = vld [vmem:[%s1 + $0x74] sm:$0xf]
    %v71 = vld [vmem:[%s1 + $0x78] sm:$0xf]
    %v72 = vld [vmem:[%s1 + $0x7c] sm:$0xf]
    %v73 = vld [vmem:[%s5] sm:$0xff]
    %v74 = vld [vmem:[%s5 + $0x8] sm:$0xff]
    %v75 = vld [vmem:[%s5 + $0x10] sm:$0xff]
    %v76 = vld [vmem:[%s5 + $0x18] sm:$0xff]
    %v77 = vld [vmem:[%s5 + $0x20] sm:$0xff]
    %v78 = vld [vmem:[%s5 + $0x28] sm:$0xff]
    %v79 = vld [vmem:[%s5 + $0x30] sm:$0xff]
    %v80 = vld [vmem:[%s5 + $0x38] sm:$0xff]
    %v81 = vld [vmem:[%s5 + $0x40] sm:$0xff]
    %v82 = vld [vmem:[%s5 + $0x48] sm:$0xff]
    %v83 = vld [vmem:[%s5 + $0x50] sm:$0xff]
    %v84 = vld [vmem:[%s5 + $0x58] sm:$0xff]
    %v85 = vld [vmem:[%s0] sm:$0xff]
    %v86 = vld [vmem:[%s0 + $0x8] sm:$0xff]
    %v87 = vld [vmem:[%s0 + $0x10] sm:$0xff]
    %v88 = vld [vmem:[%s0 + $0x18] sm:$0xff]
    %v93 = vunpack.c.l.b16 %v25
    %v94 = vunpack.c.l.b16 %v26
    %v95 = vunpack.c.l.b16 %v27
    %v96 = vunpack.c.l.b16 %v28
    %v97 = vpack.c.b16 %v94, %v93
    %v98 = vpack.c.b16 %v96, %v95
    %v103 = vunpack.c.l.b16 %v85
    %v104 = vunpack.c.h.b16 %v85
    %v105 = vunpack.c.l.b16 %v86
    %v106 = vunpack.c.h.b16 %v86
    %v107 = vunpack.c.l.b16 %v87
    %v108 = vunpack.c.h.b16 %v87
    %v109 = vunpack.c.l.b16 %v88
    %v110 = vunpack.c.h.b16 %v88
    %v111 = vpack.c.b16 %v105, %v103
    %v112 = vpack.c.b16 %v106, %v104
    %v113 = vpack.c.b16 %v109, %v107
    %v114 = vpack.c.b16 %v110, %v108
    %vm119 = vcmask 261120
    %v121 = vsel %vm119, %v97, 0
    %v124 = vsel %vm119, %v98, 0
    %126 = vmatpush.bf16.msra.mxu0 0
    %127 = vmatpush.bf16.msra.mxu0 0
    %128 = vmatpush.bf16.msra.mxu0 0
    %129 = vmatpush.bf16.msra.mxu0 0
    %130 = vmatpush.bf16.msra.mxu0 0
    %131 = vmatpush.bf16.msra.mxu0 0
    %132 = vmatpush.bf16.msra.mxu0 %v113
    %133 = vmatpush.bf16.msra.mxu0 %v111
    %134 = vmatmul.bf16.gmra.mxu0 %v121
    %v135 = vpop.f32.mrf.mxu0
    %v136 = vadd.f32 0.0, %v135
    %v137 = vpop.f32.mrf.mxu0
    %v138 = vadd.f32 0.0, %v137
    %139 = vmatmul.bf16.gmra.mxu0 %v124
    %v140 = vpop.f32.mrf.mxu0
    %v141 = vadd.f32 0.0, %v140
    %v142 = vpop.f32.mrf.mxu0
    %v143 = vadd.f32 0.0, %v142
    %144 = vdwg.mxu0
    %145 = vmatpush.bf16.msra.mxu0 0
    %146 = vmatpush.bf16.msra.mxu0 0
    %147 = vmatpush.bf16.msra.mxu0 0
    %148 = vmatpush.bf16.msra.mxu0 0
    %149 = vmatpush.bf16.msra.mxu0 0
    %150 = vmatpush.bf16.msra.mxu0 0
    %151 = vmatpush.bf16.msra.mxu0 %v114
    %152 = vmatpush.bf16.msra.mxu0 %v112
    %153 = vmatmul.bf16.gmra.mxu0 %v121
    %v154 = vpop.f32.mrf.mxu0
    %v155 = vadd.f32 0.0, %v154
    %v156 = vpop.f32.mrf.mxu0
    %v157 = vadd.f32 0.0, %v156
    %158 = vmatmul.bf16.gmra.mxu0 %v124
    %v159 = vpop.f32.mrf.mxu0
    %v160 = vadd.f32 0.0, %v159
    %v161 = vpop.f32.mrf.mxu0
    %v162 = vadd.f32 0.0, %v161
    %163 = vdwg.mxu0
    %v164 = vmul.f32 %v136, 0.25
    %v165 = vmul.f32 %v155, 0.25
    %v166 = vmul.f32 %v138, 0.25
    %v167 = vmul.f32 %v157, 0.25
    %v168 = vmul.f32 %v141, 0.25
    %v169 = vmul.f32 %v160, 0.25
    %v170 = vmul.f32 %v143, 0.25
    %v171 = vmul.f32 %v162, 0.25
    %v204 = vunpack.c.l.b16 %v41
    %v205 = vunpack.c.l.b16 %v42
    %v206 = vunpack.c.l.b16 %v43
    %v207 = vunpack.c.l.b16 %v44
    %v208 = vunpack.c.l.b16 %v45
    %v209 = vunpack.c.l.b16 %v46
    %v210 = vunpack.c.l.b16 %v47
    %v211 = vunpack.c.l.b16 %v48
    %v212 = vunpack.c.l.b16 %v49
    %v213 = vunpack.c.l.b16 %v50
    %v214 = vunpack.c.l.b16 %v51
    %v215 = vunpack.c.l.b16 %v52
    %v216 = vunpack.c.l.b16 %v53
    %v217 = vunpack.c.l.b16 %v54
    %v218 = vunpack.c.l.b16 %v55
    %v219 = vunpack.c.l.b16 %v56
    %v220 = vunpack.c.l.b16 %v57
    %v221 = vunpack.c.l.b16 %v58
    %v222 = vunpack.c.l.b16 %v59
    %v223 = vunpack.c.l.b16 %v60
    %v224 = vunpack.c.l.b16 %v61
    %v225 = vunpack.c.l.b16 %v62
    %v226 = vunpack.c.l.b16 %v63
    %v227 = vunpack.c.l.b16 %v64
    %v228 = vunpack.c.l.b16 %v65
    %v229 = vunpack.c.l.b16 %v66
    %v230 = vunpack.c.l.b16 %v67
    %v231 = vunpack.c.l.b16 %v68
    %v232 = vunpack.c.l.b16 %v69
    %v233 = vunpack.c.l.b16 %v70
    %v234 = vunpack.c.l.b16 %v71
    %v235 = vunpack.c.l.b16 %v72
    %v236 = vpack.c.b16 %v205, %v204
    %v237 = vpack.c.b16 %v207, %v206
    %v238 = vpack.c.b16 %v209, %v208
    %v239 = vpack.c.b16 %v211, %v210
    %v240 = vpack.c.b16 %v213, %v212
    %v241 = vpack.c.b16 %v215, %v214
    %v242 = vpack.c.b16 %v217, %v216
    %v243 = vpack.c.b16 %v219, %v218
    %v244 = vpack.c.b16 %v221, %v220
    %v245 = vpack.c.b16 %v223, %v222
    %v246 = vpack.c.b16 %v225, %v224
    %v247 = vpack.c.b16 %v227, %v226
    %v248 = vpack.c.b16 %v229, %v228
    %v249 = vpack.c.b16 %v231, %v230
    %v250 = vpack.c.b16 %v233, %v232
    %v251 = vpack.c.b16 %v235, %v234
    %268 = vmatpush.bf16.msra.mxu0 %v243
    %269 = vmatpush.bf16.msra.mxu0 %v242
    %270 = vmatpush.bf16.msra.mxu0 %v241
    %271 = vmatpush.bf16.msra.mxu0 %v240
    %272 = vmatpush.bf16.msra.mxu0 %v239
    %273 = vmatpush.bf16.msra.mxu0 %v238
    %274 = vmatpush.bf16.msra.mxu0 %v237
    %275 = vmatpush.bf16.msra.mxu0 %v236
    %276 = vmatmul.bf16.gmra.mxu0 %v111
    %v277 = vpop.f32.mrf.mxu0
    %v278 = vadd.f32 0.0, %v277
    %v279 = vpop.f32.mrf.mxu0
    %v280 = vadd.f32 0.0, %v279
    %281 = vmatmul.bf16.gmra.mxu0 %v113
    %v282 = vpop.f32.mrf.mxu0
    %v283 = vadd.f32 0.0, %v282
    %v284 = vpop.f32.mrf.mxu0
    %v285 = vadd.f32 0.0, %v284
    %286 = vdwg.mxu0
    %287 = vmatpush.bf16.msra.mxu0 %v251
    %288 = vmatpush.bf16.msra.mxu0 %v250
    %289 = vmatpush.bf16.msra.mxu0 %v249
    %290 = vmatpush.bf16.msra.mxu0 %v248
    %291 = vmatpush.bf16.msra.mxu0 %v247
    %292 = vmatpush.bf16.msra.mxu0 %v246
    %293 = vmatpush.bf16.msra.mxu0 %v245
    %294 = vmatpush.bf16.msra.mxu0 %v244
    %295 = vmatmul.bf16.gmra.mxu0 %v112
    %v296 = vpop.f32.mrf.mxu0
    %v297 = vadd.f32 %v278, %v296
    %v298 = vpop.f32.mrf.mxu0
    %v299 = vadd.f32 %v280, %v298
    %300 = vmatmul.bf16.gmra.mxu0 %v114
    %v301 = vpop.f32.mrf.mxu0
    %v302 = vadd.f32 %v283, %v301
    %v303 = vpop.f32.mrf.mxu0
    %v304 = vadd.f32 %v285, %v303
    %305 = vdwg.mxu0
    %vm306 = vcmask 408576
    %v307 = vsel %vm306, %v297, 0.0
    %v308 = vsel %vm306, %v299, 0.0
    %v309 = vadd.f32 %v307, %v308
    %v310 = vsel %vm306, %v302, 0.0
    %v311 = vadd.f32 %v309, %v310
    %v312 = vsel %vm306, %v304, 0.0
    %v313 = vadd.f32 %v311, %v312
    %v314 = vrot.slane %v313, 4
    %v315 = vadd.f32 %v313, %v314
    %v316 = vrot.slane %v315, 2
    %v317 = vadd.f32 %v315, %v316
    %v318 = vrot.slane %v317, 1
    %v319 = vadd.f32 %v317, %v318
    %v320 = vrcp.pop 32.0
    %v321 = vmul.f32 32.0, %v320
    %v322 = vsub.f32 1.0, %v321
    %v323 = vmul.f32 %v320, %v322
    %v324 = vadd.f32 %v320, %v323
    %vm325 = vweird.f32 %v320
    %v326 = vsel %vm325, %v320, %v324
    %v327 = vmul.f32 %v319, %v326
    %v328 = vsub.f32 %v297, %v327
    %v329 = vsub.f32 %v299, %v327
    %v330 = vsub.f32 %v302, %v327
    %v331 = vsub.f32 %v304, %v327
    %v332 = vmul.f32 %v328, %v328
    %v333 = vmul.f32 %v329, %v329
    %v334 = vmul.f32 %v330, %v330
    %v335 = vmul.f32 %v331, %v331
    %v336 = vsel %vm306, %v332, 0.0
    %v337 = vsel %vm306, %v333, 0.0
    %v338 = vadd.f32 %v336, %v337
    %v339 = vsel %vm306, %v334, 0.0
    %v340 = vadd.f32 %v338, %v339
    %v341 = vsel %vm306, %v335, 0.0
    %v342 = vadd.f32 %v340, %v341
    %v343 = vrot.slane %v342, 4
    %v344 = vadd.f32 %v342, %v343
    %v345 = vrot.slane %v344, 2
    %v346 = vadd.f32 %v344, %v345
    %v347 = vrot.slane %v346, 1
    %v348 = vadd.f32 %v346, %v347
    %v349 = vmul.f32 %v348, %v326
    %v350 = vadd.f32 %v349, 1e-05
    %v351 = vrsqrt.pop %v350
    %v352 = vmul.f32 %v351, %v350
    %v353 = vmul.f32 %v352, %v351
    %v354 = vmul.f32 0.5, %v353
    %v355 = vsub.f32 1.5, %v354
    %v356 = vmul.f32 %v351, %v355
    %vm357 = vweird.f32 %v350
    %vm358 = vweird.f32 %v351
    %vm359 = vmor %vm357, %vm358
    %v360 = vsel %vm359, %v351, %v356
    %v361 = vmul.f32 %v328, %v360
    %v362 = vmul.f32 %v329, %v360
    %v363 = vmul.f32 %v330, %v360
    %v364 = vmul.f32 %v331, %v360
    %v365 = vpack.c.bf16 %v362, %v361
    %v366 = vpack.c.bf16 %v364, %v363
    %368 = vset.pattern.permute.xlu0 0
    %369 = vperm.xlu0 %368, %v73
    %v370 = vpop.permute.xlu0 %369
    %373 = vset.pattern.permute.xlu0 0
    %374 = vperm.xlu0 %373, %v74
    %v375 = vpop.permute.xlu0 %374
    %378 = vset.pattern.permute.xlu0 0
    %379 = vperm.xlu0 %378, %v75
    %v380 = vpop.permute.xlu0 %379
    %383 = vset.pattern.permute.xlu0 0
    %384 = vperm.xlu0 %383, %v76
    %v385 = vpop.permute.xlu0 %384
    %388 = vset.pattern.permute.xlu0 0
    %389 = vperm.xlu0 %388, %v77
    %v390 = vpop.permute.xlu0 %389
    %393 = vset.pattern.permute.xlu0 0
    %394 = vperm.xlu0 %393, %v78
    %v395 = vpop.permute.xlu0 %394
    %398 = vset.pattern.permute.xlu0 0
    %399 = vperm.xlu0 %398, %v79
    %v400 = vpop.permute.xlu0 %399
    %403 = vset.pattern.permute.xlu0 0
    %404 = vperm.xlu0 %403, %v80
    %v405 = vpop.permute.xlu0 %404
    %v415 = vunpack.c.l.b16 %v29
    %v416 = vunpack.c.l.b16 %v30
    %v417 = vunpack.c.l.b16 %v31
    %v418 = vunpack.c.l.b16 %v32
    %v419 = vunpack.c.l.b16 %v33
    %v420 = vunpack.c.l.b16 %v34
    %v421 = vunpack.c.l.b16 %v35
    %v422 = vunpack.c.l.b16 %v36
    %v423 = vpack.c.b16 %v416, %v415
    %v424 = vpack.c.b16 %v418, %v417
    %v425 = vpack.c.b16 %v420, %v419
    %v426 = vpack.c.b16 %v422, %v421
    %v428 = vsel %vm119, %v423, 0
    %v431 = vsel %vm119, %v424, 0
    %v434 = vsel %vm119, %v425, 0
    %v437 = vsel %vm119, %v426, 0
    %439 = vmatpush.bf16.msra.mxu0 0
    %440 = vmatpush.bf16.msra.mxu0 0
    %441 = vmatpush.bf16.msra.mxu0 0
    %442 = vmatpush.bf16.msra.mxu0 0
    %443 = vmatpush.bf16.msra.mxu0 0
    %444 = vmatpush.bf16.msra.mxu0 0
    %445 = vmatpush.bf16.msra.mxu0 %v366
    %446 = vmatpush.bf16.msra.mxu0 %v365
    %447 = vmatmul.bf16.gmra.mxu0 %v428
    %v448 = vpop.f32.mrf.mxu0
    %v449 = vadd.f32 %v370, %v448
    %v450 = vpop.f32.mrf.mxu0
    %v451 = vadd.f32 %v375, %v450
    %452 = vmatmul.bf16.gmra.mxu0 %v431
    %v453 = vpop.f32.mrf.mxu0
    %v454 = vadd.f32 %v380, %v453
    %v455 = vpop.f32.mrf.mxu0
    %v456 = vadd.f32 %v385, %v455
    %457 = vmatmul.bf16.gmra.mxu0 %v434
    %v458 = vpop.f32.mrf.mxu0
    %v459 = vadd.f32 %v390, %v458
    %v460 = vpop.f32.mrf.mxu0
    %v461 = vadd.f32 %v395, %v460
    %462 = vmatmul.bf16.gmra.mxu0 %v437
    %v463 = vpop.f32.mrf.mxu0
    %v464 = vadd.f32 %v400, %v463
    %v465 = vpop.f32.mrf.mxu0
    %v466 = vadd.f32 %v405, %v465
    %467 = vdwg.mxu0
    %v468 = vpack.c.bf16 %v165, %v164
    %v469 = vpack.c.bf16 %v167, %v166
    %v470 = vpack.c.bf16 %v169, %v168
    %v471 = vpack.c.bf16 %v171, %v170
    %v472 = vpack.c.bf16 %v449, %v449
    %v473 = vpack.c.bf16 %v451, %v451
    %v474 = vpack.c.bf16 %v454, %v454
    %v475 = vpack.c.bf16 %v456, %v456
    %v476 = vpack.c.bf16 %v459, %v459
    %v477 = vpack.c.bf16 %v461, %v461
    %v478 = vpack.c.bf16 %v464, %v464
    %v479 = vpack.c.bf16 %v466, %v466
    %v482 = vunpack.c.l.b16 %v472
    %v483 = vunpack.c.l.b16 %v473
    %v484 = vpack.c.b16 %v483, %v482
    %486 = vxpose.xlu0.c.b16.start [1/8] %v484, 128
    %487 = vxpose.xlu0.c.b16.cont [2/8] 0, 128
    %488 = vxpose.xlu0.c.b16.cont [3/8] 0, 128
    %489 = vxpose.xlu0.c.b16.cont [4/8] 0, 128
    %490 = vxpose.xlu0.c.b16.cont [5/8] 0, 128
    %491 = vxpose.xlu0.c.b16.cont [6/8] 0, 128
    %492 = vxpose.xlu0.c.b16.cont [7/8] 0, 128
    %493 = vxpose.xlu0.c.b16.end [8/8] 0, 128
    %v494 = vpop.trf.xlu0
    %v495 = vpop.trf.xlu0
    %v496 = vpop.trf.xlu0
    %v497 = vpop.trf.xlu0
    %v498 = vpop.trf.xlu0
    %v499 = vpop.trf.xlu0
    %v500 = vpop.trf.xlu0
    %v501 = vpop.trf.xlu0
    %v504 = vunpack.c.l.b16 %v468
    %v505 = vunpack.c.h.b16 %v468
    %v506 = vunpack.c.l.b16 %v469
    %v507 = vunpack.c.h.b16 %v469
    %v508 = vpack.c.b16 %v506, %v504
    %v509 = vpack.c.b16 %v507, %v505
    %vm512 = vcmask 130048
    %v514 = vsel %vm512, %v494, 0
    %v517 = vsel %vm512, %v495, 0
    %v520 = vsel %vm512, %v496, 0
    %v523 = vsel %vm512, %v497, 0
    %525 = vmatpush.bf16.msra.mxu0 0
    %526 = vmatpush.bf16.msra.mxu0 0
    %527 = vmatpush.bf16.msra.mxu0 0
    %528 = vmatpush.bf16.msra.mxu0 0
    %529 = vmatpush.bf16.msra.mxu0 0
    %530 = vmatpush.bf16.msra.mxu0 0
    %531 = vmatpush.bf16.msra.mxu0 0
    %532 = vmatpush.bf16.msra.mxu0 %v508
    %533 = vmatmul.bf16.gmra.mxu0 %v514
    %v534 = vpop.f32.mrf.mxu0
    %v535 = vadd.f32 0.0, %v534
    %v536 = vpop.f32.mrf.mxu0
    %v537 = vadd.f32 0.0, %v536
    %538 = vmatmul.bf16.gmra.mxu0 %v517
    %v539 = vpop.f32.mrf.mxu0
    %v540 = vadd.f32 0.0, %v539
    %v541 = vpop.f32.mrf.mxu0
    %v542 = vadd.f32 0.0, %v541
    %543 = vmatmul.bf16.gmra.mxu0 %v520
    %v544 = vpop.f32.mrf.mxu0
    %v545 = vadd.f32 0.0, %v544
    %v546 = vpop.f32.mrf.mxu0
    %v547 = vadd.f32 0.0, %v546
    %548 = vmatmul.bf16.gmra.mxu0 %v523
    %v549 = vpop.f32.mrf.mxu0
    %v550 = vadd.f32 0.0, %v549
    %v551 = vpop.f32.mrf.mxu0
    %552 = vdwg.mxu0
    %553 = vmatpush.bf16.msra.mxu0 0
    %554 = vmatpush.bf16.msra.mxu0 0
    %555 = vmatpush.bf16.msra.mxu0 0
    %556 = vmatpush.bf16.msra.mxu0 0
    %557 = vmatpush.bf16.msra.mxu0 0
    %558 = vmatpush.bf16.msra.mxu0 0
    %559 = vmatpush.bf16.msra.mxu0 0
    %560 = vmatpush.bf16.msra.mxu0 %v509
    %561 = vmatmul.bf16.gmra.mxu0 %v514
    %v562 = vpop.f32.mrf.mxu0
    %v563 = vadd.f32 0.0, %v562
    %v564 = vpop.f32.mrf.mxu0
    %v565 = vadd.f32 0.0, %v564
    %566 = vmatmul.bf16.gmra.mxu0 %v517
    %v567 = vpop.f32.mrf.mxu0
    %v568 = vadd.f32 0.0, %v567
    %v569 = vpop.f32.mrf.mxu0
    %v570 = vadd.f32 0.0, %v569
    %571 = vmatmul.bf16.gmra.mxu0 %v520
    %v572 = vpop.f32.mrf.mxu0
    %v573 = vadd.f32 0.0, %v572
    %v574 = vpop.f32.mrf.mxu0
    %v575 = vadd.f32 0.0, %v574
    %576 = vmatmul.bf16.gmra.mxu0 %v523
    %v577 = vpop.f32.mrf.mxu0
    %v578 = vadd.f32 0.0, %v577
    %v579 = vpop.f32.mrf.mxu0
    %580 = vdwg.mxu0
    %v583 = vunpack.c.l.b16 %v474
    %v584 = vunpack.c.l.b16 %v475
    %v585 = vpack.c.b16 %v584, %v583
    %587 = vxpose.xlu0.c.b16.start [1/8] %v585, 128
    %588 = vxpose.xlu0.c.b16.cont [2/8] 0, 128
    %589 = vxpose.xlu0.c.b16.cont [3/8] 0, 128
    %590 = vxpose.xlu0.c.b16.cont [4/8] 0, 128
    %591 = vxpose.xlu0.c.b16.cont [5/8] 0, 128
    %592 = vxpose.xlu0.c.b16.cont [6/8] 0, 128
    %593 = vxpose.xlu0.c.b16.cont [7/8] 0, 128
    %594 = vxpose.xlu0.c.b16.end [8/8] 0, 128
    %v595 = vpop.trf.xlu0
    %v596 = vpop.trf.xlu0
    %v597 = vpop.trf.xlu0
    %v598 = vpop.trf.xlu0
    %v599 = vpop.trf.xlu0
    %v600 = vpop.trf.xlu0
    %v601 = vpop.trf.xlu0
    %v602 = vpop.trf.xlu0
    %v605 = vunpack.c.l.b16 %v470
    %v606 = vunpack.c.h.b16 %v470
    %v607 = vunpack.c.l.b16 %v471
    %v608 = vunpack.c.h.b16 %v471
    %v609 = vpack.c.b16 %v607, %v605
    %v610 = vpack.c.b16 %v608, %v606
    %v614 = vsel %vm512, %v595, 0
    %v617 = vsel %vm512, %v596, 0
    %v620 = vsel %vm512, %v597, 0
    %v623 = vsel %vm512, %v598, 0
    %625 = vmatpush.bf16.msra.mxu0 0
    %626 = vmatpush.bf16.msra.mxu0 0
    %627 = vmatpush.bf16.msra.mxu0 0
    %628 = vmatpush.bf16.msra.mxu0 0
    %629 = vmatpush.bf16.msra.mxu0 0
    %630 = vmatpush.bf16.msra.mxu0 0
    %631 = vmatpush.bf16.msra.mxu0 0
    %632 = vmatpush.bf16.msra.mxu0 %v609
    %633 = vmatmul.bf16.gmra.mxu0 %v614
    %v634 = vpop.f32.mrf.mxu0
    %v635 = vadd.f32 0.0, %v634
    %v636 = vpop.f32.mrf.mxu0
    %v637 = vadd.f32 0.0, %v636
    %638 = vmatmul.bf16.gmra.mxu0 %v617
    %v639 = vpop.f32.mrf.mxu0
    %v640 = vadd.f32 0.0, %v639
    %v641 = vpop.f32.mrf.mxu0
    %v642 = vadd.f32 0.0, %v641
    %643 = vmatmul.bf16.gmra.mxu0 %v620
    %v644 = vpop.f32.mrf.mxu0
    %v645 = vadd.f32 0.0, %v644
    %v646 = vpop.f32.mrf.mxu0
    %v647 = vadd.f32 0.0, %v646
    %648 = vmatmul.bf16.gmra.mxu0 %v623
    %v649 = vpop.f32.mrf.mxu0
    %v650 = vadd.f32 0.0, %v649
    %v651 = vpop.f32.mrf.mxu0
    %652 = vdwg.mxu0
    %653 = vmatpush.bf16.msra.mxu0 0
    %654 = vmatpush.bf16.msra.mxu0 0
    %655 = vmatpush.bf16.msra.mxu0 0
    %656 = vmatpush.bf16.msra.mxu0 0
    %657 = vmatpush.bf16.msra.mxu0 0
    %658 = vmatpush.bf16.msra.mxu0 0
    %659 = vmatpush.bf16.msra.mxu0 0
    %660 = vmatpush.bf16.msra.mxu0 %v610
    %661 = vmatmul.bf16.gmra.mxu0 %v614
    %v662 = vpop.f32.mrf.mxu0
    %v663 = vadd.f32 0.0, %v662
    %v664 = vpop.f32.mrf.mxu0
    %v665 = vadd.f32 0.0, %v664
    %666 = vmatmul.bf16.gmra.mxu0 %v617
    %v667 = vpop.f32.mrf.mxu0
    %v668 = vadd.f32 0.0, %v667
    %v669 = vpop.f32.mrf.mxu0
    %v670 = vadd.f32 0.0, %v669
    %671 = vmatmul.bf16.gmra.mxu0 %v620
    %v672 = vpop.f32.mrf.mxu0
    %v673 = vadd.f32 0.0, %v672
    %v674 = vpop.f32.mrf.mxu0
    %v675 = vadd.f32 0.0, %v674
    %676 = vmatmul.bf16.gmra.mxu0 %v623
    %v677 = vpop.f32.mrf.mxu0
    %v678 = vadd.f32 0.0, %v677
    %v679 = vpop.f32.mrf.mxu0
    %680 = vdwg.mxu0
    %v681 = vmax.f32 %v535, %v537
    %v682 = vmax.f32 %v681, %v540
    %v683 = vmax.f32 %v682, %v542
    %v684 = vmax.f32 %v683, %v545
    %v685 = vmax.f32 %v684, %v547
    %vm686 = vcmask 1041408
    %v687 = vsel %vm686, %v550, -inf
    %v688 = vmax.f32 %v685, %v687
    %v689 = vrot.slane %v688, 4
    %v690 = vmax.f32 %v688, %v689
    %v691 = vrot.slane %v690, 2
    %v692 = vmax.f32 %v690, %v691
    %v693 = vrot.slane %v692, 1
    %v694 = vmax.f32 %v692, %v693
    %v695 = vmax.f32 %v563, %v565
    %v696 = vmax.f32 %v695, %v568
    %v697 = vmax.f32 %v696, %v570
    %v698 = vmax.f32 %v697, %v573
    %v699 = vmax.f32 %v698, %v575
    %v700 = vsel %vm686, %v578, -inf
    %v701 = vmax.f32 %v699, %v700
    %v702 = vrot.slane %v701, 4
    %v703 = vmax.f32 %v701, %v702
    %v704 = vrot.slane %v703, 2
    %v705 = vmax.f32 %v703, %v704
    %v706 = vrot.slane %v705, 1
    %v707 = vmax.f32 %v705, %v706
    %v708 = vmax.f32 %v635, %v637
    %v709 = vmax.f32 %v708, %v640
    %v710 = vmax.f32 %v709, %v642
    %v711 = vmax.f32 %v710, %v645
    %v712 = vmax.f32 %v711, %v647
    %v713 = vsel %vm686, %v650, -inf
    %v714 = vmax.f32 %v712, %v713
    %v715 = vrot.slane %v714, 4
    %v716 = vmax.f32 %v714, %v715
    %v717 = vrot.slane %v716, 2
    %v718 = vmax.f32 %v716, %v717
    %v719 = vrot.slane %v718, 1
    %v720 = vmax.f32 %v718, %v719
    %v721 = vmax.f32 %v663, %v665
    %v722 = vmax.f32 %v721, %v668
    %v723 = vmax.f32 %v722, %v670
    %v724 = vmax.f32 %v723, %v673
    %v725 = vmax.f32 %v724, %v675
    %v726 = vsel %vm686, %v678, -inf
    %v727 = vmax.f32 %v725, %v726
    %v728 = vrot.slane %v727, 4
    %v729 = vmax.f32 %v727, %v728
    %v730 = vrot.slane %v729, 2
    %v731 = vmax.f32 %v729, %v730
    %v732 = vrot.slane %v731, 1
    %v733 = vmax.f32 %v731, %v732
    %v734 = vsub.f32 %v535, %v694
    %v735 = vsub.f32 %v563, %v707
    %v736 = vsub.f32 %v537, %v694
    %v737 = vsub.f32 %v565, %v707
    %v738 = vsub.f32 %v540, %v694
    %v739 = vsub.f32 %v568, %v707
    %v740 = vsub.f32 %v542, %v694
    %v741 = vsub.f32 %v570, %v707
    %v742 = vsub.f32 %v545, %v694
    %v743 = vsub.f32 %v573, %v707
    %v744 = vsub.f32 %v547, %v694
    %v745 = vsub.f32 %v575, %v707
    %v746 = vsub.f32 %v550, %v694
    %v747 = vsub.f32 %v578, %v707
    %v748 = vsub.f32 %v635, %v720
    %v749 = vsub.f32 %v663, %v733
    %v750 = vsub.f32 %v637, %v720
    %v751 = vsub.f32 %v665, %v733
    %v752 = vsub.f32 %v640, %v720
    %v753 = vsub.f32 %v668, %v733
    %v754 = vsub.f32 %v642, %v720
    %v755 = vsub.f32 %v670, %v733
    %v756 = vsub.f32 %v645, %v720
    %v757 = vsub.f32 %v673, %v733
    %v758 = vsub.f32 %v647, %v720
    %v759 = vsub.f32 %v675, %v733
    %v760 = vsub.f32 %v650, %v720
    %v761 = vsub.f32 %v678, %v733
    %v762 = vmul.f32 %v734, 1.442695
    %v763 = vpow.pop %v762
    %v764 = vmul.f32 %v735, 1.442695
    %v765 = vpow.pop %v764
    %v766 = vmul.f32 %v736, 1.442695
    %v767 = vpow.pop %v766
    %v768 = vmul.f32 %v737, 1.442695
    %v769 = vpow.pop %v768
    %v770 = vmul.f32 %v738, 1.442695
    %v771 = vpow.pop %v770
    %v772 = vmul.f32 %v739, 1.442695
    %v773 = vpow.pop %v772
    %v774 = vmul.f32 %v740, 1.442695
    %v775 = vpow.pop %v774
    %v776 = vmul.f32 %v741, 1.442695
    %v777 = vpow.pop %v776
    %v778 = vmul.f32 %v742, 1.442695
    %v779 = vpow.pop %v778
    %v780 = vmul.f32 %v743, 1.442695
    %v781 = vpow.pop %v780
    %v782 = vmul.f32 %v744, 1.442695
    %v783 = vpow.pop %v782
    %v784 = vmul.f32 %v745, 1.442695
    %v785 = vpow.pop %v784
    %v786 = vmul.f32 %v746, 1.442695
    %v787 = vpow.pop %v786
    %v788 = vmul.f32 %v747, 1.442695
    %v789 = vpow.pop %v788
    %v790 = vmul.f32 %v748, 1.442695
    %v791 = vpow.pop %v790
    %v792 = vmul.f32 %v749, 1.442695
    %v793 = vpow.pop %v792
    %v794 = vmul.f32 %v750, 1.442695
    %v795 = vpow.pop %v794
    %v796 = vmul.f32 %v751, 1.442695
    %v797 = vpow.pop %v796
    %v798 = vmul.f32 %v752, 1.442695
    %v799 = vpow.pop %v798
    %v800 = vmul.f32 %v753, 1.442695
    %v801 = vpow.pop %v800
    %v802 = vmul.f32 %v754, 1.442695
    %v803 = vpow.pop %v802
    %v804 = vmul.f32 %v755, 1.442695
    %v805 = vpow.pop %v804
    %v806 = vmul.f32 %v756, 1.442695
    %v807 = vpow.pop %v806
    %v808 = vmul.f32 %v757, 1.442695
    %v809 = vpow.pop %v808
    %v810 = vmul.f32 %v758, 1.442695
    %v811 = vpow.pop %v810
    %v812 = vmul.f32 %v759, 1.442695
    %v813 = vpow.pop %v812
    %v814 = vmul.f32 %v760, 1.442695
    %v815 = vpow.pop %v814
    %v816 = vmul.f32 %v761, 1.442695
    %v817 = vpow.pop %v816
    %v818 = vadd.f32 %v763, %v767
    %v819 = vadd.f32 %v818, %v771
    %v820 = vadd.f32 %v819, %v775
    %v821 = vadd.f32 %v820, %v779
    %v822 = vadd.f32 %v821, %v783
    %v823 = vsel %vm686, %v787, 0.0
    %v824 = vadd.f32 %v822, %v823
    %v825 = vrot.slane %v824, 4
    %v826 = vadd.f32 %v824, %v825
    %v827 = vrot.slane %v826, 2
    %v828 = vadd.f32 %v826, %v827
    %v829 = vrot.slane %v828, 1
    %v830 = vadd.f32 %v828, %v829
    %v831 = vadd.f32 %v765, %v769
    %v832 = vadd.f32 %v831, %v773
    %v833 = vadd.f32 %v832, %v777
    %v834 = vadd.f32 %v833, %v781
    %v835 = vadd.f32 %v834, %v785
    %v836 = vsel %vm686, %v789, 0.0
    %v837 = vadd.f32 %v835, %v836
    %v838 = vrot.slane %v837, 4
    %v839 = vadd.f32 %v837, %v838
    %v840 = vrot.slane %v839, 2
    %v841 = vadd.f32 %v839, %v840
    %v842 = vrot.slane %v841, 1
    %v843 = vadd.f32 %v841, %v842
    %v844 = vadd.f32 %v791, %v795
    %v845 = vadd.f32 %v844, %v799
    %v846 = vadd.f32 %v845, %v803
    %v847 = vadd.f32 %v846, %v807
    %v848 = vadd.f32 %v847, %v811
    %v849 = vsel %vm686, %v815, 0.0
    %v850 = vadd.f32 %v848, %v849
    %v851 = vrot.slane %v850, 4
    %v852 = vadd.f32 %v850, %v851
    %v853 = vrot.slane %v852, 2
    %v854 = vadd.f32 %v852, %v853
    %v855 = vrot.slane %v854, 1
    %v856 = vadd.f32 %v854, %v855
    %v857 = vadd.f32 %v793, %v797
    %v858 = vadd.f32 %v857, %v801
    %v859 = vadd.f32 %v858, %v805
    %v860 = vadd.f32 %v859, %v809
    %v861 = vadd.f32 %v860, %v813
    %v862 = vsel %vm686, %v817, 0.0
    %v863 = vadd.f32 %v861, %v862
    %v864 = vrot.slane %v863, 4
    %v865 = vadd.f32 %v863, %v864
    %v866 = vrot.slane %v865, 2
    %v867 = vadd.f32 %v865, %v866
    %v868 = vrot.slane %v867, 1
    %v869 = vadd.f32 %v867, %v868
    %v870 = vrcp.pop %v830
    %v871 = vrcp.pop %v843
    %v872 = vrcp.pop %v856
    %v873 = vrcp.pop %v869
    %v874 = vmul.f32 %v763, %v870
    %v875 = vmul.f32 %v765, %v871
    %v876 = vmul.f32 %v767, %v870
    %v877 = vmul.f32 %v769, %v871
    %v878 = vmul.f32 %v771, %v870
    %v879 = vmul.f32 %v773, %v871
    %v880 = vmul.f32 %v775, %v870
    %v881 = vmul.f32 %v777, %v871
    %v882 = vmul.f32 %v779, %v870
    %v883 = vmul.f32 %v781, %v871
    %v884 = vmul.f32 %v783, %v870
    %v885 = vmul.f32 %v785, %v871
    %v886 = vmul.f32 %v787, %v870
    %v887 = vmul.f32 %v789, %v871
    %v888 = vmul.f32 %v791, %v872
    %v889 = vmul.f32 %v793, %v873
    %v890 = vmul.f32 %v795, %v872
    %v891 = vmul.f32 %v797, %v873
    %v892 = vmul.f32 %v799, %v872
    %v893 = vmul.f32 %v801, %v873
    %v894 = vmul.f32 %v803, %v872
    %v895 = vmul.f32 %v805, %v873
    %v896 = vmul.f32 %v807, %v872
    %v897 = vmul.f32 %v809, %v873
    %v898 = vmul.f32 %v811, %v872
    %v899 = vmul.f32 %v813, %v873
    %v900 = vmul.f32 %v815, %v872
    %v901 = vmul.f32 %v817, %v873
    %v902 = vpack.c.bf16 %v875, %v874
    %v903 = vpack.c.bf16 %v877, %v876
    %v904 = vpack.c.bf16 %v879, %v878
    %v905 = vpack.c.bf16 %v881, %v880
    %v906 = vpack.c.bf16 %v883, %v882
    %v907 = vpack.c.bf16 %v885, %v884
    %v908 = vpack.c.bf16 %v887, %v886
    %v909 = vpack.c.bf16 %v889, %v888
    %v910 = vpack.c.bf16 %v891, %v890
    %v911 = vpack.c.bf16 %v893, %v892
    %v912 = vpack.c.bf16 %v895, %v894
    %v913 = vpack.c.bf16 %v897, %v896
    %v914 = vpack.c.bf16 %v899, %v898
    %v915 = vpack.c.bf16 %v901, %v900
    %v918 = vunpack.c.l.b16 %v476
    %v919 = vunpack.c.l.b16 %v477
    %v920 = vpack.c.b16 %v919, %v918
    %v928 = vunpack.c.l.b16 %v902
    %v929 = vunpack.c.h.b16 %v902
    %v930 = vunpack.c.l.b16 %v903
    %v931 = vunpack.c.h.b16 %v903
    %v932 = vunpack.c.l.b16 %v904
    %v933 = vunpack.c.h.b16 %v904
    %v934 = vunpack.c.l.b16 %v905
    %v935 = vunpack.c.h.b16 %v905
    %v936 = vunpack.c.l.b16 %v906
    %v937 = vunpack.c.h.b16 %v906
    %v938 = vunpack.c.l.b16 %v907
    %v939 = vunpack.c.h.b16 %v907
    %v940 = vunpack.c.l.b16 %v908
    %v941 = vunpack.c.h.b16 %v908
    %v942 = vpack.c.b16 %v930, %v928
    %v943 = vpack.c.b16 %v931, %v929
    %v944 = vpack.c.b16 %v934, %v932
    %v945 = vpack.c.b16 %v935, %v933
    %v946 = vpack.c.b16 %v938, %v936
    %v947 = vpack.c.b16 %v939, %v937
    %v948 = vpack.c.b16 %v940, %v940
    %v949 = vpack.c.b16 %v941, %v941
    %v957 = vsel %vm306, %v920, 0
    %vm959 = vcmask 1040384
    %v961 = vsel %vm959, %v948, 0
    %v964 = vsel %vm959, %v949, 0
    %966 = vmatpush.bf16.msra.mxu0 0
    %967 = vmatpush.bf16.msra.mxu0 0
    %968 = vmatpush.bf16.msra.mxu0 0
    %969 = vmatpush.bf16.msra.mxu0 0
    %970 = vmatpush.bf16.msra.mxu0 %v961
    %971 = vmatpush.bf16.msra.mxu0 %v946
    %972 = vmatpush.bf16.msra.mxu0 %v944
    %973 = vmatpush.bf16.msra.mxu0 %v942
    %974 = vmatmul.bf16.gmra.mxu0 %v957
    %v975 = vpop.f32.mrf.mxu0
    %v976 = vadd.f32 0.0, %v975
    %v977 = vpop.f32.mrf.mxu0
    %v978 = vadd.f32 0.0, %v977
    %979 = vdwg.mxu0
    %980 = vmatpush.bf16.msra.mxu0 0
    %981 = vmatpush.bf16.msra.mxu0 0
    %982 = vmatpush.bf16.msra.mxu0 0
    %983 = vmatpush.bf16.msra.mxu0 0
    %984 = vmatpush.bf16.msra.mxu0 %v964
    %985 = vmatpush.bf16.msra.mxu0 %v947
    %986 = vmatpush.bf16.msra.mxu0 %v945
    %987 = vmatpush.bf16.msra.mxu0 %v943
    %988 = vmatmul.bf16.gmra.mxu0 %v957
    %v989 = vpop.f32.mrf.mxu0
    %v990 = vadd.f32 0.0, %v989
    %v991 = vpop.f32.mrf.mxu0
    %v992 = vadd.f32 0.0, %v991
    %993 = vdwg.mxu0
    %v996 = vunpack.c.l.b16 %v478
    %v997 = vunpack.c.l.b16 %v479
    %v998 = vpack.c.b16 %v997, %v996
    %v1006 = vunpack.c.l.b16 %v909
    %v1007 = vunpack.c.h.b16 %v909
    %v1008 = vunpack.c.l.b16 %v910
    %v1009 = vunpack.c.h.b16 %v910
    %v1010 = vunpack.c.l.b16 %v911
    %v1011 = vunpack.c.h.b16 %v911
    %v1012 = vunpack.c.l.b16 %v912
    %v1013 = vunpack.c.h.b16 %v912
    %v1014 = vunpack.c.l.b16 %v913
    %v1015 = vunpack.c.h.b16 %v913
    %v1016 = vunpack.c.l.b16 %v914
    %v1017 = vunpack.c.h.b16 %v914
    %v1018 = vunpack.c.l.b16 %v915
    %v1019 = vunpack.c.h.b16 %v915
    %v1020 = vpack.c.b16 %v1008, %v1006
    %v1021 = vpack.c.b16 %v1009, %v1007
    %v1022 = vpack.c.b16 %v1012, %v1010
    %v1023 = vpack.c.b16 %v1013, %v1011
    %v1024 = vpack.c.b16 %v1016, %v1014
    %v1025 = vpack.c.b16 %v1017, %v1015
    %v1026 = vpack.c.b16 %v1018, %v1018
    %v1027 = vpack.c.b16 %v1019, %v1019
    %v1035 = vsel %vm306, %v998, 0
    %v1038 = vsel %vm959, %v1026, 0
    %v1041 = vsel %vm959, %v1027, 0
    %1043 = vmatpush.bf16.msra.mxu0 0
    %1044 = vmatpush.bf16.msra.mxu0 0
    %1045 = vmatpush.bf16.msra.mxu0 0
    %1046 = vmatpush.bf16.msra.mxu0 0
    %1047 = vmatpush.bf16.msra.mxu0 %v1038
    %1048 = vmatpush.bf16.msra.mxu0 %v1024
    %1049 = vmatpush.bf16.msra.mxu0 %v1022
    %1050 = vmatpush.bf16.msra.mxu0 %v1020
    %1051 = vmatmul.bf16.gmra.mxu0 %v1035
    %v1052 = vpop.f32.mrf.mxu0
    %v1053 = vadd.f32 0.0, %v1052
    %v1054 = vpop.f32.mrf.mxu0
    %v1055 = vadd.f32 0.0, %v1054
    %1056 = vdwg.mxu0
    %1057 = vmatpush.bf16.msra.mxu0 0
    %1058 = vmatpush.bf16.msra.mxu0 0
    %1059 = vmatpush.bf16.msra.mxu0 0
    %1060 = vmatpush.bf16.msra.mxu0 0
    %1061 = vmatpush.bf16.msra.mxu0 %v1041
    %1062 = vmatpush.bf16.msra.mxu0 %v1025
    %1063 = vmatpush.bf16.msra.mxu0 %v1023
    %1064 = vmatpush.bf16.msra.mxu0 %v1021
    %1065 = vmatmul.bf16.gmra.mxu0 %v1035
    %v1066 = vpop.f32.mrf.mxu0
    %v1067 = vadd.f32 0.0, %v1066
    %v1068 = vpop.f32.mrf.mxu0
    %v1069 = vadd.f32 0.0, %v1068
    %1070 = vdwg.mxu0
    %v1071 = vpack.c.bf16 %v978, %v976
    %v1072 = vpack.c.bf16 %v992, %v990
    %v1073 = vpack.c.bf16 %v1055, %v1053
    %v1074 = vpack.c.bf16 %v1069, %v1067
    %1076 = vset.pattern.permute.xlu0 0
    %1077 = vperm.xlu0 %1076, %v81
    %v1078 = vpop.permute.xlu0 %1077
    %1081 = vset.pattern.permute.xlu0 0
    %1082 = vperm.xlu0 %1081, %v82
    %v1083 = vpop.permute.xlu0 %1082
    %1086 = vset.pattern.permute.xlu0 0
    %1087 = vperm.xlu0 %1086, %v83
    %v1088 = vpop.permute.xlu0 %1087
    %1091 = vset.pattern.permute.xlu0 0
    %1092 = vperm.xlu0 %1091, %v84
    %v1093 = vpop.permute.xlu0 %1092
    %v1099 = vunpack.c.l.b16 %v37
    %v1100 = vunpack.c.l.b16 %v38
    %v1101 = vunpack.c.l.b16 %v39
    %v1102 = vunpack.c.l.b16 %v40
    %v1103 = vpack.c.b16 %v1100, %v1099
    %v1104 = vpack.c.b16 %v1102, %v1101
    %v1106 = vsel %vm119, %v1103, 0
    %v1109 = vsel %vm119, %v1104, 0
    %1111 = vmatpush.bf16.msra.mxu0 0
    %1112 = vmatpush.bf16.msra.mxu0 0
    %1113 = vmatpush.bf16.msra.mxu0 0
    %1114 = vmatpush.bf16.msra.mxu0 0
    %1115 = vmatpush.bf16.msra.mxu0 0
    %1116 = vmatpush.bf16.msra.mxu0 0
    %1117 = vmatpush.bf16.msra.mxu0 %v1073
    %1118 = vmatpush.bf16.msra.mxu0 %v1071
    %1119 = vmatmul.bf16.gmra.mxu0 %v1106
    %v1120 = vpop.f32.mrf.mxu0
    %v1121 = vadd.f32 %v1078, %v1120
    %v1122 = vpop.f32.mrf.mxu0
    %v1123 = vadd.f32 %v1083, %v1122
    %1124 = vmatmul.bf16.gmra.mxu0 %v1109
    %v1125 = vpop.f32.mrf.mxu0
    %v1126 = vadd.f32 %v1088, %v1125
    %v1127 = vpop.f32.mrf.mxu0
    %v1128 = vadd.f32 %v1093, %v1127
    %1129 = vdwg.mxu0
    %1130 = vmatpush.bf16.msra.mxu0 0
    %1131 = vmatpush.bf16.msra.mxu0 0
    %1132 = vmatpush.bf16.msra.mxu0 0
    %1133 = vmatpush.bf16.msra.mxu0 0
    %1134 = vmatpush.bf16.msra.mxu0 0
    %1135 = vmatpush.bf16.msra.mxu0 0
    %1136 = vmatpush.bf16.msra.mxu0 %v1074
    %1137 = vmatpush.bf16.msra.mxu0 %v1072
    %1138 = vmatmul.bf16.gmra.mxu0 %v1106
    %v1139 = vpop.f32.mrf.mxu0
    %v1140 = vadd.f32 %v1078, %v1139
    %v1141 = vpop.f32.mrf.mxu0
    %v1142 = vadd.f32 %v1083, %v1141
    %1143 = vmatmul.bf16.gmra.mxu0 %v1109
    %v1144 = vpop.f32.mrf.mxu0
    %v1145 = vadd.f32 %v1088, %v1144
    %v1146 = vpop.f32.mrf.mxu0
    %v1147 = vadd.f32 %v1093, %v1146
    %1148 = vdwg.mxu0
    %1149 = vst [vmem:[#allocation2] sm:$0xff] %v1121
    %1150 = vst [vmem:[#allocation2 + $0x8] sm:$0xff] %v1140
    %1151 = vst [vmem:[#allocation2 + $0x10] sm:$0xff] %v1123
    %1152 = vst [vmem:[#allocation2 + $0x18] sm:$0xff] %v1142
    %1153 = vst [vmem:[#allocation2 + $0x20] sm:$0xff] %v1126
    %1154 = vst [vmem:[#allocation2 + $0x28] sm:$0xff] %v1145
    %1155 = vst [vmem:[#allocation2 + $0x30] sm:$0xff] %v1128
    %1156 = vst [vmem:[#allocation2 + $0x38] sm:$0xff] %v1147
    %s1157 = scalar_lea.vmem %s0, 32
    %v1158 = vld [vmem:[%s1157] sm:$0xff]
    %v1159 = vld [vmem:[%s1157 + $0x8] sm:$0xff]
    %v1160 = vld [vmem:[%s1157 + $0x10] sm:$0xff]
    %v1161 = vld [vmem:[%s1157 + $0x18] sm:$0xff]
    %v1166 = vunpack.c.l.b16 %v1158
    %v1167 = vunpack.c.h.b16 %v1158
    %v1168 = vunpack.c.l.b16 %v1159
    %v1169 = vunpack.c.h.b16 %v1159
    %v1170 = vunpack.c.l.b16 %v1160
    %v1171 = vunpack.c.h.b16 %v1160
    %v1172 = vunpack.c.l.b16 %v1161
    %v1173 = vunpack.c.h.b16 %v1161
    %v1174 = vpack.c.b16 %v1168, %v1166
    %v1175 = vpack.c.b16 %v1169, %v1167
    %v1176 = vpack.c.b16 %v1172, %v1170
    %v1177 = vpack.c.b16 %v1173, %v1171
    %1182 = vmatpush.bf16.msra.mxu0 0
    %1183 = vmatpush.bf16.msra.mxu0 0
    %1184 = vmatpush.bf16.msra.mxu0 0
    %1185 = vmatpush.bf16.msra.mxu0 0
    %1186 = vmatpush.bf16.msra.mxu0 0
    %1187 = vmatpush.bf16.msra.mxu0 0
    %1188 = vmatpush.bf16.msra.mxu0 %v1176
    %1189 = vmatpush.bf16.msra.mxu0 %v1174
    %1190 = vmatmul.bf16.gmra.mxu0 %v121
    %v1191 = vpop.f32.mrf.mxu0
    %v1192 = vadd.f32 0.0, %v1191
    %v1193 = vpop.f32.mrf.mxu0
    %v1194 = vadd.f32 0.0, %v1193
    %1195 = vmatmul.bf16.gmra.mxu0 %v124
    %v1196 = vpop.f32.mrf.mxu0
    %v1197 = vadd.f32 0.0, %v1196
    %v1198 = vpop.f32.mrf.mxu0
    %v1199 = vadd.f32 0.0, %v1198
    %1200 = vdwg.mxu0
    %1201 = vmatpush.bf16.msra.mxu0 0
    %1202 = vmatpush.bf16.msra.mxu0 0
    %1203 = vmatpush.bf16.msra.mxu0 0
    %1204 = vmatpush.bf16.msra.mxu0 0
    %1205 = vmatpush.bf16.msra.mxu0 0
    %1206 = vmatpush.bf16.msra.mxu0 0
    %1207 = vmatpush.bf16.msra.mxu0 %v1177
    %1208 = vmatpush.bf16.msra.mxu0 %v1175
    %1209 = vmatmul.bf16.gmra.mxu0 %v121
    %v1210 = vpop.f32.mrf.mxu0
    %v1211 = vadd.f32 0.0, %v1210
    %v1212 = vpop.f32.mrf.mxu0
    %v1213 = vadd.f32 0.0, %v1212
    %1214 = vmatmul.bf16.gmra.mxu0 %v124
    %v1215 = vpop.f32.mrf.mxu0
    %v1216 = vadd.f32 0.0, %v1215
    %v1217 = vpop.f32.mrf.mxu0
    %v1218 = vadd.f32 0.0, %v1217
    %1219 = vdwg.mxu0
    %v1220 = vmul.f32 %v1192, 0.25
    %v1221 = vmul.f32 %v1211, 0.25
    %v1222 = vmul.f32 %v1194, 0.25
    %v1223 = vmul.f32 %v1213, 0.25
    %v1224 = vmul.f32 %v1197, 0.25
    %v1225 = vmul.f32 %v1216, 0.25
    %v1226 = vmul.f32 %v1199, 0.25
    %v1227 = vmul.f32 %v1218, 0.25
    %1228 = vmatpush.bf16.msra.mxu0 %v243
    %1229 = vmatpush.bf16.msra.mxu0 %v242
    %1230 = vmatpush.bf16.msra.mxu0 %v241
    %1231 = vmatpush.bf16.msra.mxu0 %v240
    %1232 = vmatpush.bf16.msra.mxu0 %v239
    %1233 = vmatpush.bf16.msra.mxu0 %v238
    %1234 = vmatpush.bf16.msra.mxu0 %v237
    %1235 = vmatpush.bf16.msra.mxu0 %v236
    %1236 = vmatmul.bf16.gmra.mxu0 %v1174
    %v1237 = vpop.f32.mrf.mxu0
    %v1238 = vadd.f32 0.0, %v1237
    %v1239 = vpop.f32.mrf.mxu0
    %v1240 = vadd.f32 0.0, %v1239
    %1241 = vmatmul.bf16.gmra.mxu0 %v1176
    %v1242 = vpop.f32.mrf.mxu0
    %v1243 = vadd.f32 0.0, %v1242
    %v1244 = vpop.f32.mrf.mxu0
    %v1245 = vadd.f32 0.0, %v1244
    %1246 = vdwg.mxu0
    %1247 = vmatpush.bf16.msra.mxu0 %v251
    %1248 = vmatpush.bf16.msra.mxu0 %v250
    %1249 = vmatpush.bf16.msra.mxu0 %v249
    %1250 = vmatpush.bf16.msra.mxu0 %v248
    %1251 = vmatpush.bf16.msra.mxu0 %v247
    %1252 = vmatpush.bf16.msra.mxu0 %v246
    %1253 = vmatpush.bf16.msra.mxu0 %v245
    %1254 = vmatpush.bf16.msra.mxu0 %v244
    %1255 = vmatmul.bf16.gmra.mxu0 %v1175
    %v1256 = vpop.f32.mrf.mxu0
    %v1257 = vadd.f32 %v1238, %v1256
    %v1258 = vpop.f32.mrf.mxu0
    %v1259 = vadd.f32 %v1240, %v1258
    %1260 = vmatmul.bf16.gmra.mxu0 %v1177
    %v1261 = vpop.f32.mrf.mxu0
    %v1262 = vadd.f32 %v1243, %v1261
    %v1263 = vpop.f32.mrf.mxu0
    %v1264 = vadd.f32 %v1245, %v1263
    %1265 = vdwg.mxu0
    %v1266 = vsel %vm306, %v1257, 0.0
    %v1267 = vsel %vm306, %v1259, 0.0
    %v1268 = vadd.f32 %v1266, %v1267
    %v1269 = vsel %vm306, %v1262, 0.0
    %v1270 = vadd.f32 %v1268, %v1269
    %v1271 = vsel %vm306, %v1264, 0.0
    %v1272 = vadd.f32 %v1270, %v1271
    %v1273 = vrot.slane %v1272, 4
    %v1274 = vadd.f32 %v1272, %v1273
    %v1275 = vrot.slane %v1274, 2
    %v1276 = vadd.f32 %v1274, %v1275
    %v1277 = vrot.slane %v1276, 1
    %v1278 = vadd.f32 %v1276, %v1277
    %v1279 = vmul.f32 %v1278, %v326
    %v1280 = vsub.f32 %v1257, %v1279
    %v1281 = vsub.f32 %v1259, %v1279
    %v1282 = vsub.f32 %v1262, %v1279
    %v1283 = vsub.f32 %v1264, %v1279
    %v1284 = vmul.f32 %v1280, %v1280
    %v1285 = vmul.f32 %v1281, %v1281
    %v1286 = vmul.f32 %v1282, %v1282
    %v1287 = vmul.f32 %v1283, %v1283
    %v1288 = vsel %vm306, %v1284, 0.0
    %v1289 = vsel %vm306, %v1285, 0.0
    %v1290 = vadd.f32 %v1288, %v1289
    %v1291 = vsel %vm306, %v1286, 0.0
    %v1292 = vadd.f32 %v1290, %v1291
    %v1293 = vsel %vm306, %v1287, 0.0
    %v1294 = vadd.f32 %v1292, %v1293
    %v1295 = vrot.slane %v1294, 4
    %v1296 = vadd.f32 %v1294, %v1295
    %v1297 = vrot.slane %v1296, 2
    %v1298 = vadd.f32 %v1296, %v1297
    %v1299 = vrot.slane %v1298, 1
    %v1300 = vadd.f32 %v1298, %v1299
    %v1301 = vmul.f32 %v1300, %v326
    %v1302 = vadd.f32 %v1301, 1e-05
    %v1303 = vrsqrt.pop %v1302
    %v1304 = vmul.f32 %v1303, %v1302
    %v1305 = vmul.f32 %v1304, %v1303
    %v1306 = vmul.f32 0.5, %v1305
    %v1307 = vsub.f32 1.5, %v1306
    %v1308 = vmul.f32 %v1303, %v1307
    %vm1309 = vweird.f32 %v1302
    %vm1310 = vweird.f32 %v1303
    %vm1311 = vmor %vm1309, %vm1310
    %v1312 = vsel %vm1311, %v1303, %v1308
    %v1313 = vmul.f32 %v1280, %v1312
    %v1314 = vmul.f32 %v1281, %v1312
    %v1315 = vmul.f32 %v1282, %v1312
    %v1316 = vmul.f32 %v1283, %v1312
    %v1317 = vpack.c.bf16 %v1314, %v1313
    %v1318 = vpack.c.bf16 %v1316, %v1315
    %1319 = vmatpush.bf16.msra.mxu0 0
    %1320 = vmatpush.bf16.msra.mxu0 0
    %1321 = vmatpush.bf16.msra.mxu0 0
    %1322 = vmatpush.bf16.msra.mxu0 0
    %1323 = vmatpush.bf16.msra.mxu0 0
    %1324 = vmatpush.bf16.msra.mxu0 0
    %1325 = vmatpush.bf16.msra.mxu0 %v1318
    %1326 = vmatpush.bf16.msra.mxu0 %v1317
    %1327 = vmatmul.bf16.gmra.mxu0 %v428
    %v1328 = vpop.f32.mrf.mxu0
    %v1329 = vadd.f32 %v370, %v1328
    %v1330 = vpop.f32.mrf.mxu0
    %v1331 = vadd.f32 %v375, %v1330
    %1332 = vmatmul.bf16.gmra.mxu0 %v431
    %v1333 = vpop.f32.mrf.mxu0
    %v1334 = vadd.f32 %v380, %v1333
    %v1335 = vpop.f32.mrf.mxu0
    %v1336 = vadd.f32 %v385, %v1335
    %1337 = vmatmul.bf16.gmra.mxu0 %v434
    %v1338 = vpop.f32.mrf.mxu0
    %v1339 = vadd.f32 %v390, %v1338
    %v1340 = vpop.f32.mrf.mxu0
    %v1341 = vadd.f32 %v395, %v1340
    %1342 = vmatmul.bf16.gmra.mxu0 %v437
    %v1343 = vpop.f32.mrf.mxu0
    %v1344 = vadd.f32 %v400, %v1343
    %v1345 = vpop.f32.mrf.mxu0
    %v1346 = vadd.f32 %v405, %v1345
    %1347 = vdwg.mxu0
    %v1348 = vpack.c.bf16 %v1221, %v1220
    %v1349 = vpack.c.bf16 %v1223, %v1222
    %v1350 = vpack.c.bf16 %v1225, %v1224
    %v1351 = vpack.c.bf16 %v1227, %v1226
    %v1352 = vpack.c.bf16 %v1329, %v1329
    %v1353 = vpack.c.bf16 %v1331, %v1331
    %v1354 = vpack.c.bf16 %v1334, %v1334
    %v1355 = vpack.c.bf16 %v1336, %v1336
    %v1356 = vpack.c.bf16 %v1339, %v1339
    %v1357 = vpack.c.bf16 %v1341, %v1341
    %v1358 = vpack.c.bf16 %v1344, %v1344
    %v1359 = vpack.c.bf16 %v1346, %v1346
    %v1362 = vunpack.c.l.b16 %v1352
    %v1363 = vunpack.c.l.b16 %v1353
    %v1364 = vpack.c.b16 %v1363, %v1362
    %1366 = vxpose.xlu0.c.b16.start [1/8] %v1364, 128
    %1367 = vxpose.xlu0.c.b16.cont [2/8] 0, 128
    %1368 = vxpose.xlu0.c.b16.cont [3/8] 0, 128
    %1369 = vxpose.xlu0.c.b16.cont [4/8] 0, 128
    %1370 = vxpose.xlu0.c.b16.cont [5/8] 0, 128
    %1371 = vxpose.xlu0.c.b16.cont [6/8] 0, 128
    %1372 = vxpose.xlu0.c.b16.cont [7/8] 0, 128
    %1373 = vxpose.xlu0.c.b16.end [8/8] 0, 128
    %v1374 = vpop.trf.xlu0
    %v1375 = vpop.trf.xlu0
    %v1376 = vpop.trf.xlu0
    %v1377 = vpop.trf.xlu0
    %v1378 = vpop.trf.xlu0
    %v1379 = vpop.trf.xlu0
    %v1380 = vpop.trf.xlu0
    %v1381 = vpop.trf.xlu0
    %v1384 = vunpack.c.l.b16 %v1348
    %v1385 = vunpack.c.h.b16 %v1348
    %v1386 = vunpack.c.l.b16 %v1349
    %v1387 = vunpack.c.h.b16 %v1349
    %v1388 = vpack.c.b16 %v1386, %v1384
    %v1389 = vpack.c.b16 %v1387, %v1385
    %v1393 = vsel %vm512, %v1374, 0
    %v1396 = vsel %vm512, %v1375, 0
    %v1399 = vsel %vm512, %v1376, 0
    %v1402 = vsel %vm512, %v1377, 0
    %1404 = vmatpush.bf16.msra.mxu0 0
    %1405 = vmatpush.bf16.msra.mxu0 0
    %1406 = vmatpush.bf16.msra.mxu0 0
    %1407 = vmatpush.bf16.msra.mxu0 0
    %1408 = vmatpush.bf16.msra.mxu0 0
    %1409 = vmatpush.bf16.msra.mxu0 0
    %1410 = vmatpush.bf16.msra.mxu0 0
    %1411 = vmatpush.bf16.msra.mxu0 %v1388
    %1412 = vmatmul.bf16.gmra.mxu0 %v1393
    %v1413 = vpop.f32.mrf.mxu0
    %v1414 = vadd.f32 0.0, %v1413
    %v1415 = vpop.f32.mrf.mxu0
    %v1416 = vadd.f32 0.0, %v1415
    %1417 = vmatmul.bf16.gmra.mxu0 %v1396
    %v1418 = vpop.f32.mrf.mxu0
    %v1419 = vadd.f32 0.0, %v1418
    %v1420 = vpop.f32.mrf.mxu0
    %v1421 = vadd.f32 0.0, %v1420
    %1422 = vmatmul.bf16.gmra.mxu0 %v1399
    %v1423 = vpop.f32.mrf.mxu0
    %v1424 = vadd.f32 0.0, %v1423
    %v1425 = vpop.f32.mrf.mxu0
    %v1426 = vadd.f32 0.0, %v1425
    %1427 = vmatmul.bf16.gmra.mxu0 %v1402
    %v1428 = vpop.f32.mrf.mxu0
    %v1429 = vadd.f32 0.0, %v1428
    %v1430 = vpop.f32.mrf.mxu0
    %1431 = vdwg.mxu0
    %1432 = vmatpush.bf16.msra.mxu0 0
    %1433 = vmatpush.bf16.msra.mxu0 0
    %1434 = vmatpush.bf16.msra.mxu0 0
    %1435 = vmatpush.bf16.msra.mxu0 0
    %1436 = vmatpush.bf16.msra.mxu0 0
    %1437 = vmatpush.bf16.msra.mxu0 0
    %1438 = vmatpush.bf16.msra.mxu0 0
    %1439 = vmatpush.bf16.msra.mxu0 %v1389
    %1440 = vmatmul.bf16.gmra.mxu0 %v1393
    %v1441 = vpop.f32.mrf.mxu0
    %v1442 = vadd.f32 0.0, %v1441
    %v1443 = vpop.f32.mrf.mxu0
    %v1444 = vadd.f32 0.0, %v1443
    %1445 = vmatmul.bf16.gmra.mxu0 %v1396
    %v1446 = vpop.f32.mrf.mxu0
    %v1447 = vadd.f32 0.0, %v1446
    %v1448 = vpop.f32.mrf.mxu0
    %v1449 = vadd.f32 0.0, %v1448
    %1450 = vmatmul.bf16.gmra.mxu0 %v1399
    %v1451 = vpop.f32.mrf.mxu0
    %v1452 = vadd.f32 0.0, %v1451
    %v1453 = vpop.f32.mrf.mxu0
    %v1454 = vadd.f32 0.0, %v1453
    %1455 = vmatmul.bf16.gmra.mxu0 %v1402
    %v1456 = vpop.f32.mrf.mxu0
    %v1457 = vadd.f32 0.0, %v1456
    %v1458 = vpop.f32.mrf.mxu0
    %1459 = vdwg.mxu0
    %v1462 = vunpack.c.l.b16 %v1354
    %v1463 = vunpack.c.l.b16 %v1355
    %v1464 = vpack.c.b16 %v1463, %v1462
    %1466 = vxpose.xlu0.c.b16.start [1/8] %v1464, 128
    %1467 = vxpose.xlu0.c.b16.cont [2/8] 0, 128
    %1468 = vxpose.xlu0.c.b16.cont [3/8] 0, 128
    %1469 = vxpose.xlu0.c.b16.cont [4/8] 0, 128
    %1470 = vxpose.xlu0.c.b16.cont [5/8] 0, 128
    %1471 = vxpose.xlu0.c.b16.cont [6/8] 0, 128
    %1472 = vxpose.xlu0.c.b16.cont [7/8] 0, 128
    %1473 = vxpose.xlu0.c.b16.end [8/8] 0, 128
    %v1474 = vpop.trf.xlu0
    %v1475 = vpop.trf.xlu0
    %v1476 = vpop.trf.xlu0
    %v1477 = vpop.trf.xlu0
    %v1478 = vpop.trf.xlu0
    %v1479 = vpop.trf.xlu0
    %v1480 = vpop.trf.xlu0
    %v1481 = vpop.trf.xlu0
    %v1484 = vunpack.c.l.b16 %v1350
    %v1485 = vunpack.c.h.b16 %v1350
    %v1486 = vunpack.c.l.b16 %v1351
    %v1487 = vunpack.c.h.b16 %v1351
    %v1488 = vpack.c.b16 %v1486, %v1484
    %v1489 = vpack.c.b16 %v1487, %v1485
    %v1493 = vsel %vm512, %v1474, 0
    %v1496 = vsel %vm512, %v1475, 0
    %v1499 = vsel %vm512, %v1476, 0
    %v1502 = vsel %vm512, %v1477, 0
    %1504 = vmatpush.bf16.msra.mxu0 0
    %1505 = vmatpush.bf16.msra.mxu0 0
    %1506 = vmatpush.bf16.msra.mxu0 0
    %1507 = vmatpush.bf16.msra.mxu0 0
    %1508 = vmatpush.bf16.msra.mxu0 0
    %1509 = vmatpush.bf16.msra.mxu0 0
    %1510 = vmatpush.bf16.msra.mxu0 0
    %1511 = vmatpush.bf16.msra.mxu0 %v1488
    %1512 = vmatmul.bf16.gmra.mxu0 %v1493
    %v1513 = vpop.f32.mrf.mxu0
    %v1514 = vadd.f32 0.0, %v1513
    %v1515 = vpop.f32.mrf.mxu0
    %v1516 = vadd.f32 0.0, %v1515
    %1517 = vmatmul.bf16.gmra.mxu0 %v1496
    %v1518 = vpop.f32.mrf.mxu0
    %v1519 = vadd.f32 0.0, %v1518
    %v1520 = vpop.f32.mrf.mxu0
    %v1521 = vadd.f32 0.0, %v1520
    %1522 = vmatmul.bf16.gmra.mxu0 %v1499
    %v1523 = vpop.f32.mrf.mxu0
    %v1524 = vadd.f32 0.0, %v1523
    %v1525 = vpop.f32.mrf.mxu0
    %v1526 = vadd.f32 0.0, %v1525
    %1527 = vmatmul.bf16.gmra.mxu0 %v1502
    %v1528 = vpop.f32.mrf.mxu0
    %v1529 = vadd.f32 0.0, %v1528
    %v1530 = vpop.f32.mrf.mxu0
    %1531 = vdwg.mxu0
    %1532 = vmatpush.bf16.msra.mxu0 0
    %1533 = vmatpush.bf16.msra.mxu0 0
    %1534 = vmatpush.bf16.msra.mxu0 0
    %1535 = vmatpush.bf16.msra.mxu0 0
    %1536 = vmatpush.bf16.msra.mxu0 0
    %1537 = vmatpush.bf16.msra.mxu0 0
    %1538 = vmatpush.bf16.msra.mxu0 0
    %1539 = vmatpush.bf16.msra.mxu0 %v1489
    %1540 = vmatmul.bf16.gmra.mxu0 %v1493
    %v1541 = vpop.f32.mrf.mxu0
    %v1542 = vadd.f32 0.0, %v1541
    %v1543 = vpop.f32.mrf.mxu0
    %v1544 = vadd.f32 0.0, %v1543
    %1545 = vmatmul.bf16.gmra.mxu0 %v1496
    %v1546 = vpop.f32.mrf.mxu0
    %v1547 = vadd.f32 0.0, %v1546
    %v1548 = vpop.f32.mrf.mxu0
    %v1549 = vadd.f32 0.0, %v1548
    %1550 = vmatmul.bf16.gmra.mxu0 %v1499
    %v1551 = vpop.f32.mrf.mxu0
    %v1552 = vadd.f32 0.0, %v1551
    %v1553 = vpop.f32.mrf.mxu0
    %v1554 = vadd.f32 0.0, %v1553
    %1555 = vmatmul.bf16.gmra.mxu0 %v1502
    %v1556 = vpop.f32.mrf.mxu0
    %v1557 = vadd.f32 0.0, %v1556
    %v1558 = vpop.f32.mrf.mxu0
    %1559 = vdwg.mxu0
    %v1560 = vmax.f32 %v1414, %v1416
    %v1561 = vmax.f32 %v1560, %v1419
    %v1562 = vmax.f32 %v1561, %v1421
    %v1563 = vmax.f32 %v1562, %v1424
    %v1564 = vmax.f32 %v1563, %v1426
    %v1565 = vsel %vm686, %v1429, -inf
    %v1566 = vmax.f32 %v1564, %v1565
    %v1567 = vrot.slane %v1566, 4
    %v1568 = vmax.f32 %v1566, %v1567
    %v1569 = vrot.slane %v1568, 2
    %v1570 = vmax.f32 %v1568, %v1569
    %v1571 = vrot.slane %v1570, 1
    %v1572 = vmax.f32 %v1570, %v1571
    %v1573 = vmax.f32 %v1442, %v1444
    %v1574 = vmax.f32 %v1573, %v1447
    %v1575 = vmax.f32 %v1574, %v1449
    %v1576 = vmax.f32 %v1575, %v1452
    %v1577 = vmax.f32 %v1576, %v1454
    %v1578 = vsel %vm686, %v1457, -inf
    %v1579 = vmax.f32 %v1577, %v1578
    %v1580 = vrot.slane %v1579, 4
    %v1581 = vmax.f32 %v1579, %v1580
    %v1582 = vrot.slane %v1581, 2
    %v1583 = vmax.f32 %v1581, %v1582
    %v1584 = vrot.slane %v1583, 1
    %v1585 = vmax.f32 %v1583, %v1584
    %v1586 = vmax.f32 %v1514, %v1516
    %v1587 = vmax.f32 %v1586, %v1519
    %v1588 = vmax.f32 %v1587, %v1521
    %v1589 = vmax.f32 %v1588, %v1524
    %v1590 = vmax.f32 %v1589, %v1526
    %v1591 = vsel %vm686, %v1529, -inf
    %v1592 = vmax.f32 %v1590, %v1591
    %v1593 = vrot.slane %v1592, 4
    %v1594 = vmax.f32 %v1592, %v1593
    %v1595 = vrot.slane %v1594, 2
    %v1596 = vmax.f32 %v1594, %v1595
    %v1597 = vrot.slane %v1596, 1
    %v1598 = vmax.f32 %v1596, %v1597
    %v1599 = vmax.f32 %v1542, %v1544
    %v1600 = vmax.f32 %v1599, %v1547
    %v1601 = vmax.f32 %v1600, %v1549
    %v1602 = vmax.f32 %v1601, %v1552
    %v1603 = vmax.f32 %v1602, %v1554
    %v1604 = vsel %vm686, %v1557, -inf
    %v1605 = vmax.f32 %v1603, %v1604
    %v1606 = vrot.slane %v1605, 4
    %v1607 = vmax.f32 %v1605, %v1606
    %v1608 = vrot.slane %v1607, 2
    %v1609 = vmax.f32 %v1607, %v1608
    %v1610 = vrot.slane %v1609, 1
    %v1611 = vmax.f32 %v1609, %v1610
    %v1612 = vsub.f32 %v1414, %v1572
    %v1613 = vsub.f32 %v1442, %v1585
    %v1614 = vsub.f32 %v1416, %v1572
    %v1615 = vsub.f32 %v1444, %v1585
    %v1616 = vsub.f32 %v1419, %v1572
    %v1617 = vsub.f32 %v1447, %v1585
    %v1618 = vsub.f32 %v1421, %v1572
    %v1619 = vsub.f32 %v1449, %v1585
    %v1620 = vsub.f32 %v1424, %v1572
    %v1621 = vsub.f32 %v1452, %v1585
    %v1622 = vsub.f32 %v1426, %v1572
    %v1623 = vsub.f32 %v1454, %v1585
    %v1624 = vsub.f32 %v1429, %v1572
    %v1625 = vsub.f32 %v1457, %v1585
    %v1626 = vsub.f32 %v1514, %v1598
    %v1627 = vsub.f32 %v1542, %v1611
    %v1628 = vsub.f32 %v1516, %v1598
    %v1629 = vsub.f32 %v1544, %v1611
    %v1630 = vsub.f32 %v1519, %v1598
    %v1631 = vsub.f32 %v1547, %v1611
    %v1632 = vsub.f32 %v1521, %v1598
    %v1633 = vsub.f32 %v1549, %v1611
    %v1634 = vsub.f32 %v1524, %v1598
    %v1635 = vsub.f32 %v1552, %v1611
    %v1636 = vsub.f32 %v1526, %v1598
    %v1637 = vsub.f32 %v1554, %v1611
    %v1638 = vsub.f32 %v1529, %v1598
    %v1639 = vsub.f32 %v1557, %v1611
    %v1640 = vmul.f32 %v1612, 1.442695
    %v1641 = vpow.pop %v1640
    %v1642 = vmul.f32 %v1613, 1.442695
    %v1643 = vpow.pop %v1642
    %v1644 = vmul.f32 %v1614, 1.442695
    %v1645 = vpow.pop %v1644
    %v1646 = vmul.f32 %v1615, 1.442695
    %v1647 = vpow.pop %v1646
    %v1648 = vmul.f32 %v1616, 1.442695
    %v1649 = vpow.pop %v1648
    %v1650 = vmul.f32 %v1617, 1.442695
    %v1651 = vpow.pop %v1650
    %v1652 = vmul.f32 %v1618, 1.442695
    %v1653 = vpow.pop %v1652
    %v1654 = vmul.f32 %v1619, 1.442695
    %v1655 = vpow.pop %v1654
    %v1656 = vmul.f32 %v1620, 1.442695
    %v1657 = vpow.pop %v1656
    %v1658 = vmul.f32 %v1621, 1.442695
    %v1659 = vpow.pop %v1658
    %v1660 = vmul.f32 %v1622, 1.442695
    %v1661 = vpow.pop %v1660
    %v1662 = vmul.f32 %v1623, 1.442695
    %v1663 = vpow.pop %v1662
    %v1664 = vmul.f32 %v1624, 1.442695
    %v1665 = vpow.pop %v1664
    %v1666 = vmul.f32 %v1625, 1.442695
    %v1667 = vpow.pop %v1666
    %v1668 = vmul.f32 %v1626, 1.442695
    %v1669 = vpow.pop %v1668
    %v1670 = vmul.f32 %v1627, 1.442695
    %v1671 = vpow.pop %v1670
    %v1672 = vmul.f32 %v1628, 1.442695
    %v1673 = vpow.pop %v1672
    %v1674 = vmul.f32 %v1629, 1.442695
    %v1675 = vpow.pop %v1674
    %v1676 = vmul.f32 %v1630, 1.442695
    %v1677 = vpow.pop %v1676
    %v1678 = vmul.f32 %v1631, 1.442695
    %v1679 = vpow.pop %v1678
    %v1680 = vmul.f32 %v1632, 1.442695
    %v1681 = vpow.pop %v1680
    %v1682 = vmul.f32 %v1633, 1.442695
    %v1683 = vpow.pop %v1682
    %v1684 = vmul.f32 %v1634, 1.442695
    %v1685 = vpow.pop %v1684
    %v1686 = vmul.f32 %v1635, 1.442695
    %v1687 = vpow.pop %v1686
    %v1688 = vmul.f32 %v1636, 1.442695
    %v1689 = vpow.pop %v1688
    %v1690 = vmul.f32 %v1637, 1.442695
    %v1691 = vpow.pop %v1690
    %v1692 = vmul.f32 %v1638, 1.442695
    %v1693 = vpow.pop %v1692
    %v1694 = vmul.f32 %v1639, 1.442695
    %v1695 = vpow.pop %v1694
    %v1696 = vadd.f32 %v1641, %v1645
    %v1697 = vadd.f32 %v1696, %v1649
    %v1698 = vadd.f32 %v1697, %v1653
    %v1699 = vadd.f32 %v1698, %v1657
    %v1700 = vadd.f32 %v1699, %v1661
    %v1701 = vsel %vm686, %v1665, 0.0
    %v1702 = vadd.f32 %v1700, %v1701
    %v1703 = vrot.slane %v1702, 4
    %v1704 = vadd.f32 %v1702, %v1703
    %v1705 = vrot.slane %v1704, 2
    %v1706 = vadd.f32 %v1704, %v1705
    %v1707 = vrot.slane %v1706, 1
    %v1708 = vadd.f32 %v1706, %v1707
    %v1709 = vadd.f32 %v1643, %v1647
    %v1710 = vadd.f32 %v1709, %v1651
    %v1711 = vadd.f32 %v1710, %v1655
    %v1712 = vadd.f32 %v1711, %v1659
    %v1713 = vadd.f32 %v1712, %v1663
    %v1714 = vsel %vm686, %v1667, 0.0
    %v1715 = vadd.f32 %v1713, %v1714
    %v1716 = vrot.slane %v1715, 4
    %v1717 = vadd.f32 %v1715, %v1716
    %v1718 = vrot.slane %v1717, 2
    %v1719 = vadd.f32 %v1717, %v1718
    %v1720 = vrot.slane %v1719, 1
    %v1721 = vadd.f32 %v1719, %v1720
    %v1722 = vadd.f32 %v1669, %v1673
    %v1723 = vadd.f32 %v1722, %v1677
    %v1724 = vadd.f32 %v1723, %v1681
    %v1725 = vadd.f32 %v1724, %v1685
    %v1726 = vadd.f32 %v1725, %v1689
    %v1727 = vsel %vm686, %v1693, 0.0
    %v1728 = vadd.f32 %v1726, %v1727
    %v1729 = vrot.slane %v1728, 4
    %v1730 = vadd.f32 %v1728, %v1729
    %v1731 = vrot.slane %v1730, 2
    %v1732 = vadd.f32 %v1730, %v1731
    %v1733 = vrot.slane %v1732, 1
    %v1734 = vadd.f32 %v1732, %v1733
    %v1735 = vadd.f32 %v1671, %v1675
    %v1736 = vadd.f32 %v1735, %v1679
    %v1737 = vadd.f32 %v1736, %v1683
    %v1738 = vadd.f32 %v1737, %v1687
    %v1739 = vadd.f32 %v1738, %v1691
    %v1740 = vsel %vm686, %v1695, 0.0
    %v1741 = vadd.f32 %v1739, %v1740
    %v1742 = vrot.slane %v1741, 4
    %v1743 = vadd.f32 %v1741, %v1742
    %v1744 = vrot.slane %v1743, 2
    %v1745 = vadd.f32 %v1743, %v1744
    %v1746 = vrot.slane %v1745, 1
    %v1747 = vadd.f32 %v1745, %v1746
    %v1748 = vrcp.pop %v1708
    %v1749 = vrcp.pop %v1721
    %v1750 = vrcp.pop %v1734
    %v1751 = vrcp.pop %v1747
    %v1752 = vmul.f32 %v1641, %v1748
    %v1753 = vmul.f32 %v1643, %v1749
    %v1754 = vmul.f32 %v1645, %v1748
    %v1755 = vmul.f32 %v1647, %v1749
    %v1756 = vmul.f32 %v1649, %v1748
    %v1757 = vmul.f32 %v1651, %v1749
    %v1758 = vmul.f32 %v1653, %v1748
    %v1759 = vmul.f32 %v1655, %v1749
    %v1760 = vmul.f32 %v1657, %v1748
    %v1761 = vmul.f32 %v1659, %v1749
    %v1762 = vmul.f32 %v1661, %v1748
    %v1763 = vmul.f32 %v1663, %v1749
    %v1764 = vmul.f32 %v1665, %v1748
    %v1765 = vmul.f32 %v1667, %v1749
    %v1766 = vmul.f32 %v1669, %v1750
    %v1767 = vmul.f32 %v1671, %v1751
    %v1768 = vmul.f32 %v1673, %v1750
    %v1769 = vmul.f32 %v1675, %v1751
    %v1770 = vmul.f32 %v1677, %v1750
    %v1771 = vmul.f32 %v1679, %v1751
    %v1772 = vmul.f32 %v1681, %v1750
    %v1773 = vmul.f32 %v1683, %v1751
    %v1774 = vmul.f32 %v1685, %v1750
    %v1775 = vmul.f32 %v1687, %v1751
    %v1776 = vmul.f32 %v1689, %v1750
    %v1777 = vmul.f32 %v1691, %v1751
    %v1778 = vmul.f32 %v1693, %v1750
    %v1779 = vmul.f32 %v1695, %v1751
    %v1780 = vpack.c.bf16 %v1753, %v1752
    %v1781 = vpack.c.bf16 %v1755, %v1754
    %v1782 = vpack.c.bf16 %v1757, %v1756
    %v1783 = vpack.c.bf16 %v1759, %v1758
    %v1784 = vpack.c.bf16 %v1761, %v1760
    %v1785 = vpack.c.bf16 %v1763, %v1762
    %v1786 = vpack.c.bf16 %v1765, %v1764
    %v1787 = vpack.c.bf16 %v1767, %v1766
    %v1788 = vpack.c.bf16 %v1769, %v1768
    %v1789 = vpack.c.bf16 %v1771, %v1770
    %v1790 = vpack.c.bf16 %v1773, %v1772
    %v1791 = vpack.c.bf16 %v1775, %v1774
    %v1792 = vpack.c.bf16 %v1777, %v1776
    %v1793 = vpack.c.bf16 %v1779, %v1778
    %v1796 = vunpack.c.l.b16 %v1356
    %v1797 = vunpack.c.l.b16 %v1357
    %v1798 = vpack.c.b16 %v1797, %v1796
    %v1806 = vunpack.c.l.b16 %v1780
    %v1807 = vunpack.c.h.b16 %v1780
    %v1808 = vunpack.c.l.b16 %v1781
    %v1809 = vunpack.c.h.b16 %v1781
    %v1810 = vunpack.c.l.b16 %v1782
    %v1811 = vunpack.c.h.b16 %v1782
    %v1812 = vunpack.c.l.b16 %v1783
    %v1813 = vunpack.c.h.b16 %v1783
    %v1814 = vunpack.c.l.b16 %v1784
    %v1815 = vunpack.c.h.b16 %v1784
    %v1816 = vunpack.c.l.b16 %v1785
    %v1817 = vunpack.c.h.b16 %v1785
    %v1818 = vunpack.c.l.b16 %v1786
    %v1819 = vunpack.c.h.b16 %v1786
    %v1820 = vpack.c.b16 %v1808, %v1806
    %v1821 = vpack.c.b16 %v1809, %v1807
    %v1822 = vpack.c.b16 %v1812, %v1810
    %v1823 = vpack.c.b16 %v1813, %v1811
    %v1824 = vpack.c.b16 %v1816, %v1814
    %v1825 = vpack.c.b16 %v1817, %v1815
    %v1826 = vpack.c.b16 %v1818, %v1818
    %v1827 = vpack.c.b16 %v1819, %v1819
    %v1835 = vsel %vm306, %v1798, 0
    %v1838 = vsel %vm959, %v1826, 0
    %v1841 = vsel %vm959, %v1827, 0
    %1843 = vmatpush.bf16.msra.mxu0 0
    %1844 = vmatpush.bf16.msra.mxu0 0
    %1845 = vmatpush.bf16.msra.mxu0 0
    %1846 = vmatpush.bf16.msra.mxu0 0
    %1847 = vmatpush.bf16.msra.mxu0 %v1838
    %1848 = vmatpush.bf16.msra.mxu0 %v1824
    %1849 = vmatpush.bf16.msra.mxu0 %v1822
    %1850 = vmatpush.bf16.msra.mxu0 %v1820
    %1851 = vmatmul.bf16.gmra.mxu0 %v1835
    %v1852 = vpop.f32.mrf.mxu0
    %v1853 = vadd.f32 0.0, %v1852
    %v1854 = vpop.f32.mrf.mxu0
    %v1855 = vadd.f32 0.0, %v1854
    %1856 = vdwg.mxu0
    %1857 = vmatpush.bf16.msra.mxu0 0
    %1858 = vmatpush.bf16.msra.mxu0 0
    %1859 = vmatpush.bf16.msra.mxu0 0
    %1860 = vmatpush.bf16.msra.mxu0 0
    %1861 = vmatpush.bf16.msra.mxu0 %v1841
    %1862 = vmatpush.bf16.msra.mxu0 %v1825
    %1863 = vmatpush.bf16.msra.mxu0 %v1823
    %1864 = vmatpush.bf16.msra.mxu0 %v1821
    %1865 = vmatmul.bf16.gmra.mxu0 %v1835
    %v1866 = vpop.f32.mrf.mxu0
    %v1867 = vadd.f32 0.0, %v1866
    %v1868 = vpop.f32.mrf.mxu0
    %v1869 = vadd.f32 0.0, %v1868
    %1870 = vdwg.mxu0
    %v1873 = vunpack.c.l.b16 %v1358
    %v1874 = vunpack.c.l.b16 %v1359
    %v1875 = vpack.c.b16 %v1874, %v1873
    %v1883 = vunpack.c.l.b16 %v1787
    %v1884 = vunpack.c.h.b16 %v1787
    %v1885 = vunpack.c.l.b16 %v1788
    %v1886 = vunpack.c.h.b16 %v1788
    %v1887 = vunpack.c.l.b16 %v1789
    %v1888 = vunpack.c.h.b16 %v1789
    %v1889 = vunpack.c.l.b16 %v1790
    %v1890 = vunpack.c.h.b16 %v1790
    %v1891 = vunpack.c.l.b16 %v1791
    %v1892 = vunpack.c.h.b16 %v1791
    %v1893 = vunpack.c.l.b16 %v1792
    %v1894 = vunpack.c.h.b16 %v1792
    %v1895 = vunpack.c.l.b16 %v1793
    %v1896 = vunpack.c.h.b16 %v1793
    %v1897 = vpack.c.b16 %v1885, %v1883
    %v1898 = vpack.c.b16 %v1886, %v1884
    %v1899 = vpack.c.b16 %v1889, %v1887
    %v1900 = vpack.c.b16 %v1890, %v1888
    %v1901 = vpack.c.b16 %v1893, %v1891
    %v1902 = vpack.c.b16 %v1894, %v1892
    %v1903 = vpack.c.b16 %v1895, %v1895
    %v1904 = vpack.c.b16 %v1896, %v1896
    %v1912 = vsel %vm306, %v1875, 0
    %v1915 = vsel %vm959, %v1903, 0
    %v1918 = vsel %vm959, %v1904, 0
    %1920 = vmatpush.bf16.msra.mxu0 0
    %1921 = vmatpush.bf16.msra.mxu0 0
    %1922 = vmatpush.bf16.msra.mxu0 0
    %1923 = vmatpush.bf16.msra.mxu0 0
    %1924 = vmatpush.bf16.msra.mxu0 %v1915
    %1925 = vmatpush.bf16.msra.mxu0 %v1901
    %1926 = vmatpush.bf16.msra.mxu0 %v1899
    %1927 = vmatpush.bf16.msra.mxu0 %v1897
    %1928 = vmatmul.bf16.gmra.mxu0 %v1912
    %v1929 = vpop.f32.mrf.mxu0
    %v1930 = vadd.f32 0.0, %v1929
    %v1931 = vpop.f32.mrf.mxu0
    %v1932 = vadd.f32 0.0, %v1931
    %1933 = vdwg.mxu0
    %1934 = vmatpush.bf16.msra.mxu0 0
    %1935 = vmatpush.bf16.msra.mxu0 0
    %1936 = vmatpush.bf16.msra.mxu0 0
    %1937 = vmatpush.bf16.msra.mxu0 0
    %1938 = vmatpush.bf16.msra.mxu0 %v1918
    %1939 = vmatpush.bf16.msra.mxu0 %v1902
    %1940 = vmatpush.bf16.msra.mxu0 %v1900
    %1941 = vmatpush.bf16.msra.mxu0 %v1898
    %1942 = vmatmul.bf16.gmra.mxu0 %v1912
    %v1943 = vpop.f32.mrf.mxu0
    %v1944 = vadd.f32 0.0, %v1943
    %v1945 = vpop.f32.mrf.mxu0
    %v1946 = vadd.f32 0.0, %v1945
    %1947 = vdwg.mxu0
    %v1948 = vpack.c.bf16 %v1855, %v1853
    %v1949 = vpack.c.bf16 %v1869, %v1867
    %v1950 = vpack.c.bf16 %v1932, %v1930
    %v1951 = vpack.c.bf16 %v1946, %v1944
    %1952 = vmatpush.bf16.msra.mxu0 0
    %1953 = vmatpush.bf16.msra.mxu0 0
    %1954 = vmatpush.bf16.msra.mxu0 0
    %1955 = vmatpush.bf16.msra.mxu0 0
    %1956 = vmatpush.bf16.msra.mxu0 0
    %1957 = vmatpush.bf16.msra.mxu0 0
    %1958 = vmatpush.bf16.msra.mxu0 %v1950
    %1959 = vmatpush.bf16.msra.mxu0 %v1948
    %1960 = vmatmul.bf16.gmra.mxu0 %v1106
    %v1961 = vpop.f32.mrf.mxu0
    %v1962 = vadd.f32 %v1078, %v1961
    %v1963 = vpop.f32.mrf.mxu0
    %v1964 = vadd.f32 %v1083, %v1963
    %1965 = vmatmul.bf16.gmra.mxu0 %v1109
    %v1966 = vpop.f32.mrf.mxu0
    %v1967 = vadd.f32 %v1088, %v1966
    %v1968 = vpop.f32.mrf.mxu0
    %v1969 = vadd.f32 %v1093, %v1968
    %1970 = vdwg.mxu0
    %1971 = vmatpush.bf16.msra.mxu0 0
    %1972 = vmatpush.bf16.msra.mxu0 0
    %1973 = vmatpush.bf16.msra.mxu0 0
    %1974 = vmatpush.bf16.msra.mxu0 0
    %1975 = vmatpush.bf16.msra.mxu0 0
    %1976 = vmatpush.bf16.msra.mxu0 0
    %1977 = vmatpush.bf16.msra.mxu0 %v1951
    %1978 = vmatpush.bf16.msra.mxu0 %v1949
    %1979 = vmatmul.bf16.gmra.mxu0 %v1106
    %v1980 = vpop.f32.mrf.mxu0
    %v1981 = vadd.f32 %v1078, %v1980
    %v1982 = vpop.f32.mrf.mxu0
    %v1983 = vadd.f32 %v1083, %v1982
    %1984 = vmatmul.bf16.gmra.mxu0 %v1109
    %v1985 = vpop.f32.mrf.mxu0
    %v1986 = vadd.f32 %v1088, %v1985
    %v1987 = vpop.f32.mrf.mxu0
    %v1988 = vadd.f32 %v1093, %v1987
    %1989 = vdwg.mxu0
    %s1990 = scalar_lea.vmem [#allocation2], 64
    %1991 = vst [vmem:[%s1990] sm:$0xff] %v1962
    %1992 = vst [vmem:[%s1990 + $0x8] sm:$0xff] %v1981
    %1993 = vst [vmem:[%s1990 + $0x10] sm:$0xff] %v1964
    %1994 = vst [vmem:[%s1990 + $0x18] sm:$0xff] %v1983
    %1995 = vst [vmem:[%s1990 + $0x20] sm:$0xff] %v1967
    %1996 = vst [vmem:[%s1990 + $0x28] sm:$0xff] %v1986
    %1997 = vst [vmem:[%s1990 + $0x30] sm:$0xff] %v1969
    %1998 = vst [vmem:[%s1990 + $0x38] sm:$0xff] %v1988
    // Predicated region
    $region26: #{tpu_custom_call.1} parent=1 // pred_check
      _
    $region27: #{tpu_custom_call.1} parent=1 // pred_check_branch
      %2000 = sbr.rel (0) target = $region29
    $region28: #{tpu_custom_call.1} parent=1 // pred_region
      %2002 = vsyncadd [#allocation3], 0
      %s2003 = sshll.u32 [#allocation2], 4
      %s2004 = int_to_ptr.vmem [resolvable:$true] %s2003
      %s2005 = sshll.u32 %s6, 4
      %s2006 = int_to_ptr.hbm [resolvable:$true] %s2005
      %2011 = dma.vmem_to_hbm [thread:$0]  %s2004, 2048, %s2006, [#allocation3], 256, 256, 16
    $region29: #{tpu_custom_call.1} parent=1 // pred_fallthru
      _
    // Predicated region
    $region30: #{tpu_custom_call.1} parent=1 // pred_check
      _
    $region31: #{tpu_custom_call.1} parent=1 // pred_check_branch
      %2013 = sbr.rel (0) target = $region33
    $region32: #{tpu_custom_call.1} parent=1 // pred_region
      %2015 = dma.done [#allocation3], 2048
    $region33: #{tpu_custom_call.1} parent=1 // pred_fallthru
      _
    %2016 = vsyncpa [#allocation3], 1

</llo_original>
